<compile_context>
chip_gen: v7x
topology: tpu7x:2x2x1
jax: 0.10.0
libtpu: 0.0.40
codegen_flags: <defaults>
</compile_context>

<pallas_src>
import functools

import jax
import jax.numpy as jnp
from jax.experimental import pallas as pl
from jax.experimental.pallas import tpu as pltpu


# ----------------------------------------------------------------------------
# In-kernel avg-pool (stride s) on token matrices (HW, C) -> (HW/s^2, C).
# ----------------------------------------------------------------------------
def _avg_pool_tokens(scr_ref, vals, height, width, stride):
    """Writes `vals` to the f32 VMEM scratch, then pools with strided reads."""
    s = stride
    h2, w2 = height // s, width // s
    c = vals.shape[-1]
    scr_ref[...] = vals
    # Column pool: s sublane-strided slices.  Flat index j + k*s equals
    # r*W + s*c2 + j for k = r*W2 + c2 (since s*W2 == W), so slice k-th row is
    # exactly token (r, s*c2 + j).
    cp = scr_ref[pl.ds(0, height * w2, stride=s), :]
    for j in range(1, s):
        cp = cp + scr_ref[pl.ds(j, height * w2, stride=s), :]
    # Row pool: aligned row-block sums (blocks of w2 rows).
    cp3 = cp.reshape(h2, s * w2, c)
    rp = cp3[:, 0:w2, :]
    for i in range(1, s):
        rp = rp + cp3[:, i * w2:(i + 1) * w2, :]
    return rp.reshape(h2 * w2, c) * (1.0 / (s * s))


# ----------------------------------------------------------------------------
# Pallas kernel: one full Bottleneck block for one image (all convs fused).
# ----------------------------------------------------------------------------
def _bottleneck_kernel(*refs, height, width, stride, has_downsample, mxu_dtype):
    x_ref, w1_ref, b1_ref, w2_ref, b2_ref, w3_ref, b3_ref = refs[:7]
    idx = 7
    wd_ref = bd_ref = None
    if has_downsample:
        wd_ref, bd_ref = refs[idx], refs[idx + 1]
        idx += 2
    o_ref = refs[idx]
    idx += 1
    h1pad_ref = refs[idx]
    idx += 1
    h2pool_ref = xpool_ref = None
    if stride > 1:
        h2pool_ref, xpool_ref = refs[idx], refs[idx + 1]
        idx += 2

    f32 = jnp.float32
    hw = height * width
    p = w1_ref.shape[-1]

    # Residual path stays f32; MXU operands are cast to mxu_dtype.
    x_f32 = x_ref[...].astype(f32)
    x_mxu = x_f32.astype(mxu_dtype)

    # ---- conv1 (1x1) + bn1 + relu : computed once ----------------------------
    h1 = jnp.dot(x_mxu, w1_ref[...], preferred_element_type=f32) + b1_ref[...]
    h1 = jnp.maximum(h1, 0.0).astype(mxu_dtype)

    # +/-1 column taps via XLU sublane rotate + edge masks (zero padding).
    h1m = pltpu.roll(h1, shift=1, axis=0)         # h1[r, c-1]
    h1p = pltpu.roll(h1, shift=hw - 1, axis=0)    # h1[r, c+1]
    col = jax.lax.broadcasted_iota(jnp.int32, (hw, 1), 0) % width
    zeros_h1 = jnp.zeros_like(h1)
    h1m = jnp.where(col >= 1, h1m, zeros_h1)
    h1p = jnp.where(col <= width - 2, h1p, zeros_h1)

    # Zero-haloed scratch: [W | HW | W] rows x [h1m | h1 | h1p] channel blocks.
    # Each conv2 row tap then is a single aligned window read at offset ky*W.
    halo = jnp.zeros((width, 3 * p), mxu_dtype)
    h1pad_ref[0:width, :] = halo
    h1pad_ref[width + hw:width + hw + width, :] = halo
    h1pad_ref[width:width + hw, 0:p] = h1m
    h1pad_ref[width:width + hw, p:2 * p] = h1
    h1pad_ref[width:width + hw, 2 * p:3 * p] = h1p

    # ---- conv2 (3x3, pad=1) + bn2 + relu : three K=3P MXU contractions ------
    acc = jnp.zeros((hw, p), f32) + b2_ref[...]
    for ky in range(3):
        tap = h1pad_ref[ky * width:ky * width + hw, :]
        acc = acc + jnp.dot(tap, w2_ref[ky], preferred_element_type=f32)
    h2 = jnp.maximum(acc, 0.0)

    # ---- avgpool(stride) : strided-row reduction (no dense pool matmul) -----
    if stride > 1:
        h2 = _avg_pool_tokens(h2pool_ref, h2, height, width, stride)

    # ---- conv3 (1x1) + bn3 ---------------------------------------------------
    h3 = jnp.dot(h2.astype(mxu_dtype), w3_ref[...],
                 preferred_element_type=f32) + b3_ref[...]

    # ---- identity / downsample ----------------------------------------------
    if has_downsample:
        idn = x_f32
        if stride > 1:
            idn = _avg_pool_tokens(xpool_ref, idn, height, width, stride)
        idn = jnp.dot(idn.astype(mxu_dtype), wd_ref[...],
                      preferred_element_type=f32) + bd_ref[...]
    else:
        idn = x_f32

    o_ref[...] = jnp.maximum(h3 + idn, 0.0).astype(o_ref.dtype)


# ----------------------------------------------------------------------------
# Wrapper matching Bottleneck.forward (inference-mode BatchNorm, folded).
# ----------------------------------------------------------------------------
def bottleneck_forward(x, params, stride, *, mxu_dtype=jnp.float32,
                       out_dtype=None, eps=1e-5):
    B, c_in, H, W = x.shape
    P = params["conv1_w"].shape[0]
    c_out = params["conv3_w"].shape[0]
    has_down = (stride > 1) or (c_in != c_out)
    out_dtype = x.dtype if out_dtype is None else out_dtype
    assert H % stride == 0 and W % stride == 0
    assert W % 8 == 0, "sublane-aligned taps need W % 8 == 0"

    H2, W2 = H // stride, W // stride
    HW, HW2 = H * W, H2 * W2

    def fold(w, g, b, m, v):
        # PyTorch conv weight (Cout,Cin,kh,kw) -> (kh,kw,Cin,Cout), BN folded.
        scale = g / jnp.sqrt(v + eps)
        return jnp.transpose(w, (2, 3, 1, 0)) * scale, (b - m * scale)

    w1f, b1f = fold(params["conv1_w"], params["bn1_g"], params["bn1_b"],
                    params["bn1_m"], params["bn1_v"])
    w2f, b2f = fold(params["conv2_w"], params["bn2_g"], params["bn2_b"],
                    params["bn2_m"], params["bn2_v"])
    w3f, b3f = fold(params["conv3_w"], params["bn3_g"], params["bn3_b"],
                    params["bn3_m"], params["bn3_v"])
    w1f = w1f.reshape(c_in, P).astype(mxu_dtype)
    w2f = w2f.reshape(3, 3 * P, P).astype(mxu_dtype)   # rows = (kx, Cin)
    w3f = w3f.reshape(P, c_out).astype(mxu_dtype)
    b1f = b1f.reshape(1, P)
    b2f = b2f.reshape(1, P)
    b3f = b3f.reshape(1, c_out)

    # Channels-last token matrices (one copy of x; residual stays in x.dtype).
    x_tok = jnp.transpose(x, (0, 2, 3, 1)).reshape(B, HW, c_in)

    inputs = [x_tok, w1f, b1f, w2f, b2f, w3f, b3f]
    in_specs = [
        pl.BlockSpec((None, HW, c_in), lambda b: (b, 0, 0)),
        pl.BlockSpec((c_in, P), lambda b: (0, 0)),
        pl.BlockSpec((1, P), lambda b: (0, 0)),
        pl.BlockSpec((3, 3 * P, P), lambda b: (0, 0, 0)),
        pl.BlockSpec((1, P), lambda b: (0, 0)),
        pl.BlockSpec((P, c_out), lambda b: (0, 0)),
        pl.BlockSpec((1, c_out), lambda b: (0, 0)),
    ]
    if has_down:
        wdf, bdf = fold(params["convd_w"], params["bnd_g"], params["bnd_b"],
                        params["bnd_m"], params["bnd_v"])
        inputs += [wdf.reshape(c_in, c_out).astype(mxu_dtype),
                   bdf.reshape(1, c_out)]
        in_specs += [pl.BlockSpec((c_in, c_out), lambda b: (0, 0)),
                     pl.BlockSpec((1, c_out), lambda b: (0, 0))]

    scratch_shapes = [pltpu.VMEM((HW + 2 * W, 3 * P), mxu_dtype)]  # haloed taps
    if stride > 1:
        scratch_shapes += [pltpu.VMEM((HW, P), jnp.float32),       # h2 pooling
                           pltpu.VMEM((HW, c_in), jnp.float32)]    # identity pooling

    kernel = functools.partial(_bottleneck_kernel, height=H, width=W,
                               stride=stride, has_downsample=has_down,
                               mxu_dtype=mxu_dtype)

    out = pl.pallas_call(
        kernel,
        out_shape=jax.ShapeDtypeStruct((B, HW2, c_out), out_dtype),
        grid_spec=pltpu.PrefetchScalarGridSpec(
            num_scalar_prefetch=0,
            grid=(B,),
            in_specs=in_specs,
            out_specs=pl.BlockSpec((None, HW2, c_out), lambda b: (b, 0, 0)),
            scratch_shapes=scratch_shapes,
        ),
        compiler_params=pltpu.CompilerParams(
            dimension_semantics=("parallel",),
            # Re-derive for production image sizes; fits all of v5e/v6e/v7x.
            vmem_limit_bytes=64 * 1024 * 1024),
    )(*inputs)

    return jnp.transpose(out, (0, 2, 1)).reshape(B, c_out, H2, W2)


# ----------------------------------------------------------------------------
# Pure-JAX / XLA reference (independent conv path) for correctness checking.
# ----------------------------------------------------------------------------
def _reference_forward(x, params, stride, eps=1e-5):
    def conv(h, w, padding):
        return jax.lax.conv_general_dilated(
            h, w, window_strides=(1, 1), padding=padding,
            dimension_numbers=("NCHW", "OIHW", "NCHW"))

    def bn(h, g, b, m, v):
        s = g / jnp.sqrt(v + eps)
        return h * s[None, :, None, None] + (b - m * s)[None, :, None, None]

    def avgpool(h, s):
        if s == 1:
            return h
        B, C, H, W = h.shape
        return h.reshape(B, C, H // s, s, W // s, s).mean(axis=(3, 5))

    out = jax.nn.relu(bn(conv(x, params["conv1_w"], "VALID"),
                         params["bn1_g"], params["bn1_b"],
                         params["bn1_m"], params["bn1_v"]))
    out = jax.nn.relu(bn(conv(out, params["conv2_w"], ((1, 1), (1, 1))),
                         params["bn2_g"], params["bn2_b"],
                         params["bn2_m"], params["bn2_v"]))
    out = avgpool(out, stride)
    out = bn(conv(out, params["conv3_w"], "VALID"),
             params["bn3_g"], params["bn3_b"], params["bn3_m"], params["bn3_v"])
    c_out = params["conv3_w"].shape[0]
    if stride > 1 or x.shape[1] != c_out:
        idn = avgpool(x, stride)
        idn = bn(conv(idn, params["convd_w"], "VALID"),
                 params["bnd_g"], params["bnd_b"],
                 params["bnd_m"], params["bnd_v"])
    else:
        idn = x
    return jax.nn.relu(out + idn)


if __name__ == "__main__":
    def make_params(key, inplanes, planes, with_down):
        c_out = planes * 4
        keys = iter(jax.random.split(key, 40))

        def nrm(shape, scale=0.1):
            return jax.random.normal(next(keys), shape, jnp.float32) * scale

        def bn(prefix, c):
            return {
                f"{prefix}_g": jax.random.uniform(next(keys), (c,), jnp.float32, 0.5, 1.5),
                f"{prefix}_b": nrm((c,)),
                f"{prefix}_m": nrm((c,)),
                f"{prefix}_v": jax.random.uniform(next(keys), (c,), jnp.float32, 0.5, 1.5),
            }

        p = {"conv1_w": nrm((planes, inplanes, 1, 1)),
             "conv2_w": nrm((planes, planes, 3, 3)),
             "conv3_w": nrm((c_out, planes, 1, 1))}
        p.update(bn("bn1", planes))
        p.update(bn("bn2", planes))
        p.update(bn("bn3", c_out))
        if with_down:
            p["convd_w"] = nrm((c_out, inplanes, 1, 1))
            p.update(bn("bnd", c_out))
        return p

    k1, k2, k3, k4 = jax.random.split(jax.random.PRNGKey(0), 4)

    # Config A: Bottleneck(64, 32, stride=2) -> avgpool + downsample branch.
    B, inplanes, planes, stride, H = 2, 64, 32, 2, 16
    params_a = make_params(k1, inplanes, planes, True)
    x_a = jax.random.normal(k2, (B, inplanes, H, H), jnp.float32)
    out_a = jax.block_until_ready(bottleneck_forward(x_a, params_a, stride))
    ref_a = _reference_forward(x_a, params_a, stride)
    assert out_a.shape == (B, planes * 4, H // stride, H // stride)
    err_a = float(jnp.max(jnp.abs(out_a - ref_a)))
    assert err_a < 2e-3, err_a

    # Config B: Bottleneck(128, 32, stride=1) -> pure identity skip, no pool.
    params_b = make_params(k3, 128, 32, False)
    x_b = jax.random.normal(k4, (2, 128, 8, 8), jnp.float32)
    out_b = jax.block_until_ready(bottleneck_forward(x_b, params_b, 1))
    ref_b = _reference_forward(x_b, params_b, 1)
    assert out_b.shape == (2, 128, 8, 8)
    err_b = float(jnp.max(jnp.abs(out_b - ref_b)))
    assert err_b < 2e-3, err_b

    # Config C: bf16 MXU operands (f32 accumulate, f32 residual and output).
    out_c = jax.block_until_ready(
        bottleneck_forward(x_a, params_a, stride, mxu_dtype=jnp.bfloat16))
    err_c = float(jnp.max(jnp.abs(out_c - ref_a)))
    tol_c = 5e-2 * float(jnp.max(jnp.abs(ref_a))) + 5e-2
    assert err_c < tol_c, (err_c, tol_c)

    print("KERNEL_OK")
</pallas_src>

<mosaic_0001>
module attributes {stable_mosaic.version = 11 : i64} {
  func.func @_bottleneck_kernel(%arg0: i32, %arg1: memref<1x256x64xf32, #tpu.memory_space<vmem>>, %arg2: memref<64x32xf32, #tpu.memory_space<vmem>>, %arg3: memref<1x32xf32, #tpu.memory_space<vmem>>, %arg4: memref<3x96x32xf32, #tpu.memory_space<vmem>>, %arg5: memref<1x32xf32, #tpu.memory_space<vmem>>, %arg6: memref<32x128xf32, #tpu.memory_space<vmem>>, %arg7: memref<1x128xf32, #tpu.memory_space<vmem>>, %arg8: memref<64x128xf32, #tpu.memory_space<vmem>>, %arg9: memref<1x128xf32, #tpu.memory_space<vmem>>, %arg10: memref<1x64x128xf32, #tpu.memory_space<vmem>>, %arg11: memref<288x96xf32, #tpu.memory_space<vmem>>, %arg12: memref<256x32xf32, #tpu.memory_space<vmem>>, %arg13: memref<256x64xf32, #tpu.memory_space<vmem>>) attributes {dimension_semantics = [#tpu.dimension_semantics<parallel>], iteration_bounds = array<i64: 2>, scalar_prefetch = 0 : i64, scratch_operands = 3 : i64, tpu.core_type = #tpu.core_type<tc>, window_params = [{transform_indices = @transform_0, window_bounds = array<i64: 1, 256, 64>}, {pipeline_mode = #tpu.pipeline_mode<synchronous>, transform_indices = @transform_1, window_bounds = array<i64: 64, 32>}, {pipeline_mode = #tpu.pipeline_mode<synchronous>, transform_indices = @transform_2, window_bounds = array<i64: 1, 32>}, {pipeline_mode = #tpu.pipeline_mode<synchronous>, transform_indices = @transform_3, window_bounds = array<i64: 3, 96, 32>}, {pipeline_mode = #tpu.pipeline_mode<synchronous>, transform_indices = @transform_4, window_bounds = array<i64: 1, 32>}, {pipeline_mode = #tpu.pipeline_mode<synchronous>, transform_indices = @transform_5, window_bounds = array<i64: 32, 128>}, {pipeline_mode = #tpu.pipeline_mode<synchronous>, transform_indices = @transform_6, window_bounds = array<i64: 1, 128>}, {pipeline_mode = #tpu.pipeline_mode<synchronous>, transform_indices = @transform_7, window_bounds = array<i64: 64, 128>}, {pipeline_mode = #tpu.pipeline_mode<synchronous>, transform_indices = @transform_8, window_bounds = array<i64: 1, 128>}, {transform_indices = @transform_9, window_bounds = array<i64: 1, 64, 128>}]} {
    %c0 = arith.constant 0 : index
    %c0_0 = arith.constant 0 : index
    %c0_1 = arith.constant 0 : index
    %0 = vector.load %arg1[%c0, %c0_0, %c0_1] : memref<1x256x64xf32, #tpu.memory_space<vmem>>, vector<1x256x64xf32>
    %1 = vector.shape_cast %0 : vector<1x256x64xf32> to vector<256x64xf32>
    %c0_2 = arith.constant 0 : index
    %c0_3 = arith.constant 0 : index
    %2 = vector.load %arg2[%c0_2, %c0_3] : memref<64x32xf32, #tpu.memory_space<vmem>>, vector<64x32xf32>
    %cst = arith.constant dense<0.000000e+00> : vector<256x32xf32>
    %3 = tpu.matmul %1, %2, %cst {dimension_numbers = #tpu.dot_dimension_numbers<[1], [0], [0], [1], [0, 0, 1, 1], [], []>} : vector<256x64xf32>, vector<64x32xf32>, vector<256x32xf32> -> vector<256x32xf32>
    %c0_4 = arith.constant 0 : index
    %c0_5 = arith.constant 0 : index
    %4 = vector.load %arg3[%c0_4, %c0_5] : memref<1x32xf32, #tpu.memory_space<vmem>>, vector<1x32xf32>
    %5 = vector.broadcast %4 : vector<1x32xf32> to vector<256x32xf32>
    %6 = arith.addf %3, %5 : vector<256x32xf32>
    %cst_6 = arith.constant 0.000000e+00 : f32
    %7 = vector.broadcast %cst_6 : f32 to vector<256x32xf32>
    %8 = arith.maximumf %6, %7 : vector<256x32xf32>
    %c1_i32 = arith.constant 1 : i32
    %9 = tpu.dynamic_rotate %8 by %c1_i32 dim 0 : vector<256x32xf32>, i32 -> vector<256x32xf32>
    %c255_i32 = arith.constant 255 : i32
    %10 = tpu.dynamic_rotate %8 by %c255_i32 dim 0 : vector<256x32xf32>, i32 -> vector<256x32xf32>
    %11 = tpu.iota {dimensions = array<i32: 0>} : vector<256x1xi32>
    %c16_i32 = arith.constant 16 : i32
    %c0_i32 = arith.constant 0 : i32
    %12 = arith.cmpi eq, %c16_i32, %c0_i32 : i32
    %c1_i32_7 = arith.constant 1 : i32
    %13 = arith.select %12, %c1_i32_7, %c16_i32 : i32
    %14 = vector.broadcast %13 : i32 to vector<256x1xi32>
    %15 = arith.remsi %11, %14 : vector<256x1xi32>
    %c0_i32_8 = arith.constant 0 : i32
    %16 = vector.broadcast %c0_i32_8 : i32 to vector<256x1xi32>
    %17 = arith.cmpi ne, %15, %16 : vector<256x1xi32>
    %c0_i32_9 = arith.constant 0 : i32
    %18 = vector.broadcast %c0_i32_9 : i32 to vector<256x1xi32>
    %19 = arith.cmpi slt, %15, %18 : vector<256x1xi32>
    %c0_i32_10 = arith.constant 0 : i32
    %20 = arith.cmpi slt, %13, %c0_i32_10 : i32
    %21 = vector.broadcast %20 : i1 to vector<256x1xi1>
    %22 = vector.broadcast %21 : vector<256x1xi1> to vector<256x1xi1>
    %23 = arith.xori %19, %22 : vector<256x1xi1>
    %24 = arith.andi %23, %17 : vector<256x1xi1>
    %25 = vector.broadcast %13 : i32 to vector<256x1xi32>
    %26 = arith.addi %15, %25 : vector<256x1xi32>
    %27 = arith.select %24, %26, %15 : vector<256x1xi1>, vector<256x1xi32>
    %cst_11 = arith.constant 0.000000e+00 : f32
    %28 = vector.broadcast %cst_11 : f32 to vector<256x32xf32>
    %c1_i32_12 = arith.constant 1 : i32
    %29 = vector.broadcast %c1_i32_12 : i32 to vector<256x1xi32>
    %30 = arith.cmpi sge, %27, %29 : vector<256x1xi32>
    %31 = vector.shape_cast %30 : vector<256x1xi1> to vector<256x1xi1>
    %32 = vector.broadcast %31 : vector<256x1xi1> to vector<256x32xi1>
    %33 = arith.select %32, %9, %28 : vector<256x32xi1>, vector<256x32xf32>
    %c14_i32 = arith.constant 14 : i32
    %34 = vector.broadcast %c14_i32 : i32 to vector<256x1xi32>
    %35 = arith.cmpi sle, %27, %34 : vector<256x1xi32>
    %36 = vector.shape_cast %35 : vector<256x1xi1> to vector<256x1xi1>
    %37 = vector.broadcast %36 : vector<256x1xi1> to vector<256x32xi1>
    %38 = arith.select %37, %10, %28 : vector<256x32xi1>, vector<256x32xf32>
    %cst_13 = arith.constant 0.000000e+00 : f32
    %39 = vector.broadcast %cst_13 : f32 to vector<16x96xf32>
    %c0_14 = arith.constant 0 : index
    %c0_15 = arith.constant 0 : index
    %40 = vector.load %arg11[%c0_14, %c0_15] : memref<288x96xf32, #tpu.memory_space<vmem>>, vector<16x96xf32>
    tpu.vector_store %arg11[%c0_14, %c0_15], %39 {strides = array<i32>} : memref<288x96xf32, #tpu.memory_space<vmem>>, vector<16x96xf32>,
    %c272 = arith.constant 272 : index
    %c0_16 = arith.constant 0 : index
    %41 = vector.load %arg11[%c272, %c0_16] : memref<288x96xf32, #tpu.memory_space<vmem>>, vector<16x96xf32>
    tpu.vector_store %arg11[%c272, %c0_16], %39 {strides = array<i32>} : memref<288x96xf32, #tpu.memory_space<vmem>>, vector<16x96xf32>,
    %c16 = arith.constant 16 : index
    %c0_17 = arith.constant 0 : index
    %42 = vector.load %arg11[%c16, %c0_17] : memref<288x96xf32, #tpu.memory_space<vmem>>, vector<256x32xf32>
    tpu.vector_store %arg11[%c16, %c0_17], %33 {strides = array<i32>} : memref<288x96xf32, #tpu.memory_space<vmem>>, vector<256x32xf32>,
    %c16_18 = arith.constant 16 : index
    %c32 = arith.constant 32 : index
    %43 = vector.load %arg11[%c16_18, %c32] : memref<288x96xf32, #tpu.memory_space<vmem>>, vector<256x32xf32>
    tpu.vector_store %arg11[%c16_18, %c32], %8 {strides = array<i32>} : memref<288x96xf32, #tpu.memory_space<vmem>>, vector<256x32xf32>,
    %c16_19 = arith.constant 16 : index
    %c64 = arith.constant 64 : index
    %44 = vector.load %arg11[%c16_19, %c64] : memref<288x96xf32, #tpu.memory_space<vmem>>, vector<256x32xf32>
    tpu.vector_store %arg11[%c16_19, %c64], %38 {strides = array<i32>} : memref<288x96xf32, #tpu.memory_space<vmem>>, vector<256x32xf32>,
    %cst_20 = arith.constant 0.000000e+00 : f32
    %45 = vector.broadcast %cst_20 : f32 to vector<256x32xf32>
    %c0_21 = arith.constant 0 : index
    %c0_22 = arith.constant 0 : index
    %46 = vector.load %arg5[%c0_21, %c0_22] : memref<1x32xf32, #tpu.memory_space<vmem>>, vector<1x32xf32>
    %47 = vector.broadcast %46 : vector<1x32xf32> to vector<256x32xf32>
    %48 = arith.addf %45, %47 : vector<256x32xf32>
    %c0_23 = arith.constant 0 : index
    %c0_24 = arith.constant 0 : index
    %49 = vector.load %arg11[%c0_23, %c0_24] : memref<288x96xf32, #tpu.memory_space<vmem>>, vector<256x96xf32>
    %c0_25 = arith.constant 0 : index
    %c0_26 = arith.constant 0 : index
    %c0_27 = arith.constant 0 : index
    %50 = vector.load %arg4[%c0_25, %c0_26, %c0_27] : memref<3x96x32xf32, #tpu.memory_space<vmem>>, vector<1x96x32xf32>
    %51 = vector.shape_cast %50 : vector<1x96x32xf32> to vector<96x32xf32>
    %cst_28 = arith.constant dense<0.000000e+00> : vector<256x32xf32>
    %52 = tpu.matmul %49, %51, %cst_28 {dimension_numbers = #tpu.dot_dimension_numbers<[1], [0], [0], [1], [0, 0, 1, 1], [], []>} : vector<256x96xf32>, vector<96x32xf32>, vector<256x32xf32> -> vector<256x32xf32>
    %53 = arith.addf %48, %52 : vector<256x32xf32>
    %c16_29 = arith.constant 16 : index
    %c0_30 = arith.constant 0 : index
    %54 = vector.load %arg11[%c16_29, %c0_30] : memref<288x96xf32, #tpu.memory_space<vmem>>, vector<256x96xf32>
    %c1 = arith.constant 1 : index
    %c0_31 = arith.constant 0 : index
    %c0_32 = arith.constant 0 : index
    %55 = vector.load %arg4[%c1, %c0_31, %c0_32] : memref<3x96x32xf32, #tpu.memory_space<vmem>>, vector<1x96x32xf32>
    %56 = vector.shape_cast %55 : vector<1x96x32xf32> to vector<96x32xf32>
    %cst_33 = arith.constant dense<0.000000e+00> : vector<256x32xf32>
    %57 = tpu.matmul %54, %56, %cst_33 {dimension_numbers = #tpu.dot_dimension_numbers<[1], [0], [0], [1], [0, 0, 1, 1], [], []>} : vector<256x96xf32>, vector<96x32xf32>, vector<256x32xf32> -> vector<256x32xf32>
    %58 = arith.addf %53, %57 : vector<256x32xf32>
    %c32_34 = arith.constant 32 : index
    %c0_35 = arith.constant 0 : index
    %59 = vector.load %arg11[%c32_34, %c0_35] : memref<288x96xf32, #tpu.memory_space<vmem>>, vector<256x96xf32>
    %c2 = arith.constant 2 : index
    %c0_36 = arith.constant 0 : index
    %c0_37 = arith.constant 0 : index
    %60 = vector.load %arg4[%c2, %c0_36, %c0_37] : memref<3x96x32xf32, #tpu.memory_space<vmem>>, vector<1x96x32xf32>
    %61 = vector.shape_cast %60 : vector<1x96x32xf32> to vector<96x32xf32>
    %cst_38 = arith.constant dense<0.000000e+00> : vector<256x32xf32>
    %62 = tpu.matmul %59, %61, %cst_38 {dimension_numbers = #tpu.dot_dimension_numbers<[1], [0], [0], [1], [0, 0, 1, 1], [], []>} : vector<256x96xf32>, vector<96x32xf32>, vector<256x32xf32> -> vector<256x32xf32>
    %63 = arith.addf %58, %62 : vector<256x32xf32>
    %cst_39 = arith.constant 0.000000e+00 : f32
    %64 = vector.broadcast %cst_39 : f32 to vector<256x32xf32>
    %65 = arith.maximumf %63, %64 : vector<256x32xf32>
    %c0_40 = arith.constant 0 : index
    %c0_41 = arith.constant 0 : index
    %66 = vector.load %arg12[%c0_40, %c0_41] : memref<256x32xf32, #tpu.memory_space<vmem>>, vector<256x32xf32>
    tpu.vector_store %arg12[%c0_40, %c0_41], %65 {strides = array<i32>} : memref<256x32xf32, #tpu.memory_space<vmem>>, vector<256x32xf32>,
    %c0_42 = arith.constant 0 : index
    %c0_43 = arith.constant 0 : index
    %67 = tpu.strided_load %arg12[%c0_42, %c0_43] {strides = array<i32: 2, 1>} : memref<256x32xf32, #tpu.memory_space<vmem>>, vector<128x32xf32>
    %c1_44 = arith.constant 1 : index
    %c0_45 = arith.constant 0 : index
    %68 = tpu.strided_load %arg12[%c1_44, %c0_45] {strides = array<i32: 2, 1>} : memref<256x32xf32, #tpu.memory_space<vmem>>, vector<128x32xf32>
    %69 = arith.addf %67, %68 : vector<128x32xf32>
    %70 = vector.shape_cast %69 : vector<128x32xf32> to vector<8x16x32xf32>
    %71 = vector.extract_strided_slice %70 {offsets = [0, 0, 0], sizes = [8, 8, 32], strides = [1, 1, 1]} : vector<8x16x32xf32> to vector<8x8x32xf32>
    %72 = vector.extract_strided_slice %70 {offsets = [0, 8, 0], sizes = [8, 8, 32], strides = [1, 1, 1]} : vector<8x16x32xf32> to vector<8x8x32xf32>
    %73 = arith.addf %71, %72 : vector<8x8x32xf32>
    %74 = vector.shape_cast %73 : vector<8x8x32xf32> to vector<64x32xf32>
    %cst_46 = arith.constant 2.500000e-01 : f32
    %75 = vector.broadcast %cst_46 : f32 to vector<64x32xf32>
    %76 = arith.mulf %74, %75 : vector<64x32xf32>
    %c0_47 = arith.constant 0 : index
    %c0_48 = arith.constant 0 : index
    %77 = vector.load %arg6[%c0_47, %c0_48] : memref<32x128xf32, #tpu.memory_space<vmem>>, vector<32x128xf32>
    %cst_49 = arith.constant dense<0.000000e+00> : vector<64x128xf32>
    %78 = tpu.matmul %76, %77, %cst_49 {dimension_numbers = #tpu.dot_dimension_numbers<[1], [0], [0], [1], [0, 0, 1, 1], [], []>} : vector<64x32xf32>, vector<32x128xf32>, vector<64x128xf32> -> vector<64x128xf32>
    %c0_50 = arith.constant 0 : index
    %c0_51 = arith.constant 0 : index
    %79 = vector.load %arg7[%c0_50, %c0_51] : memref<1x128xf32, #tpu.memory_space<vmem>>, vector<1x128xf32>
    %80 = vector.broadcast %79 : vector<1x128xf32> to vector<64x128xf32>
    %81 = arith.addf %78, %80 : vector<64x128xf32>
    %c0_52 = arith.constant 0 : index
    %c0_53 = arith.constant 0 : index
    %82 = vector.load %arg13[%c0_52, %c0_53] : memref<256x64xf32, #tpu.memory_space<vmem>>, vector<256x64xf32>
    tpu.vector_store %arg13[%c0_52, %c0_53], %1 {strides = array<i32>} : memref<256x64xf32, #tpu.memory_space<vmem>>, vector<256x64xf32>,
    %c0_54 = arith.constant 0 : index
    %c0_55 = arith.constant 0 : index
    %83 = tpu.strided_load %arg13[%c0_54, %c0_55] {strides = array<i32: 2, 1>} : memref<256x64xf32, #tpu.memory_space<vmem>>, vector<128x64xf32>
    %c1_56 = arith.constant 1 : index
    %c0_57 = arith.constant 0 : index
    %84 = tpu.strided_load %arg13[%c1_56, %c0_57] {strides = array<i32: 2, 1>} : memref<256x64xf32, #tpu.memory_space<vmem>>, vector<128x64xf32>
    %85 = arith.addf %83, %84 : vector<128x64xf32>
    %86 = vector.shape_cast %85 : vector<128x64xf32> to vector<8x16x64xf32>
    %87 = vector.extract_strided_slice %86 {offsets = [0, 0, 0], sizes = [8, 8, 64], strides = [1, 1, 1]} : vector<8x16x64xf32> to vector<8x8x64xf32>
    %88 = vector.extract_strided_slice %86 {offsets = [0, 8, 0], sizes = [8, 8, 64], strides = [1, 1, 1]} : vector<8x16x64xf32> to vector<8x8x64xf32>
    %89 = arith.addf %87, %88 : vector<8x8x64xf32>
    %90 = vector.shape_cast %89 : vector<8x8x64xf32> to vector<64x64xf32>
    %cst_58 = arith.constant 2.500000e-01 : f32
    %91 = vector.broadcast %cst_58 : f32 to vector<64x64xf32>
    %92 = arith.mulf %90, %91 : vector<64x64xf32>
    %c0_59 = arith.constant 0 : index
    %c0_60 = arith.constant 0 : index
    %93 = vector.load %arg8[%c0_59, %c0_60] : memref<64x128xf32, #tpu.memory_space<vmem>>, vector<64x128xf32>
    %cst_61 = arith.constant dense<0.000000e+00> : vector<64x128xf32>
    %94 = tpu.matmul %92, %93, %cst_61 {dimension_numbers = #tpu.dot_dimension_numbers<[1], [0], [0], [1], [0, 0, 1, 1], [], []>} : vector<64x64xf32>, vector<64x128xf32>, vector<64x128xf32> -> vector<64x128xf32>
    %c0_62 = arith.constant 0 : index
    %c0_63 = arith.constant 0 : index
    %95 = vector.load %arg9[%c0_62, %c0_63] : memref<1x128xf32, #tpu.memory_space<vmem>>, vector<1x128xf32>
    %96 = vector.broadcast %95 : vector<1x128xf32> to vector<64x128xf32>
    %97 = arith.addf %94, %96 : vector<64x128xf32>
    %98 = arith.addf %81, %97 : vector<64x128xf32>
    %cst_64 = arith.constant 0.000000e+00 : f32
    %99 = vector.broadcast %cst_64 : f32 to vector<64x128xf32>
    %100 = arith.maximumf %98, %99 : vector<64x128xf32>
    %c0_65 = arith.constant 0 : index
    %c0_66 = arith.constant 0 : index
    %c0_67 = arith.constant 0 : index
    %101 = vector.load %arg10[%c0_65, %c0_66, %c0_67] : memref<1x64x128xf32, #tpu.memory_space<vmem>>, vector<1x64x128xf32>
    %102 = vector.shape_cast %101 : vector<1x64x128xf32> to vector<64x128xf32>
    %103 = vector.shape_cast %100 : vector<64x128xf32> to vector<1x64x128xf32>
    tpu.vector_store %arg10[%c0_65, %c0_66, %c0_67], %103 {strides = array<i32>} : memref<1x64x128xf32, #tpu.memory_space<vmem>>, vector<1x64x128xf32>,
    return
  }
  func.func @transform_0(%arg0: i32) -> (i32, i32, i32) {
    %c0_i32 = arith.constant 0 : i32
    %c0_i32_0 = arith.constant 0 : i32
    %c0_i32_1 = arith.constant 0 : i32
    return %arg0, %c0_i32, %c0_i32_0 : i32, i32, i32
  }
  func.func @transform_1(%arg0: i32) -> (i32, i32) {
    %c0_i32 = arith.constant 0 : i32
    %c0_i32_0 = arith.constant 0 : i32
    %c0_i32_1 = arith.constant 0 : i32
    return %c0_i32, %c0_i32_0 : i32, i32
  }
  func.func @transform_2(%arg0: i32) -> (i32, i32) {
    %c0_i32 = arith.constant 0 : i32
    %c0_i32_0 = arith.constant 0 : i32
    %c0_i32_1 = arith.constant 0 : i32
    return %c0_i32, %c0_i32_0 : i32, i32
  }
  func.func @transform_3(%arg0: i32) -> (i32, i32, i32) {
    %c0_i32 = arith.constant 0 : i32
    %c0_i32_0 = arith.constant 0 : i32
    %c0_i32_1 = arith.constant 0 : i32
    %c0_i32_2 = arith.constant 0 : i32
    return %c0_i32, %c0_i32_0, %c0_i32_1 : i32, i32, i32
  }
  func.func @transform_4(%arg0: i32) -> (i32, i32) {
    %c0_i32 = arith.constant 0 : i32
    %c0_i32_0 = arith.constant 0 : i32
    %c0_i32_1 = arith.constant 0 : i32
    return %c0_i32, %c0_i32_0 : i32, i32
  }
  func.func @transform_5(%arg0: i32) -> (i32, i32) {
    %c0_i32 = arith.constant 0 : i32
    %c0_i32_0 = arith.constant 0 : i32
    %c0_i32_1 = arith.constant 0 : i32
    return %c0_i32, %c0_i32_0 : i32, i32
  }
  func.func @transform_6(%arg0: i32) -> (i32, i32) {
    %c0_i32 = arith.constant 0 : i32
    %c0_i32_0 = arith.constant 0 : i32
    %c0_i32_1 = arith.constant 0 : i32
    return %c0_i32, %c0_i32_0 : i32, i32
  }
  func.func @transform_7(%arg0: i32) -> (i32, i32) {
    %c0_i32 = arith.constant 0 : i32
    %c0_i32_0 = arith.constant 0 : i32
    %c0_i32_1 = arith.constant 0 : i32
    return %c0_i32, %c0_i32_0 : i32, i32
  }
  func.func @transform_8(%arg0: i32) -> (i32, i32) {
    %c0_i32 = arith.constant 0 : i32
    %c0_i32_0 = arith.constant 0 : i32
    %c0_i32_1 = arith.constant 0 : i32
    return %c0_i32, %c0_i32_0 : i32, i32
  }
  func.func @transform_9(%arg0: i32) -> (i32, i32, i32) {
    %c0_i32 = arith.constant 0 : i32
    %c0_i32_0 = arith.constant 0 : i32
    %c0_i32_1 = arith.constant 0 : i32
    return %arg0, %c0_i32, %c0_i32_0 : i32, i32, i32
  }
}

</mosaic_0001>

<llo_original>
// kernel: tpu_custom_call.1
$region0: #{tpu_custom_call.1}
  #allocation0 [shape = 'u32[]', space=smem, size = 0x4, offset = 0x4, fixed_abs, tag = 'smem constant byte address 0x4 - core index']
  #allocation1 [shape = 'u32[144,128]{1,0:T(1,128)}', space=vmem, size = 0x12000, scoped, tag = 'internal scratch']
  #allocation2 [shape = 'f32[288,96]{1,0:T(8,128)}', space=vmem, size = 0x24000, scoped, tag = 'scratch operand']
  #allocation3 [shape = 'f32[256,32]{1,0:T(8,128)}', space=vmem, size = 0x20000, scoped, tag = 'scratch operand']
  #allocation4 [shape = 'f32[256,64]{1,0:T(8,128)}', space=vmem, size = 0x20000, scoped, tag = 'scratch operand']
  %s0 = inlined_call_operand.hbm [shape: f32[2,256,64], index: 0, kind: input, shape index: {}]
  %s1 = inlined_call_operand.hbm [shape: f32[64,32], index: 1, kind: input, shape index: {}]
  %s2 = inlined_call_operand.hbm [shape: f32[1,32], index: 2, kind: input, shape index: {}]
  %s3 = inlined_call_operand.hbm [shape: f32[3,96,32], index: 3, kind: input, shape index: {}]
  %s4 = inlined_call_operand.hbm [shape: f32[1,32], index: 4, kind: input, shape index: {}]
  %s5 = inlined_call_operand.hbm [shape: f32[32,128], index: 5, kind: input, shape index: {}]
  %s6 = inlined_call_operand.hbm [shape: f32[1,128], index: 6, kind: input, shape index: {}]
  %s7 = inlined_call_operand.hbm [shape: f32[64,128], index: 7, kind: input, shape index: {}]
  %s8 = inlined_call_operand.hbm [shape: f32[1,128], index: 8, kind: input, shape index: {}]
  %s9 = inlined_call_operand.hbm [shape: f32[2,64,128], index: 9, kind: output, shape index: {}]
  %s10 = sld [smem:[#allocation0]]
  $region105: #{tpu_custom_call.1} parent=0
    _
  %s12 = ssub.s32 1, %s10
  %s13 = scalar_select 0, %s12, %s10
  $region1: #{tpu_custom_call.1} parent=0
    #allocation5 [shape = 'u8[262144]{0}', space=vmem, size = 0x40000, scoped, tag = 'input window, operand 0']
    #allocation6 [shape = 's32[2]{0}', space=sflag, size = 0x8, scoped, tag = 'scoped memory for tpu_custom_call.1']
    #allocation7 [shape = 's32[2]{0}', space=sflag, size = 0x8, scoped, tag = 'scoped memory for tpu_custom_call.1']
    #allocation8 [shape = 'u8[32768]{0}', space=vmem, size = 0x8000, scoped, tag = 'input window, operand 1, single buffered']
    #allocation9 [shape = 's32[1]{0}', space=sflag, size = 0x4, scoped, tag = 'scoped memory for tpu_custom_call.1']
    #allocation10 [shape = 'u8[512]{0}', space=vmem, size = 0x400, scoped, tag = 'input window, operand 2, single buffered']
    #allocation11 [shape = 'u8[147456]{0}', space=vmem, size = 0x24000, scoped, tag = 'input window, operand 3, single buffered']
    #allocation12 [shape = 's32[1]{0}', space=sflag, size = 0x4, scoped, tag = 'scoped memory for tpu_custom_call.1']
    #allocation13 [shape = 'u8[512]{0}', space=vmem, size = 0x400, scoped, tag = 'input window, operand 4, single buffered']
    #allocation14 [shape = 'u8[16384]{0}', space=vmem, size = 0x4000, scoped, tag = 'input window, operand 5, single buffered']
    #allocation15 [shape = 's32[1]{0}', space=sflag, size = 0x4, scoped, tag = 'scoped memory for tpu_custom_call.1']
    #allocation16 [shape = 'u8[512]{0}', space=vmem, size = 0x400, scoped, tag = 'input window, operand 6, single buffered']
    #allocation17 [shape = 'u8[32768]{0}', space=vmem, size = 0x8000, scoped, tag = 'input window, operand 7, single buffered']
    #allocation18 [shape = 's32[1]{0}', space=sflag, size = 0x4, scoped, tag = 'scoped memory for tpu_custom_call.1']
    #allocation19 [shape = 'u8[512]{0}', space=vmem, size = 0x400, scoped, tag = 'input window, operand 8, single buffered']
    #allocation20 [shape = 'u8[65536]{0}', space=vmem, size = 0x10000, scoped, tag = 'output window, operand 0']
    %14 = vsyncpa [#allocation6], 0
    %s15 = scalar_lea.sflag [#allocation6], 1
    %16 = vsyncpa %s15, 0
    %17 = vsyncpa [#allocation9], 0
    %18 = vsyncpa [#allocation12], 0
    %19 = vsyncpa [#allocation15], 0
    %20 = vsyncpa [#allocation18], 0
    %21 = vsyncpa [#allocation7], 0
    %s22 = scalar_lea.sflag [#allocation7], 1
    %23 = vsyncpa %s22, 0
    loop: start=0, step=1, limit=4
    $region2: #{tpu_custom_call.1} parent=1 // loop_pre_header
      _
    $region3: #{tpu_custom_call.1} parent=1 // loop_header
      %s25 = sphi 0, %s29
      %p26 = scmp.ge.s32.totalorder %s25, 4
      %s35 = sphi 0, %s37
      %s38 = sphi 0, %s35
      %s39 = sphi 0, %s38
      %s55 = sphi 0, %s39
      %s59 = sphi 0, %s59
      %s61 = sphi 0, %s59
      %s62 = sphi 0, %s61
      %s76 = sphi 0, %s62
      %s80 = sphi 0, %s80
      %s82 = sphi 0, %s80
      %s83 = sphi 0, %s82
      %s97 = sphi 0, %s83
      %s101 = sphi 0, %s101
      %s103 = sphi 0, %s101
      %s104 = sphi 0, %s103
      %s118 = sphi 0, %s104
      %s122 = sphi 0, %s122
      %s124 = sphi 0, %s122
      %s125 = sphi 0, %s124
      %s139 = sphi 0, %s125
      %s143 = sphi 0, %s143
      %s145 = sphi 0, %s143
      %s146 = sphi 0, %s145
      %s160 = sphi 0, %s146
      %s164 = sphi 0, %s164
      %s166 = sphi 0, %s164
      %s167 = sphi 0, %s166
      %s181 = sphi 0, %s167
      %s185 = sphi 0, %s185
      %s187 = sphi 0, %s185
      %s188 = sphi 0, %s187
      %s202 = sphi 0, %s188
      %s206 = sphi 0, %s206
      %s208 = sphi 0, %s206
      %s209 = sphi 0, %s208
      %s223 = sphi 0, %s209
      %s229 = sphi 0, %s231
      %s232 = sphi 0, %s229
      %s233 = sphi 0, %s232
      %s249 = sphi 0, %s233
    $region4: #{tpu_custom_call.1} parent=1 // loop_header_branch
      %28 = sbr.rel (%p26) target = $region8
    $region5: #{tpu_custom_call.1} parent=1 // loop_body
      %s30 = ssub.s32 %s25, 1
      %s31 = ssub.s32 %s25, 2
      %s32 = sadd.s32 %s25, 1
      %s33 = ssub.s32 %s25, %s32
      %p34 = scmp.eq.s32.totalorder %s33, 0
      %s36 = sadd.s32 %s35, 1
      %s37 = scalar_select %p34, %s35, %s36
      %p40 = pneg %p34
      %p41 = scmp.eq.s32.totalorder %s25, 1
      %p42 = por %p40, %p41
      %p43 = scmp.ne.s32.totalorder %s35, %s38
      %p44 = scmp.eq.s32.totalorder %s25, 0
      %p45 = por %p43, %p44
      %p46 = scmp.ne.s32.totalorder %s35, %s38
      %p47 = scmp.eq.s32.totalorder %s30, 1
      %p48 = por %p46, %p47
      %p49 = scmp.ne.s32.totalorder %s38, %s39
      %p50 = scmp.eq.s32.totalorder %s30, 0
      %p51 = por %p49, %p50
      %p52 = scmp.ne.s32.totalorder %s38, %s39
      %p53 = scmp.eq.s32.totalorder %s31, 1
      %p54 = por %p52, %p53
      %p56 = scmp.ne.s32.totalorder %s39, %s55
      %p57 = scmp.eq.s32.totalorder %s31, 0
      %p58 = por %p56, %p57
      %s60 = sadd.s32 %s59, 1
      %p63 = scmp.eq.s32.totalorder %s25, 1
      %p64 = scmp.ne.s32.totalorder %s59, %s61
      %p65 = scmp.eq.s32.totalorder %s25, 0
      %p66 = por %p64, %p65
      %p67 = scmp.ne.s32.totalorder %s59, %s61
      %p68 = scmp.eq.s32.totalorder %s30, 1
      %p69 = por %p67, %p68
      %p70 = scmp.ne.s32.totalorder %s61, %s62
      %p71 = scmp.eq.s32.totalorder %s30, 0
      %p72 = por %p70, %p71
      %p73 = scmp.ne.s32.totalorder %s61, %s62
      %p74 = scmp.eq.s32.totalorder %s31, 1
      %p75 = por %p73, %p74
      %p77 = scmp.ne.s32.totalorder %s62, %s76
      %p78 = scmp.eq.s32.totalorder %s31, 0
      %p79 = por %p77, %p78
      %s81 = sadd.s32 %s80, 1
      %p84 = scmp.eq.s32.totalorder %s25, 1
      %p85 = scmp.ne.s32.totalorder %s80, %s82
      %p86 = scmp.eq.s32.totalorder %s25, 0
      %p87 = por %p85, %p86
      %p88 = scmp.ne.s32.totalorder %s80, %s82
      %p89 = scmp.eq.s32.totalorder %s30, 1
      %p90 = por %p88, %p89
      %p91 = scmp.ne.s32.totalorder %s82, %s83
      %p92 = scmp.eq.s32.totalorder %s30, 0
      %p93 = por %p91, %p92
      %p94 = scmp.ne.s32.totalorder %s82, %s83
      %p95 = scmp.eq.s32.totalorder %s31, 1
      %p96 = por %p94, %p95
      %p98 = scmp.ne.s32.totalorder %s83, %s97
      %p99 = scmp.eq.s32.totalorder %s31, 0
      %p100 = por %p98, %p99
      %s102 = sadd.s32 %s101, 1
      %p105 = scmp.eq.s32.totalorder %s25, 1
      %p106 = scmp.ne.s32.totalorder %s101, %s103
      %p107 = scmp.eq.s32.totalorder %s25, 0
      %p108 = por %p106, %p107
      %p109 = scmp.ne.s32.totalorder %s101, %s103
      %p110 = scmp.eq.s32.totalorder %s30, 1
      %p111 = por %p109, %p110
      %p112 = scmp.ne.s32.totalorder %s103, %s104
      %p113 = scmp.eq.s32.totalorder %s30, 0
      %p114 = por %p112, %p113
      %p115 = scmp.ne.s32.totalorder %s103, %s104
      %p116 = scmp.eq.s32.totalorder %s31, 1
      %p117 = por %p115, %p116
      %p119 = scmp.ne.s32.totalorder %s104, %s118
      %p120 = scmp.eq.s32.totalorder %s31, 0
      %p121 = por %p119, %p120
      %s123 = sadd.s32 %s122, 1
      %p126 = scmp.eq.s32.totalorder %s25, 1
      %p127 = scmp.ne.s32.totalorder %s122, %s124
      %p128 = scmp.eq.s32.totalorder %s25, 0
      %p129 = por %p127, %p128
      %p130 = scmp.ne.s32.totalorder %s122, %s124
      %p131 = scmp.eq.s32.totalorder %s30, 1
      %p132 = por %p130, %p131
      %p133 = scmp.ne.s32.totalorder %s124, %s125
      %p134 = scmp.eq.s32.totalorder %s30, 0
      %p135 = por %p133, %p134
      %p136 = scmp.ne.s32.totalorder %s124, %s125
      %p137 = scmp.eq.s32.totalorder %s31, 1
      %p138 = por %p136, %p137
      %p140 = scmp.ne.s32.totalorder %s125, %s139
      %p141 = scmp.eq.s32.totalorder %s31, 0
      %p142 = por %p140, %p141
      %s144 = sadd.s32 %s143, 1
      %p147 = scmp.eq.s32.totalorder %s25, 1
      %p148 = scmp.ne.s32.totalorder %s143, %s145
      %p149 = scmp.eq.s32.totalorder %s25, 0
      %p150 = por %p148, %p149
      %p151 = scmp.ne.s32.totalorder %s143, %s145
      %p152 = scmp.eq.s32.totalorder %s30, 1
      %p153 = por %p151, %p152
      %p154 = scmp.ne.s32.totalorder %s145, %s146
      %p155 = scmp.eq.s32.totalorder %s30, 0
      %p156 = por %p154, %p155
      %p157 = scmp.ne.s32.totalorder %s145, %s146
      %p158 = scmp.eq.s32.totalorder %s31, 1
      %p159 = por %p157, %p158
      %p161 = scmp.ne.s32.totalorder %s146, %s160
      %p162 = scmp.eq.s32.totalorder %s31, 0
      %p163 = por %p161, %p162
      %s165 = sadd.s32 %s164, 1
      %p168 = scmp.eq.s32.totalorder %s25, 1
      %p169 = scmp.ne.s32.totalorder %s164, %s166
      %p170 = scmp.eq.s32.totalorder %s25, 0
      %p171 = por %p169, %p170
      %p172 = scmp.ne.s32.totalorder %s164, %s166
      %p173 = scmp.eq.s32.totalorder %s30, 1
      %p174 = por %p172, %p173
      %p175 = scmp.ne.s32.totalorder %s166, %s167
      %p176 = scmp.eq.s32.totalorder %s30, 0
      %p177 = por %p175, %p176
      %p178 = scmp.ne.s32.totalorder %s166, %s167
      %p179 = scmp.eq.s32.totalorder %s31, 1
      %p180 = por %p178, %p179
      %p182 = scmp.ne.s32.totalorder %s167, %s181
      %p183 = scmp.eq.s32.totalorder %s31, 0
      %p184 = por %p182, %p183
      %s186 = sadd.s32 %s185, 1
      %p189 = scmp.eq.s32.totalorder %s25, 1
      %p190 = scmp.ne.s32.totalorder %s185, %s187
      %p191 = scmp.eq.s32.totalorder %s25, 0
      %p192 = por %p190, %p191
      %p193 = scmp.ne.s32.totalorder %s185, %s187
      %p194 = scmp.eq.s32.totalorder %s30, 1
      %p195 = por %p193, %p194
      %p196 = scmp.ne.s32.totalorder %s187, %s188
      %p197 = scmp.eq.s32.totalorder %s30, 0
      %p198 = por %p196, %p197
      %p199 = scmp.ne.s32.totalorder %s187, %s188
      %p200 = scmp.eq.s32.totalorder %s31, 1
      %p201 = por %p199, %p200
      %p203 = scmp.ne.s32.totalorder %s188, %s202
      %p204 = scmp.eq.s32.totalorder %s31, 0
      %p205 = por %p203, %p204
      %s207 = sadd.s32 %s206, 1
      %p210 = scmp.eq.s32.totalorder %s25, 1
      %p211 = scmp.ne.s32.totalorder %s206, %s208
      %p212 = scmp.eq.s32.totalorder %s25, 0
      %p213 = por %p211, %p212
      %p214 = scmp.ne.s32.totalorder %s206, %s208
      %p215 = scmp.eq.s32.totalorder %s30, 1
      %p216 = por %p214, %p215
      %p217 = scmp.ne.s32.totalorder %s208, %s209
      %p218 = scmp.eq.s32.totalorder %s30, 0
      %p219 = por %p217, %p218
      %p220 = scmp.ne.s32.totalorder %s208, %s209
      %p221 = scmp.eq.s32.totalorder %s31, 1
      %p222 = por %p220, %p221
      %p224 = scmp.ne.s32.totalorder %s209, %s223
      %p225 = scmp.eq.s32.totalorder %s31, 0
      %p226 = por %p224, %p225
      %s227 = ssub.s32 %s25, %s32
      %p228 = scmp.eq.s32.totalorder %s227, 0
      %s230 = sadd.s32 %s229, 1
      %s231 = scalar_select %p228, %s229, %s230
      %p234 = pneg %p228
      %p235 = scmp.eq.s32.totalorder %s25, 1
      %p236 = por %p234, %p235
      %p237 = scmp.ne.s32.totalorder %s229, %s232
      %p238 = scmp.eq.s32.totalorder %s25, 0
      %p239 = por %p237, %p238
      %p240 = scmp.ne.s32.totalorder %s229, %s232
      %p241 = scmp.eq.s32.totalorder %s30, 1
      %p242 = por %p240, %p241
      %p243 = scmp.ne.s32.totalorder %s232, %s233
      %p244 = scmp.eq.s32.totalorder %s30, 0
      %p245 = por %p243, %p244
      %p246 = scmp.ne.s32.totalorder %s232, %s233
      %p247 = scmp.eq.s32.totalorder %s31, 1
      %p248 = por %p246, %p247
      %p250 = scmp.ne.s32.totalorder %s233, %s249
      %p251 = scmp.eq.s32.totalorder %s31, 0
      %p252 = por %p250, %p251
      %p253 = scmp.le.s32.totalorder 1, %s25
      %p254 = scmp.lt.s32.totalorder %s25, 3
      %p255 = pnand %p253, %p254
      %p256 = pneg %p255
      // Predicated region
      $region9: #{tpu_custom_call.1} parent=5 // pred_check
        _
      $region10: #{tpu_custom_call.1} parent=5 // pred_check_branch
        %258 = sbr.rel (%p255) target = $region12
      $region11: #{tpu_custom_call.1} parent=5 // pred_region
        %s259 = ssub.s32 %s25, 1
        // Predicated region
        $region13: #{tpu_custom_call.1} parent=11 // pred_check
          %p260 = pneg %p72
        $region14: #{tpu_custom_call.1} parent=11 // pred_check_branch
          %262 = sbr.rel (%p260) target = $region16
        $region15: #{tpu_custom_call.1} parent=11 // pred_region
          %s264 = ssub.s32 1024, 1024
          %265 = vsyncadd [#allocation9], %s264
          %s266 = sshll.u32 [#allocation8], 4
          %s267 = int_to_ptr.vmem [resolvable:$true] %s266
          %272 = dma.hbm_to_vmem [thread:$0]  %s1, 1024, %s267, [#allocation9], 128, 128, 8
        $region16: #{tpu_custom_call.1} parent=11 // pred_fallthru
          _
        // Predicated region
        $region17: #{tpu_custom_call.1} parent=11 // pred_check
          %p273 = pneg %p93
        $region18: #{tpu_custom_call.1} parent=11 // pred_check_branch
          %275 = sbr.rel (%p273) target = $region20
        $region19: #{tpu_custom_call.1} parent=11 // pred_region
          %s277 = ssub.s32 16, 16
          %278 = vsyncadd [#allocation9], %s277
          %s280 = sshll.u32 [#allocation10], 4
          %s281 = int_to_ptr.vmem [resolvable:$true] %s280
          %283 = dma.hbm_to_vmem [thread:$0]  %s2, 16, %s281, [#allocation9]
        $region20: #{tpu_custom_call.1} parent=11 // pred_fallthru
          _
        // Predicated region
        $region21: #{tpu_custom_call.1} parent=11 // pred_check
          %p284 = pneg %p114
        $region22: #{tpu_custom_call.1} parent=11 // pred_check_branch
          %286 = sbr.rel (%p284) target = $region24
        $region23: #{tpu_custom_call.1} parent=11 // pred_region
          %s288 = ssub.s32 4608, 4608
          %289 = vsyncadd [#allocation12], %s288
          %s290 = sshll.u32 [#allocation11], 4
          %s291 = int_to_ptr.vmem [resolvable:$true] %s290
          %296 = dma.hbm_to_vmem [thread:$0]  %s3, 4608, %s291, [#allocation12], 128, 128, 8
        $region24: #{tpu_custom_call.1} parent=11 // pred_fallthru
          _
        // Predicated region
        $region25: #{tpu_custom_call.1} parent=11 // pred_check
          %p297 = pneg %p135
        $region26: #{tpu_custom_call.1} parent=11 // pred_check_branch
          %299 = sbr.rel (%p297) target = $region28
        $region27: #{tpu_custom_call.1} parent=11 // pred_region
          %s301 = ssub.s32 16, 16
          %302 = vsyncadd [#allocation12], %s301
          %s304 = sshll.u32 [#allocation13], 4
          %s305 = int_to_ptr.vmem [resolvable:$true] %s304
          %307 = dma.hbm_to_vmem [thread:$0]  %s4, 16, %s305, [#allocation12]
        $region28: #{tpu_custom_call.1} parent=11 // pred_fallthru
          _
        // Predicated region
        $region29: #{tpu_custom_call.1} parent=11 // pred_check
          %p308 = pneg %p156
        $region30: #{tpu_custom_call.1} parent=11 // pred_check_branch
          %310 = sbr.rel (%p308) target = $region32
        $region31: #{tpu_custom_call.1} parent=11 // pred_region
          %s312 = ssub.s32 512, 512
          %313 = vsyncadd [#allocation15], %s312
          %s314 = sshll.u32 [#allocation14], 4
          %s315 = int_to_ptr.vmem [resolvable:$true] %s314
          %320 = dma.hbm_to_vmem [thread:$0]  %s5, 512, %s315, [#allocation15], 128, 128, 8
        $region32: #{tpu_custom_call.1} parent=11 // pred_fallthru
          _
        // Predicated region
        $region33: #{tpu_custom_call.1} parent=11 // pred_check
          %p321 = pneg %p177
        $region34: #{tpu_custom_call.1} parent=11 // pred_check_branch
          %323 = sbr.rel (%p321) target = $region36
        $region35: #{tpu_custom_call.1} parent=11 // pred_region
          %s325 = ssub.s32 16, 16
          %326 = vsyncadd [#allocation15], %s325
          %s328 = sshll.u32 [#allocation16], 4
          %s329 = int_to_ptr.vmem [resolvable:$true] %s328
          %331 = dma.hbm_to_vmem [thread:$0]  %s6, 16, %s329, [#allocation15]
        $region36: #{tpu_custom_call.1} parent=11 // pred_fallthru
          _
        // Predicated region
        $region37: #{tpu_custom_call.1} parent=11 // pred_check
          %p332 = pneg %p198
        $region38: #{tpu_custom_call.1} parent=11 // pred_check_branch
          %334 = sbr.rel (%p332) target = $region40
        $region39: #{tpu_custom_call.1} parent=11 // pred_region
          %s336 = ssub.s32 1024, 1024
          %337 = vsyncadd [#allocation18], %s336
          %s338 = sshll.u32 [#allocation17], 4
          %s339 = int_to_ptr.vmem [resolvable:$true] %s338
          %344 = dma.hbm_to_vmem [thread:$0]  %s7, 1024, %s339, [#allocation18], 128, 128, 8
        $region40: #{tpu_custom_call.1} parent=11 // pred_fallthru
          _
        // Predicated region
        $region41: #{tpu_custom_call.1} parent=11 // pred_check
          %p345 = pneg %p219
        $region42: #{tpu_custom_call.1} parent=11 // pred_check_branch
          %347 = sbr.rel (%p345) target = $region44
        $region43: #{tpu_custom_call.1} parent=11 // pred_region
          %s349 = ssub.s32 16, 16
          %350 = vsyncadd [#allocation18], %s349
          %s352 = sshll.u32 [#allocation19], 4
          %s353 = int_to_ptr.vmem [resolvable:$true] %s352
          %355 = dma.hbm_to_vmem [thread:$0]  %s8, 16, %s353, [#allocation18]
        $region44: #{tpu_custom_call.1} parent=11 // pred_fallthru
          _
      $region12: #{tpu_custom_call.1} parent=5 // pred_fallthru
        _
      %p356 = scmp.lt.s32.totalorder %s25, 2
      // Predicated region
      $region45: #{tpu_custom_call.1} parent=5 // pred_check
        %p357 = pneg %p356
      $region46: #{tpu_custom_call.1} parent=5 // pred_check_branch
        %359 = sbr.rel (%p357) target = $region48
      $region47: #{tpu_custom_call.1} parent=5 // pred_region
        // Predicated region
        $region49: #{tpu_custom_call.1} parent=47 // pred_check
          %p360 = pneg %p45
        $region50: #{tpu_custom_call.1} parent=47 // pred_check_branch
          %362 = sbr.rel (%p360) target = $region52
        $region51: #{tpu_custom_call.1} parent=47 // pred_region
          %s363 = sand.u32 %s35, 1
          %s364 = scalar_lea.sflag [#allocation6], %s363
          %s365 = sand.u32 %s35, 1
          %s366 = smul.addr %s365, 256
          %s367 = scalar_lea.vmem [#allocation5], %s366
          %s369 = ssub.s32 4096, 4096
          %370 = vsyncadd %s364, %s369
          %s371 = smul.addr %s25, 32
          %s372 = smul.addr %s371, 128
          %s373 = scalar_lea.hbm %s0, %s372
          %s374 = sshll.u32 %s367, 4
          %s375 = int_to_ptr.vmem [resolvable:$true] %s374
          %380 = dma.hbm_to_vmem [thread:$0]  %s373, 4096, %s375, %s364, 128, 128, 8
        $region52: #{tpu_custom_call.1} parent=47 // pred_fallthru
          _
      $region48: #{tpu_custom_call.1} parent=5 // pred_fallthru
        _
      %p381 = scmp.le.s32.totalorder 1, %s25
      %p382 = scmp.lt.s32.totalorder %s25, 3
      %p383 = pnand %p381, %p382
      %p384 = pneg %p383
      // Predicated region
      $region53: #{tpu_custom_call.1} parent=5 // pred_check
        _
      $region54: #{tpu_custom_call.1} parent=5 // pred_check_branch
        %386 = sbr.rel (%p383) target = $region56
      $region55: #{tpu_custom_call.1} parent=5 // pred_region
        %s387 = ssub.s32 %s25, 1
        %s388 = sand.u32 %s38, 1
        %s389 = scalar_lea.sflag [#allocation6], %s388
        %s390 = sand.u32 %s38, 1
        %s391 = smul.addr %s390, 256
        %s392 = scalar_lea.vmem [#allocation5], %s391
        // Predicated region
        $region57: #{tpu_custom_call.1} parent=55 // pred_check
          %p393 = pneg %p51
        $region58: #{tpu_custom_call.1} parent=55 // pred_check_branch
          %395 = sbr.rel (%p393) target = $region60
        $region59: #{tpu_custom_call.1} parent=55 // pred_region
          %396 = dma.done %s389, 4096
        $region60: #{tpu_custom_call.1} parent=55 // pred_fallthru
          _
        // Predicated region
        $region61: #{tpu_custom_call.1} parent=55 // pred_check
          %p397 = pneg %p72
        $region62: #{tpu_custom_call.1} parent=55 // pred_check_branch
          %399 = sbr.rel (%p397) target = $region64
        $region63: #{tpu_custom_call.1} parent=55 // pred_region
          %400 = dma.done [#allocation9], 1024
        $region64: #{tpu_custom_call.1} parent=55 // pred_fallthru
          _
        // Predicated region
        $region65: #{tpu_custom_call.1} parent=55 // pred_check
          %p401 = pneg %p93
        $region66: #{tpu_custom_call.1} parent=55 // pred_check_branch
          %403 = sbr.rel (%p401) target = $region68
        $region67: #{tpu_custom_call.1} parent=55 // pred_region
          %404 = dma.done [#allocation9], 16
        $region68: #{tpu_custom_call.1} parent=55 // pred_fallthru
          _
        // Predicated region
        $region69: #{tpu_custom_call.1} parent=55 // pred_check
          %p405 = pneg %p114
        $region70: #{tpu_custom_call.1} parent=55 // pred_check_branch
          %407 = sbr.rel (%p405) target = $region72
        $region71: #{tpu_custom_call.1} parent=55 // pred_region
          %408 = dma.done [#allocation12], 4608
        $region72: #{tpu_custom_call.1} parent=55 // pred_fallthru
          _
        // Predicated region
        $region73: #{tpu_custom_call.1} parent=55 // pred_check
          %p409 = pneg %p135
        $region74: #{tpu_custom_call.1} parent=55 // pred_check_branch
          %411 = sbr.rel (%p409) target = $region76
        $region75: #{tpu_custom_call.1} parent=55 // pred_region
          %412 = dma.done [#allocation12], 16
        $region76: #{tpu_custom_call.1} parent=55 // pred_fallthru
          _
        // Predicated region
        $region77: #{tpu_custom_call.1} parent=55 // pred_check
          %p413 = pneg %p156
        $region78: #{tpu_custom_call.1} parent=55 // pred_check_branch
          %415 = sbr.rel (%p413) target = $region80
        $region79: #{tpu_custom_call.1} parent=55 // pred_region
          %416 = dma.done [#allocation15], 512
        $region80: #{tpu_custom_call.1} parent=55 // pred_fallthru
          _
        // Predicated region
        $region81: #{tpu_custom_call.1} parent=55 // pred_check
          %p417 = pneg %p177
        $region82: #{tpu_custom_call.1} parent=55 // pred_check_branch
          %419 = sbr.rel (%p417) target = $region84
        $region83: #{tpu_custom_call.1} parent=55 // pred_region
          %420 = dma.done [#allocation15], 16
        $region84: #{tpu_custom_call.1} parent=55 // pred_fallthru
          _
        // Predicated region
        $region85: #{tpu_custom_call.1} parent=55 // pred_check
          %p421 = pneg %p198
        $region86: #{tpu_custom_call.1} parent=55 // pred_check_branch
          %423 = sbr.rel (%p421) target = $region88
        $region87: #{tpu_custom_call.1} parent=55 // pred_region
          %424 = dma.done [#allocation18], 1024
        $region88: #{tpu_custom_call.1} parent=55 // pred_fallthru
          _
        // Predicated region
        $region89: #{tpu_custom_call.1} parent=55 // pred_check
          %p425 = pneg %p219
        $region90: #{tpu_custom_call.1} parent=55 // pred_check_branch
          %427 = sbr.rel (%p425) target = $region92
        $region91: #{tpu_custom_call.1} parent=55 // pred_region
          %428 = dma.done [#allocation18], 16
        $region92: #{tpu_custom_call.1} parent=55 // pred_fallthru
          _
        %s429 = sand.u32 %s38, 1
        %s430 = scalar_lea.sflag [#allocation6], %s429
        %s431 = sand.u32 %s38, 1
        %s432 = smul.addr %s431, 256
        %s433 = scalar_lea.vmem [#allocation5], %s432
        %p434 = pneg %p51
        %p435 = pneg %p48
        %p436 = pneg %p72
        %p437 = pneg %p69
        %p438 = pneg %p93
        %p439 = pneg %p90
        %p440 = pneg %p114
        %p441 = pneg %p111
        %p442 = pneg %p135
        %p443 = pneg %p132
        %p444 = pneg %p156
        %p445 = pneg %p153
        %p446 = pneg %p177
        %p447 = pneg %p174
        %p448 = pneg %p198
        %p449 = pneg %p195
        %p450 = pneg %p219
        %p451 = pneg %p216
        %p452 = pneg %p245
        %p453 = pneg %p242
        %s454 = sand.u32 %s232, 1
        %s455 = scalar_lea.sflag [#allocation7], %s454
        %s456 = sand.u32 %s232, 1
        %s457 = smul.addr %s456, 64
        %s458 = scalar_lea.vmem [#allocation20], %s457
        %v459 = vld [vmem:[%s392] sm:$0xff]
        %v460 = vld [vmem:[%s392 + $0x8] sm:$0xff]
        %v461 = vld [vmem:[%s392 + $0x10] sm:$0xff]
        %v462 = vld [vmem:[%s392 + $0x18] sm:$0xff]
        %v463 = vld [vmem:[%s392 + $0x20] sm:$0xff]
        %v464 = vld [vmem:[%s392 + $0x28] sm:$0xff]
        %v465 = vld [vmem:[%s392 + $0x30] sm:$0xff]
        %v466 = vld [vmem:[%s392 + $0x38] sm:$0xff]
        %v467 = vld [vmem:[%s392 + $0x40] sm:$0xff]
        %v468 = vld [vmem:[%s392 + $0x48] sm:$0xff]
        %v469 = vld [vmem:[%s392 + $0x50] sm:$0xff]
        %v470 = vld [vmem:[%s392 + $0x58] sm:$0xff]
        %v471 = vld [vmem:[%s392 + $0x60] sm:$0xff]
        %v472 = vld [vmem:[%s392 + $0x68] sm:$0xff]
        %v473 = vld [vmem:[%s392 + $0x70] sm:$0xff]
        %v474 = vld [vmem:[%s392 + $0x78] sm:$0xff]
        %v475 = vld [vmem:[%s392 + $0x80] sm:$0xff]
        %v476 = vld [vmem:[%s392 + $0x88] sm:$0xff]
        %v477 = vld [vmem:[%s392 + $0x90] sm:$0xff]
        %v478 = vld [vmem:[%s392 + $0x98] sm:$0xff]
        %v479 = vld [vmem:[%s392 + $0xa0] sm:$0xff]
        %v480 = vld [vmem:[%s392 + $0xa8] sm:$0xff]
        %v481 = vld [vmem:[%s392 + $0xb0] sm:$0xff]
        %v482 = vld [vmem:[%s392 + $0xb8] sm:$0xff]
        %v483 = vld [vmem:[%s392 + $0xc0] sm:$0xff]
        %v484 = vld [vmem:[%s392 + $0xc8] sm:$0xff]
        %v485 = vld [vmem:[%s392 + $0xd0] sm:$0xff]
        %v486 = vld [vmem:[%s392 + $0xd8] sm:$0xff]
        %v487 = vld [vmem:[%s392 + $0xe0] sm:$0xff]
        %v488 = vld [vmem:[%s392 + $0xe8] sm:$0xff]
        %v489 = vld [vmem:[%s392 + $0xf0] sm:$0xff]
        %v490 = vld [vmem:[%s392 + $0xf8] sm:$0xff]
        %v491 = vld [vmem:[#allocation8] sm:$0xff]
        %v492 = vld [vmem:[#allocation8 + $0x8] sm:$0xff]
        %v493 = vld [vmem:[#allocation8 + $0x10] sm:$0xff]
        %v494 = vld [vmem:[#allocation8 + $0x18] sm:$0xff]
        %v495 = vld [vmem:[#allocation8 + $0x20] sm:$0xff]
        %v496 = vld [vmem:[#allocation8 + $0x28] sm:$0xff]
        %v497 = vld [vmem:[#allocation8 + $0x30] sm:$0xff]
        %v498 = vld [vmem:[#allocation8 + $0x38] sm:$0xff]
        %v499 = vld [vmem:[#allocation10] sm:$0x1]
        %v501 = vlaneseq
        %v502 = vshrl.u32 %v501, 7
        %v503 = vsub.s32 0, %v502
        %v504 = vrot.slane %v499, %v503
        %vm506 = vcmask 523264
        %v508 = vsel %vm506, %v459, 0
        %v511 = vsel %vm506, %v460, 0
        %v514 = vsel %vm506, %v461, 0
        %v517 = vsel %vm506, %v462, 0
        %v520 = vsel %vm506, %v463, 0
        %v523 = vsel %vm506, %v464, 0
        %v526 = vsel %vm506, %v465, 0
        %v529 = vsel %vm506, %v466, 0
        %v532 = vsel %vm506, %v467, 0
        %v535 = vsel %vm506, %v468, 0
        %v538 = vsel %vm506, %v469, 0
        %v541 = vsel %vm506, %v470, 0
        %v544 = vsel %vm506, %v471, 0
        %v547 = vsel %vm506, %v472, 0
        %v550 = vsel %vm506, %v473, 0
        %v553 = vsel %vm506, %v474, 0
        %v556 = vsel %vm506, %v475, 0
        %v559 = vsel %vm506, %v476, 0
        %v562 = vsel %vm506, %v477, 0
        %v565 = vsel %vm506, %v478, 0
        %v568 = vsel %vm506, %v479, 0
        %v571 = vsel %vm506, %v480, 0
        %v574 = vsel %vm506, %v481, 0
        %v577 = vsel %vm506, %v482, 0
        %v580 = vsel %vm506, %v483, 0
        %v583 = vsel %vm506, %v484, 0
        %v586 = vsel %vm506, %v485, 0
        %v589 = vsel %vm506, %v486, 0
        %v592 = vsel %vm506, %v487, 0
        %v595 = vsel %vm506, %v488, 0
        %v598 = vsel %vm506, %v489, 0
        %v601 = vsel %vm506, %v490, 0
        %603 = vmatprep.subr.mxu0 0.0
        %604 = vmatpush1.msra.mxu0 %v491
        %605 = vmatprep.subr.mxu0 0.0
        %606 = vmatpush1.msra.mxu0 %v492
        %607 = vmatprep.subr.mxu0 0.0
        %608 = vmatpush1.msra.mxu0 %v493
        %609 = vmatprep.subr.mxu0 0.0
        %610 = vmatpush1.msra.mxu0 %v494
        %611 = vmatprep.subr.mxu0 0.0
        %612 = vmatpush1.msra.mxu0 %v495
        %613 = vmatprep.subr.mxu0 0.0
        %614 = vmatpush1.msra.mxu0 %v496
        %615 = vmatprep.subr.mxu0 0.0
        %616 = vmatpush1.msra.mxu0 %v497
        %617 = vmatprep.subr.mxu0 0.0
        %618 = vmatpush1.msra.mxu0 %v498
        %619 = vmatprep.subr.mxu0 0.0
        %620 = vmatpush1.msra.mxu0 0.0
        %621 = vmatprep.subr.mxu0 0.0
        %622 = vmatpush1.msra.mxu0 0.0
        %623 = vmatprep.subr.mxu0 0.0
        %624 = vmatpush1.msra.mxu0 0.0
        %625 = vmatprep.subr.mxu0 0.0
        %626 = vmatpush1.msra.mxu0 0.0
        %627 = vmatprep.subr.mxu0 0.0
        %628 = vmatpush1.msra.mxu0 0.0
        %629 = vmatprep.subr.mxu0 0.0
        %630 = vmatpush1.msra.mxu0 0.0
        %631 = vmatprep.subr.mxu0 0.0
        %632 = vmatpush1.msra.mxu0 0.0
        %633 = vmatprep.subr.mxu0 0.0
        %634 = vmatpush1.msra.mxu0 0.0
        %635 = vmatprep.subr.mxu0 0.0
        %636 = vmatpush1.msra.mxu0 0.0
        %637 = vmatprep.subr.mxu0 0.0
        %638 = vmatpush1.msra.mxu0 0.0
        %639 = vmatprep.subr.mxu0 0.0
        %640 = vmatpush1.msra.mxu0 0.0
        %641 = vmatprep.subr.mxu0 0.0
        %642 = vmatpush1.msra.mxu0 0.0
        %643 = vmatprep.subr.mxu0 0.0
        %644 = vmatpush1.msra.mxu0 0.0
        %645 = vmatprep.subr.mxu0 0.0
        %646 = vmatpush1.msra.mxu0 0.0
        %647 = vmatprep.subr.mxu0 0.0
        %648 = vmatpush1.msra.mxu0 0.0
        %649 = vmatprep.subr.mxu0 0.0
        %650 = vmatpush1.msra.mxu0 0.0
        %651 = vmatprep.subr.mxu0 0.0
        %652 = vmatpush1.msra.mxu0 0.0
        %653 = vmatprep.subr.mxu0 0.0
        %654 = vmatpush1.msra.mxu0 0.0
        %655 = vmatprep.subr.mxu0 0.0
        %656 = vmatpush1.msra.mxu0 0.0
        %657 = vmatprep.subr.mxu0 0.0
        %658 = vmatpush1.msra.mxu0 0.0
        %659 = vmatprep.subr.mxu0 0.0
        %660 = vmatpush1.msra.mxu0 0.0
        %661 = vmatprep.subr.mxu0 0.0
        %662 = vmatpush1.msra.mxu0 0.0
        %663 = vmatprep.subr.mxu0 0.0
        %664 = vmatpush1.msra.mxu0 0.0
        %665 = vmatprep.subr.mxu0 0.0
        %666 = vmatpush1.msra.mxu0 0.0
        %667 = vmatprep.mubr.f32.mxu0 0.0
        %668 = vmatmul.mubr.f32.gmra.mrb[0].mxu0 %v508
        %v669 = vpop.f32.mrb[0].mxu0
        %v670 = vadd.f32 %v504, %v669
        %v671 = vpop.f32.mrb[0].mxu0
        %672 = vmatprep.mubr.f32.mxu0 0.0
        %673 = vmatmul.mubr.f32.gmra.mrb[0].mxu0 %v511
        %v674 = vpop.f32.mrb[0].mxu0
        %v675 = vadd.f32 %v504, %v674
        %v676 = vpop.f32.mrb[0].mxu0
        %677 = vmatprep.mubr.f32.mxu0 0.0
        %678 = vmatmul.mubr.f32.gmra.mrb[0].mxu0 %v514
        %v679 = vpop.f32.mrb[0].mxu0
        %v680 = vadd.f32 %v504, %v679
        %v681 = vpop.f32.mrb[0].mxu0
        %682 = vmatprep.mubr.f32.mxu0 0.0
        %683 = vmatmul.mubr.f32.gmra.mrb[0].mxu0 %v517
        %v684 = vpop.f32.mrb[0].mxu0
        %v685 = vadd.f32 %v504, %v684
        %v686 = vpop.f32.mrb[0].mxu0
        %687 = vmatprep.mubr.f32.mxu0 0.0
        %688 = vmatmul.mubr.f32.gmra.mrb[0].mxu0 %v520
        %v689 = vpop.f32.mrb[0].mxu0
        %v690 = vadd.f32 %v504, %v689
        %v691 = vpop.f32.mrb[0].mxu0
        %692 = vmatprep.mubr.f32.mxu0 0.0
        %693 = vmatmul.mubr.f32.gmra.mrb[0].mxu0 %v523
        %v694 = vpop.f32.mrb[0].mxu0
        %v695 = vadd.f32 %v504, %v694
        %v696 = vpop.f32.mrb[0].mxu0
        %697 = vmatprep.mubr.f32.mxu0 0.0
        %698 = vmatmul.mubr.f32.gmra.mrb[0].mxu0 %v526
        %v699 = vpop.f32.mrb[0].mxu0
        %v700 = vadd.f32 %v504, %v699
        %v701 = vpop.f32.mrb[0].mxu0
        %702 = vmatprep.mubr.f32.mxu0 0.0
        %703 = vmatmul.mubr.f32.gmra.mrb[0].mxu0 %v529
        %v704 = vpop.f32.mrb[0].mxu0
        %v705 = vadd.f32 %v504, %v704
        %v706 = vpop.f32.mrb[0].mxu0
        %707 = vmatprep.mubr.f32.mxu0 0.0
        %708 = vmatmul.mubr.f32.gmra.mrb[0].mxu0 %v532
        %v709 = vpop.f32.mrb[0].mxu0
        %v710 = vadd.f32 %v504, %v709
        %v711 = vpop.f32.mrb[0].mxu0
        %712 = vmatprep.mubr.f32.mxu0 0.0
        %713 = vmatmul.mubr.f32.gmra.mrb[0].mxu0 %v535
        %v714 = vpop.f32.mrb[0].mxu0
        %v715 = vadd.f32 %v504, %v714
        %v716 = vpop.f32.mrb[0].mxu0
        %717 = vmatprep.mubr.f32.mxu0 0.0
        %718 = vmatmul.mubr.f32.gmra.mrb[0].mxu0 %v538
        %v719 = vpop.f32.mrb[0].mxu0
        %v720 = vadd.f32 %v504, %v719
        %v721 = vpop.f32.mrb[0].mxu0
        %722 = vmatprep.mubr.f32.mxu0 0.0
        %723 = vmatmul.mubr.f32.gmra.mrb[0].mxu0 %v541
        %v724 = vpop.f32.mrb[0].mxu0
        %v725 = vadd.f32 %v504, %v724
        %v726 = vpop.f32.mrb[0].mxu0
        %727 = vmatprep.mubr.f32.mxu0 0.0
        %728 = vmatmul.mubr.f32.gmra.mrb[0].mxu0 %v544
        %v729 = vpop.f32.mrb[0].mxu0
        %v730 = vadd.f32 %v504, %v729
        %v731 = vpop.f32.mrb[0].mxu0
        %732 = vmatprep.mubr.f32.mxu0 0.0
        %733 = vmatmul.mubr.f32.gmra.mrb[0].mxu0 %v547
        %v734 = vpop.f32.mrb[0].mxu0
        %v735 = vadd.f32 %v504, %v734
        %v736 = vpop.f32.mrb[0].mxu0
        %737 = vmatprep.mubr.f32.mxu0 0.0
        %738 = vmatmul.mubr.f32.gmra.mrb[0].mxu0 %v550
        %v739 = vpop.f32.mrb[0].mxu0
        %v740 = vadd.f32 %v504, %v739
        %v741 = vpop.f32.mrb[0].mxu0
        %742 = vmatprep.mubr.f32.mxu0 0.0
        %743 = vmatmul.mubr.f32.gmra.mrb[0].mxu0 %v553
        %v744 = vpop.f32.mrb[0].mxu0
        %v745 = vadd.f32 %v504, %v744
        %v746 = vpop.f32.mrb[0].mxu0
        %747 = vmatprep.mubr.f32.mxu0 0.0
        %748 = vmatmul.mubr.f32.gmra.mrb[0].mxu0 %v556
        %v749 = vpop.f32.mrb[0].mxu0
        %v750 = vadd.f32 %v504, %v749
        %v751 = vpop.f32.mrb[0].mxu0
        %752 = vmatprep.mubr.f32.mxu0 0.0
        %753 = vmatmul.mubr.f32.gmra.mrb[0].mxu0 %v559
        %v754 = vpop.f32.mrb[0].mxu0
        %v755 = vadd.f32 %v504, %v754
        %v756 = vpop.f32.mrb[0].mxu0
        %757 = vmatprep.mubr.f32.mxu0 0.0
        %758 = vmatmul.mubr.f32.gmra.mrb[0].mxu0 %v562
        %v759 = vpop.f32.mrb[0].mxu0
        %v760 = vadd.f32 %v504, %v759
        %v761 = vpop.f32.mrb[0].mxu0
        %762 = vmatprep.mubr.f32.mxu0 0.0
        %763 = vmatmul.mubr.f32.gmra.mrb[0].mxu0 %v565
        %v764 = vpop.f32.mrb[0].mxu0
        %v765 = vadd.f32 %v504, %v764
        %v766 = vpop.f32.mrb[0].mxu0
        %767 = vmatprep.mubr.f32.mxu0 0.0
        %768 = vmatmul.mubr.f32.gmra.mrb[0].mxu0 %v568
        %v769 = vpop.f32.mrb[0].mxu0
        %v770 = vadd.f32 %v504, %v769
        %v771 = vpop.f32.mrb[0].mxu0
        %772 = vmatprep.mubr.f32.mxu0 0.0
        %773 = vmatmul.mubr.f32.gmra.mrb[0].mxu0 %v571
        %v774 = vpop.f32.mrb[0].mxu0
        %v775 = vadd.f32 %v504, %v774
        %v776 = vpop.f32.mrb[0].mxu0
        %777 = vmatprep.mubr.f32.mxu0 0.0
        %778 = vmatmul.mubr.f32.gmra.mrb[0].mxu0 %v574
        %v779 = vpop.f32.mrb[0].mxu0
        %v780 = vadd.f32 %v504, %v779
        %v781 = vpop.f32.mrb[0].mxu0
        %782 = vmatprep.mubr.f32.mxu0 0.0
        %783 = vmatmul.mubr.f32.gmra.mrb[0].mxu0 %v577
        %v784 = vpop.f32.mrb[0].mxu0
        %v785 = vadd.f32 %v504, %v784
        %v786 = vpop.f32.mrb[0].mxu0
        %787 = vmatprep.mubr.f32.mxu0 0.0
        %788 = vmatmul.mubr.f32.gmra.mrb[0].mxu0 %v580
        %v789 = vpop.f32.mrb[0].mxu0
        %v790 = vadd.f32 %v504, %v789
        %v791 = vpop.f32.mrb[0].mxu0
        %792 = vmatprep.mubr.f32.mxu0 0.0
        %793 = vmatmul.mubr.f32.gmra.mrb[0].mxu0 %v583
        %v794 = vpop.f32.mrb[0].mxu0
        %v795 = vadd.f32 %v504, %v794
        %v796 = vpop.f32.mrb[0].mxu0
        %797 = vmatprep.mubr.f32.mxu0 0.0
        %798 = vmatmul.mubr.f32.gmra.mrb[0].mxu0 %v586
        %v799 = vpop.f32.mrb[0].mxu0
        %v800 = vadd.f32 %v504, %v799
        %v801 = vpop.f32.mrb[0].mxu0
        %802 = vmatprep.mubr.f32.mxu0 0.0
        %803 = vmatmul.mubr.f32.gmra.mrb[0].mxu0 %v589
        %v804 = vpop.f32.mrb[0].mxu0
        %v805 = vadd.f32 %v504, %v804
        %v806 = vpop.f32.mrb[0].mxu0
        %807 = vmatprep.mubr.f32.mxu0 0.0
        %808 = vmatmul.mubr.f32.gmra.mrb[0].mxu0 %v592
        %v809 = vpop.f32.mrb[0].mxu0
        %v810 = vadd.f32 %v504, %v809
        %v811 = vpop.f32.mrb[0].mxu0
        %812 = vmatprep.mubr.f32.mxu0 0.0
        %813 = vmatmul.mubr.f32.gmra.mrb[0].mxu0 %v595
        %v814 = vpop.f32.mrb[0].mxu0
        %v815 = vadd.f32 %v504, %v814
        %v816 = vpop.f32.mrb[0].mxu0
        %817 = vmatprep.mubr.f32.mxu0 0.0
        %818 = vmatmul.mubr.f32.gmra.mrb[0].mxu0 %v598
        %v819 = vpop.f32.mrb[0].mxu0
        %v820 = vadd.f32 %v504, %v819
        %v821 = vpop.f32.mrb[0].mxu0
        %822 = vmatprep.mubr.f32.mxu0 0.0
        %823 = vmatmul.mubr.f32.gmra.mrb[0].mxu0 %v601
        %v824 = vpop.f32.mrb[0].mxu0
        %v825 = vadd.f32 %v504, %v824
        %v826 = vpop.f32.mrb[0].mxu0
        %827 = vdwg.mxu0
        %v828 = vmax.f32 %v670, 0.0
        %v829 = vmax.f32 %v675, 0.0
        %v830 = vmax.f32 %v680, 0.0
        %v831 = vmax.f32 %v685, 0.0
        %v832 = vmax.f32 %v690, 0.0
        %v833 = vmax.f32 %v695, 0.0
        %v834 = vmax.f32 %v700, 0.0
        %v835 = vmax.f32 %v705, 0.0
        %v836 = vmax.f32 %v710, 0.0
        %v837 = vmax.f32 %v715, 0.0
        %v838 = vmax.f32 %v720, 0.0
        %v839 = vmax.f32 %v725, 0.0
        %v840 = vmax.f32 %v730, 0.0
        %v841 = vmax.f32 %v735, 0.0
        %v842 = vmax.f32 %v740, 0.0
        %v843 = vmax.f32 %v745, 0.0
        %v844 = vmax.f32 %v750, 0.0
        %v845 = vmax.f32 %v755, 0.0
        %v846 = vmax.f32 %v760, 0.0
        %v847 = vmax.f32 %v765, 0.0
        %v848 = vmax.f32 %v770, 0.0
        %v849 = vmax.f32 %v775, 0.0
        %v850 = vmax.f32 %v780, 0.0
        %v851 = vmax.f32 %v785, 0.0
        %v852 = vmax.f32 %v790, 0.0
        %v853 = vmax.f32 %v795, 0.0
        %v854 = vmax.f32 %v800, 0.0
        %v855 = vmax.f32 %v805, 0.0
        %v856 = vmax.f32 %v810, 0.0
        %v857 = vmax.f32 %v815, 0.0
        %v858 = vmax.f32 %v820, 0.0
        %v859 = vmax.f32 %v825, 0.0
        %v860 = vrot.slane %v828, 7
        %v861 = vrot.slane %v829, 7
        %v862 = vrot.slane %v830, 7
        %v863 = vrot.slane %v831, 7
        %v864 = vrot.slane %v832, 7
        %v865 = vrot.slane %v833, 7
        %v866 = vrot.slane %v834, 7
        %v867 = vrot.slane %v835, 7
        %v868 = vrot.slane %v836, 7
        %v869 = vrot.slane %v837, 7
        %v870 = vrot.slane %v838, 7
        %v871 = vrot.slane %v839, 7
        %v872 = vrot.slane %v840, 7
        %v873 = vrot.slane %v841, 7
        %v874 = vrot.slane %v842, 7
        %v875 = vrot.slane %v843, 7
        %v876 = vrot.slane %v844, 7
        %v877 = vrot.slane %v845, 7
        %v878 = vrot.slane %v846, 7
        %v879 = vrot.slane %v847, 7
        %v880 = vrot.slane %v848, 7
        %v881 = vrot.slane %v849, 7
        %v882 = vrot.slane %v850, 7
        %v883 = vrot.slane %v851, 7
        %v884 = vrot.slane %v852, 7
        %v885 = vrot.slane %v853, 7
        %v886 = vrot.slane %v854, 7
        %v887 = vrot.slane %v855, 7
        %v888 = vrot.slane %v856, 7
        %v889 = vrot.slane %v857, 7
        %v890 = vrot.slane %v858, 7
        %v891 = vrot.slane %v859, 7
        %v892 = vlaneseq
        %v893 = vshrl.u32 %v892, 7
        %vm894 = vcmp.lt.s32.totalorder %v893, 1
        %v895 = vsel %vm894, %v890, %v891
        %v896 = vsel %vm894, %v889, %v890
        %v897 = vsel %vm894, %v888, %v889
        %v898 = vsel %vm894, %v887, %v888
        %v899 = vsel %vm894, %v886, %v887
        %v900 = vsel %vm894, %v885, %v886
        %v901 = vsel %vm894, %v884, %v885
        %v902 = vsel %vm894, %v883, %v884
        %v903 = vsel %vm894, %v882, %v883
        %v904 = vsel %vm894, %v881, %v882
        %v905 = vsel %vm894, %v880, %v881
        %v906 = vsel %vm894, %v879, %v880
        %v907 = vsel %vm894, %v878, %v879
        %v908 = vsel %vm894, %v877, %v878
        %v909 = vsel %vm894, %v876, %v877
        %v910 = vsel %vm894, %v875, %v876
        %v911 = vsel %vm894, %v874, %v875
        %v912 = vsel %vm894, %v873, %v874
        %v913 = vsel %vm894, %v872, %v873
        %v914 = vsel %vm894, %v871, %v872
        %v915 = vsel %vm894, %v870, %v871
        %v916 = vsel %vm894, %v869, %v870
        %v917 = vsel %vm894, %v868, %v869
        %v918 = vsel %vm894, %v867, %v868
        %v919 = vsel %vm894, %v866, %v867
        %v920 = vsel %vm894, %v865, %v866
        %v921 = vsel %vm894, %v864, %v865
        %v922 = vsel %vm894, %v863, %v864
        %v923 = vsel %vm894, %v862, %v863
        %v924 = vsel %vm894, %v861, %v862
        %v925 = vsel %vm894, %v860, %v861
        %v926 = vsel %vm894, %v891, %v860
        %v927 = vrot.slane %v828, 1
        %v928 = vrot.slane %v829, 1
        %v929 = vrot.slane %v830, 1
        %v930 = vrot.slane %v831, 1
        %v931 = vrot.slane %v832, 1
        %v932 = vrot.slane %v833, 1
        %v933 = vrot.slane %v834, 1
        %v934 = vrot.slane %v835, 1
        %v935 = vrot.slane %v836, 1
        %v936 = vrot.slane %v837, 1
        %v937 = vrot.slane %v838, 1
        %v938 = vrot.slane %v839, 1
        %v939 = vrot.slane %v840, 1
        %v940 = vrot.slane %v841, 1
        %v941 = vrot.slane %v842, 1
        %v942 = vrot.slane %v843, 1
        %v943 = vrot.slane %v844, 1
        %v944 = vrot.slane %v845, 1
        %v945 = vrot.slane %v846, 1
        %v946 = vrot.slane %v847, 1
        %v947 = vrot.slane %v848, 1
        %v948 = vrot.slane %v849, 1
        %v949 = vrot.slane %v850, 1
        %v950 = vrot.slane %v851, 1
        %v951 = vrot.slane %v852, 1
        %v952 = vrot.slane %v853, 1
        %v953 = vrot.slane %v854, 1
        %v954 = vrot.slane %v855, 1
        %v955 = vrot.slane %v856, 1
        %v956 = vrot.slane %v857, 1
        %v957 = vrot.slane %v858, 1
        %v958 = vrot.slane %v859, 1
        %vm959 = vcmp.lt.s32.totalorder %v893, 7
        %v960 = vsel %vm959, %v957, %v958
        %v961 = vsel %vm959, %v956, %v957
        %v962 = vsel %vm959, %v955, %v956
        %v963 = vsel %vm959, %v954, %v955
        %v964 = vsel %vm959, %v953, %v954
        %v965 = vsel %vm959, %v952, %v953
        %v966 = vsel %vm959, %v951, %v952
        %v967 = vsel %vm959, %v950, %v951
        %v968 = vsel %vm959, %v949, %v950
        %v969 = vsel %vm959, %v948, %v949
        %v970 = vsel %vm959, %v947, %v948
        %v971 = vsel %vm959, %v946, %v947
        %v972 = vsel %vm959, %v945, %v946
        %v973 = vsel %vm959, %v944, %v945
        %v974 = vsel %vm959, %v943, %v944
        %v975 = vsel %vm959, %v942, %v943
        %v976 = vsel %vm959, %v941, %v942
        %v977 = vsel %vm959, %v940, %v941
        %v978 = vsel %vm959, %v939, %v940
        %v979 = vsel %vm959, %v938, %v939
        %v980 = vsel %vm959, %v937, %v938
        %v981 = vsel %vm959, %v936, %v937
        %v982 = vsel %vm959, %v935, %v936
        %v983 = vsel %vm959, %v934, %v935
        %v984 = vsel %vm959, %v933, %v934
        %v985 = vsel %vm959, %v932, %v933
        %v986 = vsel %vm959, %v931, %v932
        %v987 = vsel %vm959, %v930, %v931
        %v988 = vsel %vm959, %v929, %v930
        %v989 = vsel %vm959, %v928, %v929
        %v990 = vsel %vm959, %v927, %v928
        %v991 = vsel %vm959, %v958, %v927
        %v992 = vadd.s32 %v893, 8
        %v993 = vadd.s32 %v893, 16
        %v994 = vadd.s32 %v893, 24
        %v995 = vadd.s32 %v893, 32
        %v996 = vadd.s32 %v893, 40
        %v997 = vadd.s32 %v893, 48
        %v998 = vadd.s32 %v893, 56
        %v999 = vadd.s32 %v893, 64
        %v1000 = vadd.s32 %v893, 72
        %v1001 = vadd.s32 %v893, 80
        %v1002 = vadd.s32 %v893, 88
        %v1003 = vadd.s32 %v893, 96
        %v1004 = vadd.s32 %v893, 104
        %v1005 = vadd.s32 %v893, 112
        %v1006 = vadd.s32 %v893, 120
        %v1007 = vadd.s32 %v893, 128
        %v1008 = vadd.s32 %v893, 136
        %v1009 = vadd.s32 %v893, 144
        %v1010 = vadd.s32 %v893, 152
        %v1011 = vadd.s32 %v893, 160
        %v1012 = vadd.s32 %v893, 168
        %v1013 = vadd.s32 %v893, 176
        %v1014 = vadd.s32 %v893, 184
        %v1015 = vadd.s32 %v893, 192
        %v1016 = vadd.s32 %v893, 200
        %v1017 = vadd.s32 %v893, 208
        %v1018 = vadd.s32 %v893, 216
        %v1019 = vadd.s32 %v893, 224
        %v1020 = vadd.s32 %v893, 232
        %v1021 = vadd.s32 %v893, 240
        %v1022 = vadd.s32 %v893, 248
        %vm1023 = vcmp.lt.s32.totalorder %v893, 0
        %v1024 = vsub.s32 0, %v893
        %v1025 = vsel %vm1023, %v1024, %v893
        %v1026 = vshrl.u32 %v1025, 4
        %v1027 = vand.u32 %v1025, 15
        %v1028 = vsub.s32 0, %v1027
        %v1029 = vsel %vm1023, %v1028, %v1027
        %vm1030 = vcmp.lt.s32.totalorder %v992, 0
        %v1031 = vsub.s32 0, %v992
        %v1032 = vsel %vm1030, %v1031, %v992
        %v1033 = vshrl.u32 %v1032, 4
        %v1034 = vand.u32 %v1032, 15
        %v1035 = vsub.s32 0, %v1034
        %v1036 = vsel %vm1030, %v1035, %v1034
        %vm1037 = vcmp.lt.s32.totalorder %v993, 0
        %v1038 = vsub.s32 0, %v993
        %v1039 = vsel %vm1037, %v1038, %v993
        %v1040 = vshrl.u32 %v1039, 4
        %v1041 = vand.u32 %v1039, 15
        %v1042 = vsub.s32 0, %v1041
        %v1043 = vsel %vm1037, %v1042, %v1041
        %vm1044 = vcmp.lt.s32.totalorder %v994, 0
        %v1045 = vsub.s32 0, %v994
        %v1046 = vsel %vm1044, %v1045, %v994
        %v1047 = vshrl.u32 %v1046, 4
        %v1048 = vand.u32 %v1046, 15
        %v1049 = vsub.s32 0, %v1048
        %v1050 = vsel %vm1044, %v1049, %v1048
        %vm1051 = vcmp.lt.s32.totalorder %v995, 0
        %v1052 = vsub.s32 0, %v995
        %v1053 = vsel %vm1051, %v1052, %v995
        %v1054 = vshrl.u32 %v1053, 4
        %v1055 = vand.u32 %v1053, 15
        %v1056 = vsub.s32 0, %v1055
        %v1057 = vsel %vm1051, %v1056, %v1055
        %vm1058 = vcmp.lt.s32.totalorder %v996, 0
        %v1059 = vsub.s32 0, %v996
        %v1060 = vsel %vm1058, %v1059, %v996
        %v1061 = vshrl.u32 %v1060, 4
        %v1062 = vand.u32 %v1060, 15
        %v1063 = vsub.s32 0, %v1062
        %v1064 = vsel %vm1058, %v1063, %v1062
        %vm1065 = vcmp.lt.s32.totalorder %v997, 0
        %v1066 = vsub.s32 0, %v997
        %v1067 = vsel %vm1065, %v1066, %v997
        %v1068 = vshrl.u32 %v1067, 4
        %v1069 = vand.u32 %v1067, 15
        %v1070 = vsub.s32 0, %v1069
        %v1071 = vsel %vm1065, %v1070, %v1069
        %vm1072 = vcmp.lt.s32.totalorder %v998, 0
        %v1073 = vsub.s32 0, %v998
        %v1074 = vsel %vm1072, %v1073, %v998
        %v1075 = vshrl.u32 %v1074, 4
        %v1076 = vand.u32 %v1074, 15
        %v1077 = vsub.s32 0, %v1076
        %v1078 = vsel %vm1072, %v1077, %v1076
        %vm1079 = vcmp.lt.s32.totalorder %v999, 0
        %v1080 = vsub.s32 0, %v999
        %v1081 = vsel %vm1079, %v1080, %v999
        %v1082 = vshrl.u32 %v1081, 4
        %v1083 = vand.u32 %v1081, 15
        %v1084 = vsub.s32 0, %v1083
        %v1085 = vsel %vm1079, %v1084, %v1083
        %vm1086 = vcmp.lt.s32.totalorder %v1000, 0
        %v1087 = vsub.s32 0, %v1000
        %v1088 = vsel %vm1086, %v1087, %v1000
        %v1089 = vshrl.u32 %v1088, 4
        %v1090 = vand.u32 %v1088, 15
        %v1091 = vsub.s32 0, %v1090
        %v1092 = vsel %vm1086, %v1091, %v1090
        %vm1093 = vcmp.lt.s32.totalorder %v1001, 0
        %v1094 = vsub.s32 0, %v1001
        %v1095 = vsel %vm1093, %v1094, %v1001
        %v1096 = vshrl.u32 %v1095, 4
        %v1097 = vand.u32 %v1095, 15
        %v1098 = vsub.s32 0, %v1097
        %v1099 = vsel %vm1093, %v1098, %v1097
        %vm1100 = vcmp.lt.s32.totalorder %v1002, 0
        %v1101 = vsub.s32 0, %v1002
        %v1102 = vsel %vm1100, %v1101, %v1002
        %v1103 = vshrl.u32 %v1102, 4
        %v1104 = vand.u32 %v1102, 15
        %v1105 = vsub.s32 0, %v1104
        %v1106 = vsel %vm1100, %v1105, %v1104
        %vm1107 = vcmp.lt.s32.totalorder %v1003, 0
        %v1108 = vsub.s32 0, %v1003
        %v1109 = vsel %vm1107, %v1108, %v1003
        %v1110 = vshrl.u32 %v1109, 4
        %v1111 = vand.u32 %v1109, 15
        %v1112 = vsub.s32 0, %v1111
        %v1113 = vsel %vm1107, %v1112, %v1111
        %vm1114 = vcmp.lt.s32.totalorder %v1004, 0
        %v1115 = vsub.s32 0, %v1004
        %v1116 = vsel %vm1114, %v1115, %v1004
        %v1117 = vshrl.u32 %v1116, 4
        %v1118 = vand.u32 %v1116, 15
        %v1119 = vsub.s32 0, %v1118
        %v1120 = vsel %vm1114, %v1119, %v1118
        %vm1121 = vcmp.lt.s32.totalorder %v1005, 0
        %v1122 = vsub.s32 0, %v1005
        %v1123 = vsel %vm1121, %v1122, %v1005
        %v1124 = vshrl.u32 %v1123, 4
        %v1125 = vand.u32 %v1123, 15
        %v1126 = vsub.s32 0, %v1125
        %v1127 = vsel %vm1121, %v1126, %v1125
        %vm1128 = vcmp.lt.s32.totalorder %v1006, 0
        %v1129 = vsub.s32 0, %v1006
        %v1130 = vsel %vm1128, %v1129, %v1006
        %v1131 = vshrl.u32 %v1130, 4
        %v1132 = vand.u32 %v1130, 15
        %v1133 = vsub.s32 0, %v1132
        %v1134 = vsel %vm1128, %v1133, %v1132
        %vm1135 = vcmp.lt.s32.totalorder %v1007, 0
        %v1136 = vsub.s32 0, %v1007
        %v1137 = vsel %vm1135, %v1136, %v1007
        %v1138 = vshrl.u32 %v1137, 4
        %v1139 = vand.u32 %v1137, 15
        %v1140 = vsub.s32 0, %v1139
        %v1141 = vsel %vm1135, %v1140, %v1139
        %vm1142 = vcmp.lt.s32.totalorder %v1008, 0
        %v1143 = vsub.s32 0, %v1008
        %v1144 = vsel %vm1142, %v1143, %v1008
        %v1145 = vshrl.u32 %v1144, 4
        %v1146 = vand.u32 %v1144, 15
        %v1147 = vsub.s32 0, %v1146
        %v1148 = vsel %vm1142, %v1147, %v1146
        %vm1149 = vcmp.lt.s32.totalorder %v1009, 0
        %v1150 = vsub.s32 0, %v1009
        %v1151 = vsel %vm1149, %v1150, %v1009
        %v1152 = vshrl.u32 %v1151, 4
        %v1153 = vand.u32 %v1151, 15
        %v1154 = vsub.s32 0, %v1153
        %v1155 = vsel %vm1149, %v1154, %v1153
        %vm1156 = vcmp.lt.s32.totalorder %v1010, 0
        %v1157 = vsub.s32 0, %v1010
        %v1158 = vsel %vm1156, %v1157, %v1010
        %v1159 = vshrl.u32 %v1158, 4
        %v1160 = vand.u32 %v1158, 15
        %v1161 = vsub.s32 0, %v1160
        %v1162 = vsel %vm1156, %v1161, %v1160
        %vm1163 = vcmp.lt.s32.totalorder %v1011, 0
        %v1164 = vsub.s32 0, %v1011
        %v1165 = vsel %vm1163, %v1164, %v1011
        %v1166 = vshrl.u32 %v1165, 4
        %v1167 = vand.u32 %v1165, 15
        %v1168 = vsub.s32 0, %v1167
        %v1169 = vsel %vm1163, %v1168, %v1167
        %vm1170 = vcmp.lt.s32.totalorder %v1012, 0
        %v1171 = vsub.s32 0, %v1012
        %v1172 = vsel %vm1170, %v1171, %v1012
        %v1173 = vshrl.u32 %v1172, 4
        %v1174 = vand.u32 %v1172, 15
        %v1175 = vsub.s32 0, %v1174
        %v1176 = vsel %vm1170, %v1175, %v1174
        %vm1177 = vcmp.lt.s32.totalorder %v1013, 0
        %v1178 = vsub.s32 0, %v1013
        %v1179 = vsel %vm1177, %v1178, %v1013
        %v1180 = vshrl.u32 %v1179, 4
        %v1181 = vand.u32 %v1179, 15
        %v1182 = vsub.s32 0, %v1181
        %v1183 = vsel %vm1177, %v1182, %v1181
        %vm1184 = vcmp.lt.s32.totalorder %v1014, 0
        %v1185 = vsub.s32 0, %v1014
        %v1186 = vsel %vm1184, %v1185, %v1014
        %v1187 = vshrl.u32 %v1186, 4
        %v1188 = vand.u32 %v1186, 15
        %v1189 = vsub.s32 0, %v1188
        %v1190 = vsel %vm1184, %v1189, %v1188
        %vm1191 = vcmp.lt.s32.totalorder %v1015, 0
        %v1192 = vsub.s32 0, %v1015
        %v1193 = vsel %vm1191, %v1192, %v1015
        %v1194 = vshrl.u32 %v1193, 4
        %v1195 = vand.u32 %v1193, 15
        %v1196 = vsub.s32 0, %v1195
        %v1197 = vsel %vm1191, %v1196, %v1195
        %vm1198 = vcmp.lt.s32.totalorder %v1016, 0
        %v1199 = vsub.s32 0, %v1016
        %v1200 = vsel %vm1198, %v1199, %v1016
        %v1201 = vshrl.u32 %v1200, 4
        %v1202 = vand.u32 %v1200, 15
        %v1203 = vsub.s32 0, %v1202
        %v1204 = vsel %vm1198, %v1203, %v1202
        %vm1205 = vcmp.lt.s32.totalorder %v1017, 0
        %v1206 = vsub.s32 0, %v1017
        %v1207 = vsel %vm1205, %v1206, %v1017
        %v1208 = vshrl.u32 %v1207, 4
        %v1209 = vand.u32 %v1207, 15
        %v1210 = vsub.s32 0, %v1209
        %v1211 = vsel %vm1205, %v1210, %v1209
        %vm1212 = vcmp.lt.s32.totalorder %v1018, 0
        %v1213 = vsub.s32 0, %v1018
        %v1214 = vsel %vm1212, %v1213, %v1018
        %v1215 = vshrl.u32 %v1214, 4
        %v1216 = vand.u32 %v1214, 15
        %v1217 = vsub.s32 0, %v1216
        %v1218 = vsel %vm1212, %v1217, %v1216
        %vm1219 = vcmp.lt.s32.totalorder %v1019, 0
        %v1220 = vsub.s32 0, %v1019
        %v1221 = vsel %vm1219, %v1220, %v1019
        %v1222 = vshrl.u32 %v1221, 4
        %v1223 = vand.u32 %v1221, 15
        %v1224 = vsub.s32 0, %v1223
        %v1225 = vsel %vm1219, %v1224, %v1223
        %vm1226 = vcmp.lt.s32.totalorder %v1020, 0
        %v1227 = vsub.s32 0, %v1020
        %v1228 = vsel %vm1226, %v1227, %v1020
        %v1229 = vshrl.u32 %v1228, 4
        %v1230 = vand.u32 %v1228, 15
        %v1231 = vsub.s32 0, %v1230
        %v1232 = vsel %vm1226, %v1231, %v1230
        %vm1233 = vcmp.lt.s32.totalorder %v1021, 0
        %v1234 = vsub.s32 0, %v1021
        %v1235 = vsel %vm1233, %v1234, %v1021
        %v1236 = vshrl.u32 %v1235, 4
        %v1237 = vand.u32 %v1235, 15
        %v1238 = vsub.s32 0, %v1237
        %v1239 = vsel %vm1233, %v1238, %v1237
        %vm1240 = vcmp.lt.s32.totalorder %v1022, 0
        %v1241 = vsub.s32 0, %v1022
        %v1242 = vsel %vm1240, %v1241, %v1022
        %v1243 = vshrl.u32 %v1242, 4
        %v1244 = vand.u32 %v1242, 15
        %v1245 = vsub.s32 0, %v1244
        %v1246 = vsel %vm1240, %v1245, %v1244
        %vm1247 = vcmp.ne.s32.totalorder %v1029, 0
        %vm1248 = vcmp.ne.s32.totalorder %v1036, 0
        %vm1249 = vcmp.ne.s32.totalorder %v1043, 0
        %vm1250 = vcmp.ne.s32.totalorder %v1050, 0
        %vm1251 = vcmp.ne.s32.totalorder %v1057, 0
        %vm1252 = vcmp.ne.s32.totalorder %v1064, 0
        %vm1253 = vcmp.ne.s32.totalorder %v1071, 0
        %vm1254 = vcmp.ne.s32.totalorder %v1078, 0
        %vm1255 = vcmp.ne.s32.totalorder %v1085, 0
        %vm1256 = vcmp.ne.s32.totalorder %v1092, 0
        %vm1257 = vcmp.ne.s32.totalorder %v1099, 0
        %vm1258 = vcmp.ne.s32.totalorder %v1106, 0
        %vm1259 = vcmp.ne.s32.totalorder %v1113, 0
        %vm1260 = vcmp.ne.s32.totalorder %v1120, 0
        %vm1261 = vcmp.ne.s32.totalorder %v1127, 0
        %vm1262 = vcmp.ne.s32.totalorder %v1134, 0
        %vm1263 = vcmp.ne.s32.totalorder %v1141, 0
        %vm1264 = vcmp.ne.s32.totalorder %v1148, 0
        %vm1265 = vcmp.ne.s32.totalorder %v1155, 0
        %vm1266 = vcmp.ne.s32.totalorder %v1162, 0
        %vm1267 = vcmp.ne.s32.totalorder %v1169, 0
        %vm1268 = vcmp.ne.s32.totalorder %v1176, 0
        %vm1269 = vcmp.ne.s32.totalorder %v1183, 0
        %vm1270 = vcmp.ne.s32.totalorder %v1190, 0
        %vm1271 = vcmp.ne.s32.totalorder %v1197, 0
        %vm1272 = vcmp.ne.s32.totalorder %v1204, 0
        %vm1273 = vcmp.ne.s32.totalorder %v1211, 0
        %vm1274 = vcmp.ne.s32.totalorder %v1218, 0
        %vm1275 = vcmp.ne.s32.totalorder %v1225, 0
        %vm1276 = vcmp.ne.s32.totalorder %v1232, 0
        %vm1277 = vcmp.ne.s32.totalorder %v1239, 0
        %vm1278 = vcmp.ne.s32.totalorder %v1246, 0
        %vm1279 = vcmp.lt.s32.totalorder %v1029, 0
        %vm1280 = vcmp.lt.s32.totalorder %v1036, 0
        %vm1281 = vcmp.lt.s32.totalorder %v1043, 0
        %vm1282 = vcmp.lt.s32.totalorder %v1050, 0
        %vm1283 = vcmp.lt.s32.totalorder %v1057, 0
        %vm1284 = vcmp.lt.s32.totalorder %v1064, 0
        %vm1285 = vcmp.lt.s32.totalorder %v1071, 0
        %vm1286 = vcmp.lt.s32.totalorder %v1078, 0
        %vm1287 = vcmp.lt.s32.totalorder %v1085, 0
        %vm1288 = vcmp.lt.s32.totalorder %v1092, 0
        %vm1289 = vcmp.lt.s32.totalorder %v1099, 0
        %vm1290 = vcmp.lt.s32.totalorder %v1106, 0
        %vm1291 = vcmp.lt.s32.totalorder %v1113, 0
        %vm1292 = vcmp.lt.s32.totalorder %v1120, 0
        %vm1293 = vcmp.lt.s32.totalorder %v1127, 0
        %vm1294 = vcmp.lt.s32.totalorder %v1134, 0
        %vm1295 = vcmp.lt.s32.totalorder %v1141, 0
        %vm1296 = vcmp.lt.s32.totalorder %v1148, 0
        %vm1297 = vcmp.lt.s32.totalorder %v1155, 0
        %vm1298 = vcmp.lt.s32.totalorder %v1162, 0
        %vm1299 = vcmp.lt.s32.totalorder %v1169, 0
        %vm1300 = vcmp.lt.s32.totalorder %v1176, 0
        %vm1301 = vcmp.lt.s32.totalorder %v1183, 0
        %vm1302 = vcmp.lt.s32.totalorder %v1190, 0
        %vm1303 = vcmp.lt.s32.totalorder %v1197, 0
        %vm1304 = vcmp.lt.s32.totalorder %v1204, 0
        %vm1305 = vcmp.lt.s32.totalorder %v1211, 0
        %vm1306 = vcmp.lt.s32.totalorder %v1218, 0
        %vm1307 = vcmp.lt.s32.totalorder %v1225, 0
        %vm1308 = vcmp.lt.s32.totalorder %v1232, 0
        %vm1309 = vcmp.lt.s32.totalorder %v1239, 0
        %vm1310 = vcmp.lt.s32.totalorder %v1246, 0
        %vm1311 = vmand %vm1279, %vm1247
        %vm1312 = vmand %vm1280, %vm1248
        %vm1313 = vmand %vm1281, %vm1249
        %vm1314 = vmand %vm1282, %vm1250
        %vm1315 = vmand %vm1283, %vm1251
        %vm1316 = vmand %vm1284, %vm1252
        %vm1317 = vmand %vm1285, %vm1253
        %vm1318 = vmand %vm1286, %vm1254
        %vm1319 = vmand %vm1287, %vm1255
        %vm1320 = vmand %vm1288, %vm1256
        %vm1321 = vmand %vm1289, %vm1257
        %vm1322 = vmand %vm1290, %vm1258
        %vm1323 = vmand %vm1291, %vm1259
        %vm1324 = vmand %vm1292, %vm1260
        %vm1325 = vmand %vm1293, %vm1261
        %vm1326 = vmand %vm1294, %vm1262
        %vm1327 = vmand %vm1295, %vm1263
        %vm1328 = vmand %vm1296, %vm1264
        %vm1329 = vmand %vm1297, %vm1265
        %vm1330 = vmand %vm1298, %vm1266
        %vm1331 = vmand %vm1299, %vm1267
        %vm1332 = vmand %vm1300, %vm1268
        %vm1333 = vmand %vm1301, %vm1269
        %vm1334 = vmand %vm1302, %vm1270
        %vm1335 = vmand %vm1303, %vm1271
        %vm1336 = vmand %vm1304, %vm1272
        %vm1337 = vmand %vm1305, %vm1273
        %vm1338 = vmand %vm1306, %vm1274
        %vm1339 = vmand %vm1307, %vm1275
        %vm1340 = vmand %vm1308, %vm1276
        %vm1341 = vmand %vm1309, %vm1277
        %vm1342 = vmand %vm1310, %vm1278
        %v1343 = vadd.s32 %v1029, 16
        %v1344 = vadd.s32 %v1036, 16
        %v1345 = vadd.s32 %v1043, 16
        %v1346 = vadd.s32 %v1050, 16
        %v1347 = vadd.s32 %v1057, 16
        %v1348 = vadd.s32 %v1064, 16
        %v1349 = vadd.s32 %v1071, 16
        %v1350 = vadd.s32 %v1078, 16
        %v1351 = vadd.s32 %v1085, 16
        %v1352 = vadd.s32 %v1092, 16
        %v1353 = vadd.s32 %v1099, 16
        %v1354 = vadd.s32 %v1106, 16
        %v1355 = vadd.s32 %v1113, 16
        %v1356 = vadd.s32 %v1120, 16
        %v1357 = vadd.s32 %v1127, 16
        %v1358 = vadd.s32 %v1134, 16
        %v1359 = vadd.s32 %v1141, 16
        %v1360 = vadd.s32 %v1148, 16
        %v1361 = vadd.s32 %v1155, 16
        %v1362 = vadd.s32 %v1162, 16
        %v1363 = vadd.s32 %v1169, 16
        %v1364 = vadd.s32 %v1176, 16
        %v1365 = vadd.s32 %v1183, 16
        %v1366 = vadd.s32 %v1190, 16
        %v1367 = vadd.s32 %v1197, 16
        %v1368 = vadd.s32 %v1204, 16
        %v1369 = vadd.s32 %v1211, 16
        %v1370 = vadd.s32 %v1218, 16
        %v1371 = vadd.s32 %v1225, 16
        %v1372 = vadd.s32 %v1232, 16
        %v1373 = vadd.s32 %v1239, 16
        %v1374 = vadd.s32 %v1246, 16
        %v1375 = vsel %vm1311, %v1343, %v1029
        %v1376 = vsel %vm1312, %v1344, %v1036
        %v1377 = vsel %vm1313, %v1345, %v1043
        %v1378 = vsel %vm1314, %v1346, %v1050
        %v1379 = vsel %vm1315, %v1347, %v1057
        %v1380 = vsel %vm1316, %v1348, %v1064
        %v1381 = vsel %vm1317, %v1349, %v1071
        %v1382 = vsel %vm1318, %v1350, %v1078
        %v1383 = vsel %vm1319, %v1351, %v1085
        %v1384 = vsel %vm1320, %v1352, %v1092
        %v1385 = vsel %vm1321, %v1353, %v1099
        %v1386 = vsel %vm1322, %v1354, %v1106
        %v1387 = vsel %vm1323, %v1355, %v1113
        %v1388 = vsel %vm1324, %v1356, %v1120
        %v1389 = vsel %vm1325, %v1357, %v1127
        %v1390 = vsel %vm1326, %v1358, %v1134
        %v1391 = vsel %vm1327, %v1359, %v1141
        %v1392 = vsel %vm1328, %v1360, %v1148
        %v1393 = vsel %vm1329, %v1361, %v1155
        %v1394 = vsel %vm1330, %v1362, %v1162
        %v1395 = vsel %vm1331, %v1363, %v1169
        %v1396 = vsel %vm1332, %v1364, %v1176
        %v1397 = vsel %vm1333, %v1365, %v1183
        %v1398 = vsel %vm1334, %v1366, %v1190
        %v1399 = vsel %vm1335, %v1367, %v1197
        %v1400 = vsel %vm1336, %v1368, %v1204
        %v1401 = vsel %vm1337, %v1369, %v1211
        %v1402 = vsel %vm1338, %v1370, %v1218
        %v1403 = vsel %vm1339, %v1371, %v1225
        %v1404 = vsel %vm1340, %v1372, %v1232
        %v1405 = vsel %vm1341, %v1373, %v1239
        %v1406 = vsel %vm1342, %v1374, %v1246
        %vm1407 = vcmp.ge.s32.totalorder %v1375, 1
        %vm1408 = vcmp.ge.s32.totalorder %v1376, 1
        %vm1409 = vcmp.ge.s32.totalorder %v1377, 1
        %vm1410 = vcmp.ge.s32.totalorder %v1378, 1
        %vm1411 = vcmp.ge.s32.totalorder %v1379, 1
        %vm1412 = vcmp.ge.s32.totalorder %v1380, 1
        %vm1413 = vcmp.ge.s32.totalorder %v1381, 1
        %vm1414 = vcmp.ge.s32.totalorder %v1382, 1
        %vm1415 = vcmp.ge.s32.totalorder %v1383, 1
        %vm1416 = vcmp.ge.s32.totalorder %v1384, 1
        %vm1417 = vcmp.ge.s32.totalorder %v1385, 1
        %vm1418 = vcmp.ge.s32.totalorder %v1386, 1
        %vm1419 = vcmp.ge.s32.totalorder %v1387, 1
        %vm1420 = vcmp.ge.s32.totalorder %v1388, 1
        %vm1421 = vcmp.ge.s32.totalorder %v1389, 1
        %vm1422 = vcmp.ge.s32.totalorder %v1390, 1
        %vm1423 = vcmp.ge.s32.totalorder %v1391, 1
        %vm1424 = vcmp.ge.s32.totalorder %v1392, 1
        %vm1425 = vcmp.ge.s32.totalorder %v1393, 1
        %vm1426 = vcmp.ge.s32.totalorder %v1394, 1
        %vm1427 = vcmp.ge.s32.totalorder %v1395, 1
        %vm1428 = vcmp.ge.s32.totalorder %v1396, 1
        %vm1429 = vcmp.ge.s32.totalorder %v1397, 1
        %vm1430 = vcmp.ge.s32.totalorder %v1398, 1
        %vm1431 = vcmp.ge.s32.totalorder %v1399, 1
        %vm1432 = vcmp.ge.s32.totalorder %v1400, 1
        %vm1433 = vcmp.ge.s32.totalorder %v1401, 1
        %vm1434 = vcmp.ge.s32.totalorder %v1402, 1
        %vm1435 = vcmp.ge.s32.totalorder %v1403, 1
        %vm1436 = vcmp.ge.s32.totalorder %v1404, 1
        %vm1437 = vcmp.ge.s32.totalorder %v1405, 1
        %vm1438 = vcmp.ge.s32.totalorder %v1406, 1
        %v1439 = vsel %vm1407, 1, 0
        %v1440 = vsel %vm1408, 1, 0
        %v1441 = vsel %vm1409, 1, 0
        %v1442 = vsel %vm1410, 1, 0
        %v1443 = vsel %vm1411, 1, 0
        %v1444 = vsel %vm1412, 1, 0
        %v1445 = vsel %vm1413, 1, 0
        %v1446 = vsel %vm1414, 1, 0
        %v1447 = vsel %vm1415, 1, 0
        %v1448 = vsel %vm1416, 1, 0
        %v1449 = vsel %vm1417, 1, 0
        %v1450 = vsel %vm1418, 1, 0
        %v1451 = vsel %vm1419, 1, 0
        %v1452 = vsel %vm1420, 1, 0
        %v1453 = vsel %vm1421, 1, 0
        %v1454 = vsel %vm1422, 1, 0
        %v1455 = vsel %vm1423, 1, 0
        %v1456 = vsel %vm1424, 1, 0
        %v1457 = vsel %vm1425, 1, 0
        %v1458 = vsel %vm1426, 1, 0
        %v1459 = vsel %vm1427, 1, 0
        %v1460 = vsel %vm1428, 1, 0
        %v1461 = vsel %vm1429, 1, 0
        %v1462 = vsel %vm1430, 1, 0
        %v1463 = vsel %vm1431, 1, 0
        %v1464 = vsel %vm1432, 1, 0
        %v1465 = vsel %vm1433, 1, 0
        %v1466 = vsel %vm1434, 1, 0
        %v1467 = vsel %vm1435, 1, 0
        %v1468 = vsel %vm1436, 1, 0
        %v1469 = vsel %vm1437, 1, 0
        %v1470 = vsel %vm1438, 1, 0
        %vm1471 = vcmp.eq.s32.totalorder %v1439, 1
        %vm1472 = vcmp.eq.s32.totalorder %v1440, 1
        %vm1473 = vcmp.eq.s32.totalorder %v1441, 1
        %vm1474 = vcmp.eq.s32.totalorder %v1442, 1
        %vm1475 = vcmp.eq.s32.totalorder %v1443, 1
        %vm1476 = vcmp.eq.s32.totalorder %v1444, 1
        %vm1477 = vcmp.eq.s32.totalorder %v1445, 1
        %vm1478 = vcmp.eq.s32.totalorder %v1446, 1
        %vm1479 = vcmp.eq.s32.totalorder %v1447, 1
        %vm1480 = vcmp.eq.s32.totalorder %v1448, 1
        %vm1481 = vcmp.eq.s32.totalorder %v1449, 1
        %vm1482 = vcmp.eq.s32.totalorder %v1450, 1
        %vm1483 = vcmp.eq.s32.totalorder %v1451, 1
        %vm1484 = vcmp.eq.s32.totalorder %v1452, 1
        %vm1485 = vcmp.eq.s32.totalorder %v1453, 1
        %vm1486 = vcmp.eq.s32.totalorder %v1454, 1
        %vm1487 = vcmp.eq.s32.totalorder %v1455, 1
        %vm1488 = vcmp.eq.s32.totalorder %v1456, 1
        %vm1489 = vcmp.eq.s32.totalorder %v1457, 1
        %vm1490 = vcmp.eq.s32.totalorder %v1458, 1
        %vm1491 = vcmp.eq.s32.totalorder %v1459, 1
        %vm1492 = vcmp.eq.s32.totalorder %v1460, 1
        %vm1493 = vcmp.eq.s32.totalorder %v1461, 1
        %vm1494 = vcmp.eq.s32.totalorder %v1462, 1
        %vm1495 = vcmp.eq.s32.totalorder %v1463, 1
        %vm1496 = vcmp.eq.s32.totalorder %v1464, 1
        %vm1497 = vcmp.eq.s32.totalorder %v1465, 1
        %vm1498 = vcmp.eq.s32.totalorder %v1466, 1
        %vm1499 = vcmp.eq.s32.totalorder %v1467, 1
        %vm1500 = vcmp.eq.s32.totalorder %v1468, 1
        %vm1501 = vcmp.eq.s32.totalorder %v1469, 1
        %vm1502 = vcmp.eq.s32.totalorder %v1470, 1
        %v1503 = vsel %vm1471, %v926, 0.0
        %v1504 = vsel %vm1472, %v925, 0.0
        %v1505 = vsel %vm1473, %v924, 0.0
        %v1506 = vsel %vm1474, %v923, 0.0
        %v1507 = vsel %vm1475, %v922, 0.0
        %v1508 = vsel %vm1476, %v921, 0.0
        %v1509 = vsel %vm1477, %v920, 0.0
        %v1510 = vsel %vm1478, %v919, 0.0
        %v1511 = vsel %vm1479, %v918, 0.0
        %v1512 = vsel %vm1480, %v917, 0.0
        %v1513 = vsel %vm1481, %v916, 0.0
        %v1514 = vsel %vm1482, %v915, 0.0
        %v1515 = vsel %vm1483, %v914, 0.0
        %v1516 = vsel %vm1484, %v913, 0.0
        %v1517 = vsel %vm1485, %v912, 0.0
        %v1518 = vsel %vm1486, %v911, 0.0
        %v1519 = vsel %vm1487, %v910, 0.0
        %v1520 = vsel %vm1488, %v909, 0.0
        %v1521 = vsel %vm1489, %v908, 0.0
        %v1522 = vsel %vm1490, %v907, 0.0
        %v1523 = vsel %vm1491, %v906, 0.0
        %v1524 = vsel %vm1492, %v905, 0.0
        %v1525 = vsel %vm1493, %v904, 0.0
        %v1526 = vsel %vm1494, %v903, 0.0
        %v1527 = vsel %vm1495, %v902, 0.0
        %v1528 = vsel %vm1496, %v901, 0.0
        %v1529 = vsel %vm1497, %v900, 0.0
        %v1530 = vsel %vm1498, %v899, 0.0
        %v1531 = vsel %vm1499, %v898, 0.0
        %v1532 = vsel %vm1500, %v897, 0.0
        %v1533 = vsel %vm1501, %v896, 0.0
        %v1534 = vsel %vm1502, %v895, 0.0
        %vm1535 = vcmp.le.s32.totalorder %v1375, 14
        %vm1536 = vcmp.le.s32.totalorder %v1376, 14
        %vm1537 = vcmp.le.s32.totalorder %v1377, 14
        %vm1538 = vcmp.le.s32.totalorder %v1378, 14
        %vm1539 = vcmp.le.s32.totalorder %v1379, 14
        %vm1540 = vcmp.le.s32.totalorder %v1380, 14
        %vm1541 = vcmp.le.s32.totalorder %v1381, 14
        %vm1542 = vcmp.le.s32.totalorder %v1382, 14
        %vm1543 = vcmp.le.s32.totalorder %v1383, 14
        %vm1544 = vcmp.le.s32.totalorder %v1384, 14
        %vm1545 = vcmp.le.s32.totalorder %v1385, 14
        %vm1546 = vcmp.le.s32.totalorder %v1386, 14
        %vm1547 = vcmp.le.s32.totalorder %v1387, 14
        %vm1548 = vcmp.le.s32.totalorder %v1388, 14
        %vm1549 = vcmp.le.s32.totalorder %v1389, 14
        %vm1550 = vcmp.le.s32.totalorder %v1390, 14
        %vm1551 = vcmp.le.s32.totalorder %v1391, 14
        %vm1552 = vcmp.le.s32.totalorder %v1392, 14
        %vm1553 = vcmp.le.s32.totalorder %v1393, 14
        %vm1554 = vcmp.le.s32.totalorder %v1394, 14
        %vm1555 = vcmp.le.s32.totalorder %v1395, 14
        %vm1556 = vcmp.le.s32.totalorder %v1396, 14
        %vm1557 = vcmp.le.s32.totalorder %v1397, 14
        %vm1558 = vcmp.le.s32.totalorder %v1398, 14
        %vm1559 = vcmp.le.s32.totalorder %v1399, 14
        %vm1560 = vcmp.le.s32.totalorder %v1400, 14
        %vm1561 = vcmp.le.s32.totalorder %v1401, 14
        %vm1562 = vcmp.le.s32.totalorder %v1402, 14
        %vm1563 = vcmp.le.s32.totalorder %v1403, 14
        %vm1564 = vcmp.le.s32.totalorder %v1404, 14
        %vm1565 = vcmp.le.s32.totalorder %v1405, 14
        %vm1566 = vcmp.le.s32.totalorder %v1406, 14
        %v1567 = vsel %vm1535, 1, 0
        %v1568 = vsel %vm1536, 1, 0
        %v1569 = vsel %vm1537, 1, 0
        %v1570 = vsel %vm1538, 1, 0
        %v1571 = vsel %vm1539, 1, 0
        %v1572 = vsel %vm1540, 1, 0
        %v1573 = vsel %vm1541, 1, 0
        %v1574 = vsel %vm1542, 1, 0
        %v1575 = vsel %vm1543, 1, 0
        %v1576 = vsel %vm1544, 1, 0
        %v1577 = vsel %vm1545, 1, 0
        %v1578 = vsel %vm1546, 1, 0
        %v1579 = vsel %vm1547, 1, 0
        %v1580 = vsel %vm1548, 1, 0
        %v1581 = vsel %vm1549, 1, 0
        %v1582 = vsel %vm1550, 1, 0
        %v1583 = vsel %vm1551, 1, 0
        %v1584 = vsel %vm1552, 1, 0
        %v1585 = vsel %vm1553, 1, 0
        %v1586 = vsel %vm1554, 1, 0
        %v1587 = vsel %vm1555, 1, 0
        %v1588 = vsel %vm1556, 1, 0
        %v1589 = vsel %vm1557, 1, 0
        %v1590 = vsel %vm1558, 1, 0
        %v1591 = vsel %vm1559, 1, 0
        %v1592 = vsel %vm1560, 1, 0
        %v1593 = vsel %vm1561, 1, 0
        %v1594 = vsel %vm1562, 1, 0
        %v1595 = vsel %vm1563, 1, 0
        %v1596 = vsel %vm1564, 1, 0
        %v1597 = vsel %vm1565, 1, 0
        %v1598 = vsel %vm1566, 1, 0
        %vm1599 = vcmp.eq.s32.totalorder %v1567, 1
        %vm1600 = vcmp.eq.s32.totalorder %v1568, 1
        %vm1601 = vcmp.eq.s32.totalorder %v1569, 1
        %vm1602 = vcmp.eq.s32.totalorder %v1570, 1
        %vm1603 = vcmp.eq.s32.totalorder %v1571, 1
        %vm1604 = vcmp.eq.s32.totalorder %v1572, 1
        %vm1605 = vcmp.eq.s32.totalorder %v1573, 1
        %vm1606 = vcmp.eq.s32.totalorder %v1574, 1
        %vm1607 = vcmp.eq.s32.totalorder %v1575, 1
        %vm1608 = vcmp.eq.s32.totalorder %v1576, 1
        %vm1609 = vcmp.eq.s32.totalorder %v1577, 1
        %vm1610 = vcmp.eq.s32.totalorder %v1578, 1
        %vm1611 = vcmp.eq.s32.totalorder %v1579, 1
        %vm1612 = vcmp.eq.s32.totalorder %v1580, 1
        %vm1613 = vcmp.eq.s32.totalorder %v1581, 1
        %vm1614 = vcmp.eq.s32.totalorder %v1582, 1
        %vm1615 = vcmp.eq.s32.totalorder %v1583, 1
        %vm1616 = vcmp.eq.s32.totalorder %v1584, 1
        %vm1617 = vcmp.eq.s32.totalorder %v1585, 1
        %vm1618 = vcmp.eq.s32.totalorder %v1586, 1
        %vm1619 = vcmp.eq.s32.totalorder %v1587, 1
        %vm1620 = vcmp.eq.s32.totalorder %v1588, 1
        %vm1621 = vcmp.eq.s32.totalorder %v1589, 1
        %vm1622 = vcmp.eq.s32.totalorder %v1590, 1
        %vm1623 = vcmp.eq.s32.totalorder %v1591, 1
        %vm1624 = vcmp.eq.s32.totalorder %v1592, 1
        %vm1625 = vcmp.eq.s32.totalorder %v1593, 1
        %vm1626 = vcmp.eq.s32.totalorder %v1594, 1
        %vm1627 = vcmp.eq.s32.totalorder %v1595, 1
        %vm1628 = vcmp.eq.s32.totalorder %v1596, 1
        %vm1629 = vcmp.eq.s32.totalorder %v1597, 1
        %vm1630 = vcmp.eq.s32.totalorder %v1598, 1
        %v1631 = vsel %vm1599, %v990, 0.0
        %v1632 = vsel %vm1600, %v989, 0.0
        %v1633 = vsel %vm1601, %v988, 0.0
        %v1634 = vsel %vm1602, %v987, 0.0
        %v1635 = vsel %vm1603, %v986, 0.0
        %v1636 = vsel %vm1604, %v985, 0.0
        %v1637 = vsel %vm1605, %v984, 0.0
        %v1638 = vsel %vm1606, %v983, 0.0
        %v1639 = vsel %vm1607, %v982, 0.0
        %v1640 = vsel %vm1608, %v981, 0.0
        %v1641 = vsel %vm1609, %v980, 0.0
        %v1642 = vsel %vm1610, %v979, 0.0
        %v1643 = vsel %vm1611, %v978, 0.0
        %v1644 = vsel %vm1612, %v977, 0.0
        %v1645 = vsel %vm1613, %v976, 0.0
        %v1646 = vsel %vm1614, %v975, 0.0
        %v1647 = vsel %vm1615, %v974, 0.0
        %v1648 = vsel %vm1616, %v973, 0.0
        %v1649 = vsel %vm1617, %v972, 0.0
        %v1650 = vsel %vm1618, %v971, 0.0
        %v1651 = vsel %vm1619, %v970, 0.0
        %v1652 = vsel %vm1620, %v969, 0.0
        %v1653 = vsel %vm1621, %v968, 0.0
        %v1654 = vsel %vm1622, %v967, 0.0
        %v1655 = vsel %vm1623, %v966, 0.0
        %v1656 = vsel %vm1624, %v965, 0.0
        %v1657 = vsel %vm1625, %v964, 0.0
        %v1658 = vsel %vm1626, %v963, 0.0
        %v1659 = vsel %vm1627, %v962, 0.0
        %v1660 = vsel %vm1628, %v961, 0.0
        %v1661 = vsel %vm1629, %v960, 0.0
        %v1662 = vsel %vm1630, %v991, 0.0
        %vm1663 = vcmask 785408
        %1664 = vst.msk [vmem:[#allocation2] sm:$0xff] %vm1663, 0.0
        %1665 = vst.msk [vmem:[#allocation2 + $0x8] sm:$0xff] %vm1663, 0.0
        %1666 = vst.msk [vmem:[#allocation2 + $0x110] sm:$0xff] %vm1663, 0.0
        %1667 = vst.msk [vmem:[#allocation2 + $0x118] sm:$0xff] %vm1663, 0.0
        %vm1668 = vcmask 261120
        %1669 = vst.msk [vmem:[#allocation2 + $0x10] sm:$0xff] %vm1668, %v1503
        %1670 = vst.msk [vmem:[#allocation2 + $0x18] sm:$0xff] %vm1668, %v1504
        %1671 = vst.msk [vmem:[#allocation2 + $0x20] sm:$0xff] %vm1668, %v1505
        %1672 = vst.msk [vmem:[#allocation2 + $0x28] sm:$0xff] %vm1668, %v1506
        %1673 = vst.msk [vmem:[#allocation2 + $0x30] sm:$0xff] %vm1668, %v1507
        %1674 = vst.msk [vmem:[#allocation2 + $0x38] sm:$0xff] %vm1668, %v1508
        %1675 = vst.msk [vmem:[#allocation2 + $0x40] sm:$0xff] %vm1668, %v1509
        %1676 = vst.msk [vmem:[#allocation2 + $0x48] sm:$0xff] %vm1668, %v1510
        %1677 = vst.msk [vmem:[#allocation2 + $0x50] sm:$0xff] %vm1668, %v1511
        %1678 = vst.msk [vmem:[#allocation2 + $0x58] sm:$0xff] %vm1668, %v1512
        %1679 = vst.msk [vmem:[#allocation2 + $0x60] sm:$0xff] %vm1668, %v1513
        %1680 = vst.msk [vmem:[#allocation2 + $0x68] sm:$0xff] %vm1668, %v1514
        %1681 = vst.msk [vmem:[#allocation2 + $0x70] sm:$0xff] %vm1668, %v1515
        %1682 = vst.msk [vmem:[#allocation2 + $0x78] sm:$0xff] %vm1668, %v1516
        %1683 = vst.msk [vmem:[#allocation2 + $0x80] sm:$0xff] %vm1668, %v1517
        %1684 = vst.msk [vmem:[#allocation2 + $0x88] sm:$0xff] %vm1668, %v1518
        %1685 = vst.msk [vmem:[#allocation2 + $0x90] sm:$0xff] %vm1668, %v1519
        %1686 = vst.msk [vmem:[#allocation2 + $0x98] sm:$0xff] %vm1668, %v1520
        %1687 = vst.msk [vmem:[#allocation2 + $0xa0] sm:$0xff] %vm1668, %v1521
        %1688 = vst.msk [vmem:[#allocation2 + $0xa8] sm:$0xff] %vm1668, %v1522
        %1689 = vst.msk [vmem:[#allocation2 + $0xb0] sm:$0xff] %vm1668, %v1523
        %1690 = vst.msk [vmem:[#allocation2 + $0xb8] sm:$0xff] %vm1668, %v1524
        %1691 = vst.msk [vmem:[#allocation2 + $0xc0] sm:$0xff] %vm1668, %v1525
        %1692 = vst.msk [vmem:[#allocation2 + $0xc8] sm:$0xff] %vm1668, %v1526
        %1693 = vst.msk [vmem:[#allocation2 + $0xd0] sm:$0xff] %vm1668, %v1527
        %1694 = vst.msk [vmem:[#allocation2 + $0xd8] sm:$0xff] %vm1668, %v1528
        %1695 = vst.msk [vmem:[#allocation2 + $0xe0] sm:$0xff] %vm1668, %v1529
        %1696 = vst.msk [vmem:[#allocation2 + $0xe8] sm:$0xff] %vm1668, %v1530
        %1697 = vst.msk [vmem:[#allocation2 + $0xf0] sm:$0xff] %vm1668, %v1531
        %1698 = vst.msk [vmem:[#allocation2 + $0xf8] sm:$0xff] %vm1668, %v1532
        %1699 = vst.msk [vmem:[#allocation2 + $0x100] sm:$0xff] %vm1668, %v1533
        %1700 = vst.msk [vmem:[#allocation2 + $0x108] sm:$0xff] %vm1668, %v1534
        %1733 = vrot.lane.b32.xlu0 %v828, 32
        %v1734 = vpop.permute.xlu0 %1733
        %1735 = vrot.lane.b32.xlu0 %v829, 32
        %v1736 = vpop.permute.xlu0 %1735
        %1737 = vrot.lane.b32.xlu0 %v830, 32
        %v1738 = vpop.permute.xlu0 %1737
        %1739 = vrot.lane.b32.xlu0 %v831, 32
        %v1740 = vpop.permute.xlu0 %1739
        %1741 = vrot.lane.b32.xlu0 %v832, 32
        %v1742 = vpop.permute.xlu0 %1741
        %1743 = vrot.lane.b32.xlu0 %v833, 32
        %v1744 = vpop.permute.xlu0 %1743
        %1745 = vrot.lane.b32.xlu0 %v834, 32
        %v1746 = vpop.permute.xlu0 %1745
        %1747 = vrot.lane.b32.xlu0 %v835, 32
        %v1748 = vpop.permute.xlu0 %1747
        %1749 = vrot.lane.b32.xlu0 %v836, 32
        %v1750 = vpop.permute.xlu0 %1749
        %1751 = vrot.lane.b32.xlu0 %v837, 32
        %v1752 = vpop.permute.xlu0 %1751
        %1753 = vrot.lane.b32.xlu0 %v838, 32
        %v1754 = vpop.permute.xlu0 %1753
        %1755 = vrot.lane.b32.xlu0 %v839, 32
        %v1756 = vpop.permute.xlu0 %1755
        %1757 = vrot.lane.b32.xlu0 %v840, 32
        %v1758 = vpop.permute.xlu0 %1757
        %1759 = vrot.lane.b32.xlu0 %v841, 32
        %v1760 = vpop.permute.xlu0 %1759
        %1761 = vrot.lane.b32.xlu0 %v842, 32
        %v1762 = vpop.permute.xlu0 %1761
        %1763 = vrot.lane.b32.xlu0 %v843, 32
        %v1764 = vpop.permute.xlu0 %1763
        %1765 = vrot.lane.b32.xlu0 %v844, 32
        %v1766 = vpop.permute.xlu0 %1765
        %1767 = vrot.lane.b32.xlu0 %v845, 32
        %v1768 = vpop.permute.xlu0 %1767
        %1769 = vrot.lane.b32.xlu0 %v846, 32
        %v1770 = vpop.permute.xlu0 %1769
        %1771 = vrot.lane.b32.xlu0 %v847, 32
        %v1772 = vpop.permute.xlu0 %1771
        %1773 = vrot.lane.b32.xlu0 %v848, 32
        %v1774 = vpop.permute.xlu0 %1773
        %1775 = vrot.lane.b32.xlu0 %v849, 32
        %v1776 = vpop.permute.xlu0 %1775
        %1777 = vrot.lane.b32.xlu0 %v850, 32
        %v1778 = vpop.permute.xlu0 %1777
        %1779 = vrot.lane.b32.xlu0 %v851, 32
        %v1780 = vpop.permute.xlu0 %1779
        %1781 = vrot.lane.b32.xlu0 %v852, 32
        %v1782 = vpop.permute.xlu0 %1781
        %1783 = vrot.lane.b32.xlu0 %v853, 32
        %v1784 = vpop.permute.xlu0 %1783
        %1785 = vrot.lane.b32.xlu0 %v854, 32
        %v1786 = vpop.permute.xlu0 %1785
        %1787 = vrot.lane.b32.xlu0 %v855, 32
        %v1788 = vpop.permute.xlu0 %1787
        %1789 = vrot.lane.b32.xlu0 %v856, 32
        %v1790 = vpop.permute.xlu0 %1789
        %1791 = vrot.lane.b32.xlu0 %v857, 32
        %v1792 = vpop.permute.xlu0 %1791
        %1793 = vrot.lane.b32.xlu0 %v858, 32
        %v1794 = vpop.permute.xlu0 %1793
        %1795 = vrot.lane.b32.xlu0 %v859, 32
        %v1796 = vpop.permute.xlu0 %1795
        %vm1829 = vcmask 523520
        %1830 = vst.msk [vmem:[#allocation2 + $0x10] sm:$0xff] %vm1829, %v1734
        %1831 = vst.msk [vmem:[#allocation2 + $0x18] sm:$0xff] %vm1829, %v1736
        %1832 = vst.msk [vmem:[#allocation2 + $0x20] sm:$0xff] %vm1829, %v1738
        %1833 = vst.msk [vmem:[#allocation2 + $0x28] sm:$0xff] %vm1829, %v1740
        %1834 = vst.msk [vmem:[#allocation2 + $0x30] sm:$0xff] %vm1829, %v1742
        %1835 = vst.msk [vmem:[#allocation2 + $0x38] sm:$0xff] %vm1829, %v1744
        %1836 = vst.msk [vmem:[#allocation2 + $0x40] sm:$0xff] %vm1829, %v1746
        %1837 = vst.msk [vmem:[#allocation2 + $0x48] sm:$0xff] %vm1829, %v1748
        %1838 = vst.msk [vmem:[#allocation2 + $0x50] sm:$0xff] %vm1829, %v1750
        %1839 = vst.msk [vmem:[#allocation2 + $0x58] sm:$0xff] %vm1829, %v1752
        %1840 = vst.msk [vmem:[#allocation2 + $0x60] sm:$0xff] %vm1829, %v1754
        %1841 = vst.msk [vmem:[#allocation2 + $0x68] sm:$0xff] %vm1829, %v1756
        %1842 = vst.msk [vmem:[#allocation2 + $0x70] sm:$0xff] %vm1829, %v1758
        %1843 = vst.msk [vmem:[#allocation2 + $0x78] sm:$0xff] %vm1829, %v1760
        %1844 = vst.msk [vmem:[#allocation2 + $0x80] sm:$0xff] %vm1829, %v1762
        %1845 = vst.msk [vmem:[#allocation2 + $0x88] sm:$0xff] %vm1829, %v1764
        %1846 = vst.msk [vmem:[#allocation2 + $0x90] sm:$0xff] %vm1829, %v1766
        %1847 = vst.msk [vmem:[#allocation2 + $0x98] sm:$0xff] %vm1829, %v1768
        %1848 = vst.msk [vmem:[#allocation2 + $0xa0] sm:$0xff] %vm1829, %v1770
        %1849 = vst.msk [vmem:[#allocation2 + $0xa8] sm:$0xff] %vm1829, %v1772
        %1850 = vst.msk [vmem:[#allocation2 + $0xb0] sm:$0xff] %vm1829, %v1774
        %1851 = vst.msk [vmem:[#allocation2 + $0xb8] sm:$0xff] %vm1829, %v1776
        %1852 = vst.msk [vmem:[#allocation2 + $0xc0] sm:$0xff] %vm1829, %v1778
        %1853 = vst.msk [vmem:[#allocation2 + $0xc8] sm:$0xff] %vm1829, %v1780
        %1854 = vst.msk [vmem:[#allocation2 + $0xd0] sm:$0xff] %vm1829, %v1782
        %1855 = vst.msk [vmem:[#allocation2 + $0xd8] sm:$0xff] %vm1829, %v1784
        %1856 = vst.msk [vmem:[#allocation2 + $0xe0] sm:$0xff] %vm1829, %v1786
        %1857 = vst.msk [vmem:[#allocation2 + $0xe8] sm:$0xff] %vm1829, %v1788
        %1858 = vst.msk [vmem:[#allocation2 + $0xf0] sm:$0xff] %vm1829, %v1790
        %1859 = vst.msk [vmem:[#allocation2 + $0xf8] sm:$0xff] %vm1829, %v1792
        %1860 = vst.msk [vmem:[#allocation2 + $0x100] sm:$0xff] %vm1829, %v1794
        %1861 = vst.msk [vmem:[#allocation2 + $0x108] sm:$0xff] %vm1829, %v1796
        %1894 = vrot.lane.b32.xlu0 %v1631, 64
        %v1895 = vpop.permute.xlu0 %1894
        %1896 = vrot.lane.b32.xlu0 %v1632, 64
        %v1897 = vpop.permute.xlu0 %1896
        %1898 = vrot.lane.b32.xlu0 %v1633, 64
        %v1899 = vpop.permute.xlu0 %1898
        %1900 = vrot.lane.b32.xlu0 %v1634, 64
        %v1901 = vpop.permute.xlu0 %1900
        %1902 = vrot.lane.b32.xlu0 %v1635, 64
        %v1903 = vpop.permute.xlu0 %1902
        %1904 = vrot.lane.b32.xlu0 %v1636, 64
        %v1905 = vpop.permute.xlu0 %1904
        %1906 = vrot.lane.b32.xlu0 %v1637, 64
        %v1907 = vpop.permute.xlu0 %1906
        %1908 = vrot.lane.b32.xlu0 %v1638, 64
        %v1909 = vpop.permute.xlu0 %1908
        %1910 = vrot.lane.b32.xlu0 %v1639, 64
        %v1911 = vpop.permute.xlu0 %1910
        %1912 = vrot.lane.b32.xlu0 %v1640, 64
        %v1913 = vpop.permute.xlu0 %1912
        %1914 = vrot.lane.b32.xlu0 %v1641, 64
        %v1915 = vpop.permute.xlu0 %1914
        %1916 = vrot.lane.b32.xlu0 %v1642, 64
        %v1917 = vpop.permute.xlu0 %1916
        %1918 = vrot.lane.b32.xlu0 %v1643, 64
        %v1919 = vpop.permute.xlu0 %1918
        %1920 = vrot.lane.b32.xlu0 %v1644, 64
        %v1921 = vpop.permute.xlu0 %1920
        %1922 = vrot.lane.b32.xlu0 %v1645, 64
        %v1923 = vpop.permute.xlu0 %1922
        %1924 = vrot.lane.b32.xlu0 %v1646, 64
        %v1925 = vpop.permute.xlu0 %1924
        %1926 = vrot.lane.b32.xlu0 %v1647, 64
        %v1927 = vpop.permute.xlu0 %1926
        %1928 = vrot.lane.b32.xlu0 %v1648, 64
        %v1929 = vpop.permute.xlu0 %1928
        %1930 = vrot.lane.b32.xlu0 %v1649, 64
        %v1931 = vpop.permute.xlu0 %1930
        %1932 = vrot.lane.b32.xlu0 %v1650, 64
        %v1933 = vpop.permute.xlu0 %1932
        %1934 = vrot.lane.b32.xlu0 %v1651, 64
        %v1935 = vpop.permute.xlu0 %1934
        %1936 = vrot.lane.b32.xlu0 %v1652, 64
        %v1937 = vpop.permute.xlu0 %1936
        %1938 = vrot.lane.b32.xlu0 %v1653, 64
        %v1939 = vpop.permute.xlu0 %1938
        %1940 = vrot.lane.b32.xlu0 %v1654, 64
        %v1941 = vpop.permute.xlu0 %1940
        %1942 = vrot.lane.b32.xlu0 %v1655, 64
        %v1943 = vpop.permute.xlu0 %1942
        %1944 = vrot.lane.b32.xlu0 %v1656, 64
        %v1945 = vpop.permute.xlu0 %1944
        %1946 = vrot.lane.b32.xlu0 %v1657, 64
        %v1947 = vpop.permute.xlu0 %1946
        %1948 = vrot.lane.b32.xlu0 %v1658, 64
        %v1949 = vpop.permute.xlu0 %1948
        %1950 = vrot.lane.b32.xlu0 %v1659, 64
        %v1951 = vpop.permute.xlu0 %1950
        %1952 = vrot.lane.b32.xlu0 %v1660, 64
        %v1953 = vpop.permute.xlu0 %1952
        %1954 = vrot.lane.b32.xlu0 %v1661, 64
        %v1955 = vpop.permute.xlu0 %1954
        %1956 = vrot.lane.b32.xlu0 %v1662, 64
        %v1957 = vpop.permute.xlu0 %1956
        %vm1990 = vcmask 785920
        %1991 = vst.msk [vmem:[#allocation2 + $0x10] sm:$0xff] %vm1990, %v1895
        %1992 = vst.msk [vmem:[#allocation2 + $0x18] sm:$0xff] %vm1990, %v1897
        %1993 = vst.msk [vmem:[#allocation2 + $0x20] sm:$0xff] %vm1990, %v1899
        %1994 = vst.msk [vmem:[#allocation2 + $0x28] sm:$0xff] %vm1990, %v1901
        %1995 = vst.msk [vmem:[#allocation2 + $0x30] sm:$0xff] %vm1990, %v1903
        %1996 = vst.msk [vmem:[#allocation2 + $0x38] sm:$0xff] %vm1990, %v1905
        %1997 = vst.msk [vmem:[#allocation2 + $0x40] sm:$0xff] %vm1990, %v1907
        %1998 = vst.msk [vmem:[#allocation2 + $0x48] sm:$0xff] %vm1990, %v1909
        %1999 = vst.msk [vmem:[#allocation2 + $0x50] sm:$0xff] %vm1990, %v1911
        %2000 = vst.msk [vmem:[#allocation2 + $0x58] sm:$0xff] %vm1990, %v1913
        %2001 = vst.msk [vmem:[#allocation2 + $0x60] sm:$0xff] %vm1990, %v1915
        %2002 = vst.msk [vmem:[#allocation2 + $0x68] sm:$0xff] %vm1990, %v1917
        %2003 = vst.msk [vmem:[#allocation2 + $0x70] sm:$0xff] %vm1990, %v1919
        %2004 = vst.msk [vmem:[#allocation2 + $0x78] sm:$0xff] %vm1990, %v1921
        %2005 = vst.msk [vmem:[#allocation2 + $0x80] sm:$0xff] %vm1990, %v1923
        %2006 = vst.msk [vmem:[#allocation2 + $0x88] sm:$0xff] %vm1990, %v1925
        %2007 = vst.msk [vmem:[#allocation2 + $0x90] sm:$0xff] %vm1990, %v1927
        %2008 = vst.msk [vmem:[#allocation2 + $0x98] sm:$0xff] %vm1990, %v1929
        %2009 = vst.msk [vmem:[#allocation2 + $0xa0] sm:$0xff] %vm1990, %v1931
        %2010 = vst.msk [vmem:[#allocation2 + $0xa8] sm:$0xff] %vm1990, %v1933
        %2011 = vst.msk [vmem:[#allocation2 + $0xb0] sm:$0xff] %vm1990, %v1935
        %2012 = vst.msk [vmem:[#allocation2 + $0xb8] sm:$0xff] %vm1990, %v1937
        %2013 = vst.msk [vmem:[#allocation2 + $0xc0] sm:$0xff] %vm1990, %v1939
        %2014 = vst.msk [vmem:[#allocation2 + $0xc8] sm:$0xff] %vm1990, %v1941
        %2015 = vst.msk [vmem:[#allocation2 + $0xd0] sm:$0xff] %vm1990, %v1943
        %2016 = vst.msk [vmem:[#allocation2 + $0xd8] sm:$0xff] %vm1990, %v1945
        %2017 = vst.msk [vmem:[#allocation2 + $0xe0] sm:$0xff] %vm1990, %v1947
        %2018 = vst.msk [vmem:[#allocation2 + $0xe8] sm:$0xff] %vm1990, %v1949
        %2019 = vst.msk [vmem:[#allocation2 + $0xf0] sm:$0xff] %vm1990, %v1951
        %2020 = vst.msk [vmem:[#allocation2 + $0xf8] sm:$0xff] %vm1990, %v1953
        %2021 = vst.msk [vmem:[#allocation2 + $0x100] sm:$0xff] %vm1990, %v1955
        %2022 = vst.msk [vmem:[#allocation2 + $0x108] sm:$0xff] %vm1990, %v1957
        %v2023 = vld [vmem:[#allocation13] sm:$0x1]
        %v2025 = vlaneseq
        %v2026 = vshrl.u32 %v2025, 7
        %v2027 = vsub.s32 0, %v2026
        %v2028 = vrot.slane %v2023, %v2027
        %v2030 = vadd.f32 %v2028, 0.0
        %v2031 = vld [vmem:[#allocation2] sm:$0xff]
        %v2032 = vld [vmem:[#allocation2 + $0x8] sm:$0xff]
        %v2033 = vld [vmem:[#allocation2 + $0x10] sm:$0xff]
        %v2034 = vld [vmem:[#allocation2 + $0x18] sm:$0xff]
        %v2035 = vld [vmem:[#allocation2 + $0x20] sm:$0xff]
        %v2036 = vld [vmem:[#allocation2 + $0x28] sm:$0xff]
        %v2037 = vld [vmem:[#allocation2 + $0x30] sm:$0xff]
        %v2038 = vld [vmem:[#allocation2 + $0x38] sm:$0xff]
        %v2039 = vld [vmem:[#allocation2 + $0x40] sm:$0xff]
        %v2040 = vld [vmem:[#allocation2 + $0x48] sm:$0xff]
        %v2041 = vld [vmem:[#allocation2 + $0x50] sm:$0xff]
        %v2042 = vld [vmem:[#allocation2 + $0x58] sm:$0xff]
        %v2043 = vld [vmem:[#allocation2 + $0x60] sm:$0xff]
        %v2044 = vld [vmem:[#allocation2 + $0x68] sm:$0xff]
        %v2045 = vld [vmem:[#allocation2 + $0x70] sm:$0xff]
        %v2046 = vld [vmem:[#allocation2 + $0x78] sm:$0xff]
        %v2047 = vld [vmem:[#allocation2 + $0x80] sm:$0xff]
        %v2048 = vld [vmem:[#allocation2 + $0x88] sm:$0xff]
        %v2049 = vld [vmem:[#allocation2 + $0x90] sm:$0xff]
        %v2050 = vld [vmem:[#allocation2 + $0x98] sm:$0xff]
        %v2051 = vld [vmem:[#allocation2 + $0xa0] sm:$0xff]
        %v2052 = vld [vmem:[#allocation2 + $0xa8] sm:$0xff]
        %v2053 = vld [vmem:[#allocation2 + $0xb0] sm:$0xff]
        %v2054 = vld [vmem:[#allocation2 + $0xb8] sm:$0xff]
        %v2055 = vld [vmem:[#allocation2 + $0xc0] sm:$0xff]
        %v2056 = vld [vmem:[#allocation2 + $0xc8] sm:$0xff]
        %v2057 = vld [vmem:[#allocation2 + $0xd0] sm:$0xff]
        %v2058 = vld [vmem:[#allocation2 + $0xd8] sm:$0xff]
        %v2059 = vld [vmem:[#allocation2 + $0xe0] sm:$0xff]
        %v2060 = vld [vmem:[#allocation2 + $0xe8] sm:$0xff]
        %v2061 = vld [vmem:[#allocation2 + $0xf0] sm:$0xff]
        %v2062 = vld [vmem:[#allocation2 + $0xf8] sm:$0xff]
        %v2063 = vld [vmem:[#allocation11] sm:$0xff]
        %v2064 = vld [vmem:[#allocation11 + $0x8] sm:$0xff]
        %v2065 = vld [vmem:[#allocation11 + $0x10] sm:$0xff]
        %v2066 = vld [vmem:[#allocation11 + $0x18] sm:$0xff]
        %v2067 = vld [vmem:[#allocation11 + $0x20] sm:$0xff]
        %v2068 = vld [vmem:[#allocation11 + $0x28] sm:$0xff]
        %v2069 = vld [vmem:[#allocation11 + $0x30] sm:$0xff]
        %v2070 = vld [vmem:[#allocation11 + $0x38] sm:$0xff]
        %v2071 = vld [vmem:[#allocation11 + $0x40] sm:$0xff]
        %v2072 = vld [vmem:[#allocation11 + $0x48] sm:$0xff]
        %v2073 = vld [vmem:[#allocation11 + $0x50] sm:$0xff]
        %v2074 = vld [vmem:[#allocation11 + $0x58] sm:$0xff]
        %v2076 = vsel %vm1663, %v2031, 0
        %v2079 = vsel %vm1663, %v2032, 0
        %v2082 = vsel %vm1663, %v2033, 0
        %v2085 = vsel %vm1663, %v2034, 0
        %v2088 = vsel %vm1663, %v2035, 0
        %v2091 = vsel %vm1663, %v2036, 0
        %v2094 = vsel %vm1663, %v2037, 0
        %v2097 = vsel %vm1663, %v2038, 0
        %v2100 = vsel %vm1663, %v2039, 0
        %v2103 = vsel %vm1663, %v2040, 0
        %v2106 = vsel %vm1663, %v2041, 0
        %v2109 = vsel %vm1663, %v2042, 0
        %v2112 = vsel %vm1663, %v2043, 0
        %v2115 = vsel %vm1663, %v2044, 0
        %v2118 = vsel %vm1663, %v2045, 0
        %v2121 = vsel %vm1663, %v2046, 0
        %v2124 = vsel %vm1663, %v2047, 0
        %v2127 = vsel %vm1663, %v2048, 0
        %v2130 = vsel %vm1663, %v2049, 0
        %v2133 = vsel %vm1663, %v2050, 0
        %v2136 = vsel %vm1663, %v2051, 0
        %v2139 = vsel %vm1663, %v2052, 0
        %v2142 = vsel %vm1663, %v2053, 0
        %v2145 = vsel %vm1663, %v2054, 0
        %v2148 = vsel %vm1663, %v2055, 0
        %v2151 = vsel %vm1663, %v2056, 0
        %v2154 = vsel %vm1663, %v2057, 0
        %v2157 = vsel %vm1663, %v2058, 0
        %v2160 = vsel %vm1663, %v2059, 0
        %v2163 = vsel %vm1663, %v2060, 0
        %v2166 = vsel %vm1663, %v2061, 0
        %v2169 = vsel %vm1663, %v2062, 0
        %2171 = vmatprep.subr.mxu0 0.0
        %2172 = vmatpush1.msra.mxu0 %v2063
        %2173 = vmatprep.subr.mxu0 0.0
        %2174 = vmatpush1.msra.mxu0 %v2064
        %2175 = vmatprep.subr.mxu0 0.0
        %2176 = vmatpush1.msra.mxu0 %v2065
        %2177 = vmatprep.subr.mxu0 0.0
        %2178 = vmatpush1.msra.mxu0 %v2066
        %2179 = vmatprep.subr.mxu0 0.0
        %2180 = vmatpush1.msra.mxu0 %v2067
        %2181 = vmatprep.subr.mxu0 0.0
        %2182 = vmatpush1.msra.mxu0 %v2068
        %2183 = vmatprep.subr.mxu0 0.0
        %2184 = vmatpush1.msra.mxu0 %v2069
        %2185 = vmatprep.subr.mxu0 0.0
        %2186 = vmatpush1.msra.mxu0 %v2070
        %2187 = vmatprep.subr.mxu0 0.0
        %2188 = vmatpush1.msra.mxu0 %v2071
        %2189 = vmatprep.subr.mxu0 0.0
        %2190 = vmatpush1.msra.mxu0 %v2072
        %2191 = vmatprep.subr.mxu0 0.0
        %2192 = vmatpush1.msra.mxu0 %v2073
        %2193 = vmatprep.subr.mxu0 0.0
        %2194 = vmatpush1.msra.mxu0 %v2074
        %2195 = vmatprep.subr.mxu0 0.0
        %2196 = vmatpush1.msra.mxu0 0.0
        %2197 = vmatprep.subr.mxu0 0.0
        %2198 = vmatpush1.msra.mxu0 0.0
        %2199 = vmatprep.subr.mxu0 0.0
        %2200 = vmatpush1.msra.mxu0 0.0
        %2201 = vmatprep.subr.mxu0 0.0
        %2202 = vmatpush1.msra.mxu0 0.0
        %2203 = vmatprep.subr.mxu0 0.0
        %2204 = vmatpush1.msra.mxu0 0.0
        %2205 = vmatprep.subr.mxu0 0.0
        %2206 = vmatpush1.msra.mxu0 0.0
        %2207 = vmatprep.subr.mxu0 0.0
        %2208 = vmatpush1.msra.mxu0 0.0
        %2209 = vmatprep.subr.mxu0 0.0
        %2210 = vmatpush1.msra.mxu0 0.0
        %2211 = vmatprep.subr.mxu0 0.0
        %2212 = vmatpush1.msra.mxu0 0.0
        %2213 = vmatprep.subr.mxu0 0.0
        %2214 = vmatpush1.msra.mxu0 0.0
        %2215 = vmatprep.subr.mxu0 0.0
        %2216 = vmatpush1.msra.mxu0 0.0
        %2217 = vmatprep.subr.mxu0 0.0
        %2218 = vmatpush1.msra.mxu0 0.0
        %2219 = vmatprep.subr.mxu0 0.0
        %2220 = vmatpush1.msra.mxu0 0.0
        %2221 = vmatprep.subr.mxu0 0.0
        %2222 = vmatpush1.msra.mxu0 0.0
        %2223 = vmatprep.subr.mxu0 0.0
        %2224 = vmatpush1.msra.mxu0 0.0
        %2225 = vmatprep.subr.mxu0 0.0
        %2226 = vmatpush1.msra.mxu0 0.0
        %2227 = vmatprep.subr.mxu0 0.0
        %2228 = vmatpush1.msra.mxu0 0.0
        %2229 = vmatprep.subr.mxu0 0.0
        %2230 = vmatpush1.msra.mxu0 0.0
        %2231 = vmatprep.subr.mxu0 0.0
        %2232 = vmatpush1.msra.mxu0 0.0
        %2233 = vmatprep.subr.mxu0 0.0
        %2234 = vmatpush1.msra.mxu0 0.0
        %2235 = vmatprep.mubr.f32.mxu0 0.0
        %2236 = vmatmul.mubr.f32.gmra.mrb[0].mxu0 %v2076
        %v2237 = vpop.f32.mrb[0].mxu0
        %v2238 = vadd.f32 0.0, %v2237
        %v2239 = vpop.f32.mrb[0].mxu0
        %2240 = vmatprep.mubr.f32.mxu0 0.0
        %2241 = vmatmul.mubr.f32.gmra.mrb[0].mxu0 %v2079
        %v2242 = vpop.f32.mrb[0].mxu0
        %v2243 = vadd.f32 0.0, %v2242
        %v2244 = vpop.f32.mrb[0].mxu0
        %2245 = vmatprep.mubr.f32.mxu0 0.0
        %2246 = vmatmul.mubr.f32.gmra.mrb[0].mxu0 %v2082
        %v2247 = vpop.f32.mrb[0].mxu0
        %v2248 = vadd.f32 0.0, %v2247
        %v2249 = vpop.f32.mrb[0].mxu0
        %2250 = vmatprep.mubr.f32.mxu0 0.0
        %2251 = vmatmul.mubr.f32.gmra.mrb[0].mxu0 %v2085
        %v2252 = vpop.f32.mrb[0].mxu0
        %v2253 = vadd.f32 0.0, %v2252
        %v2254 = vpop.f32.mrb[0].mxu0
        %2255 = vmatprep.mubr.f32.mxu0 0.0
        %2256 = vmatmul.mubr.f32.gmra.mrb[0].mxu0 %v2088
        %v2257 = vpop.f32.mrb[0].mxu0
        %v2258 = vadd.f32 0.0, %v2257
        %v2259 = vpop.f32.mrb[0].mxu0
        %2260 = vmatprep.mubr.f32.mxu0 0.0
        %2261 = vmatmul.mubr.f32.gmra.mrb[0].mxu0 %v2091
        %v2262 = vpop.f32.mrb[0].mxu0
        %v2263 = vadd.f32 0.0, %v2262
        %v2264 = vpop.f32.mrb[0].mxu0
        %2265 = vmatprep.mubr.f32.mxu0 0.0
        %2266 = vmatmul.mubr.f32.gmra.mrb[0].mxu0 %v2094
        %v2267 = vpop.f32.mrb[0].mxu0
        %v2268 = vadd.f32 0.0, %v2267
        %v2269 = vpop.f32.mrb[0].mxu0
        %2270 = vmatprep.mubr.f32.mxu0 0.0
        %2271 = vmatmul.mubr.f32.gmra.mrb[0].mxu0 %v2097
        %v2272 = vpop.f32.mrb[0].mxu0
        %v2273 = vadd.f32 0.0, %v2272
        %v2274 = vpop.f32.mrb[0].mxu0
        %2275 = vmatprep.mubr.f32.mxu0 0.0
        %2276 = vmatmul.mubr.f32.gmra.mrb[0].mxu0 %v2100
        %v2277 = vpop.f32.mrb[0].mxu0
        %v2278 = vadd.f32 0.0, %v2277
        %v2279 = vpop.f32.mrb[0].mxu0
        %2280 = vmatprep.mubr.f32.mxu0 0.0
        %2281 = vmatmul.mubr.f32.gmra.mrb[0].mxu0 %v2103
        %v2282 = vpop.f32.mrb[0].mxu0
        %v2283 = vadd.f32 0.0, %v2282
        %v2284 = vpop.f32.mrb[0].mxu0
        %2285 = vmatprep.mubr.f32.mxu0 0.0
        %2286 = vmatmul.mubr.f32.gmra.mrb[0].mxu0 %v2106
        %v2287 = vpop.f32.mrb[0].mxu0
        %v2288 = vadd.f32 0.0, %v2287
        %v2289 = vpop.f32.mrb[0].mxu0
        %2290 = vmatprep.mubr.f32.mxu0 0.0
        %2291 = vmatmul.mubr.f32.gmra.mrb[0].mxu0 %v2109
        %v2292 = vpop.f32.mrb[0].mxu0
        %v2293 = vadd.f32 0.0, %v2292
        %v2294 = vpop.f32.mrb[0].mxu0
        %2295 = vmatprep.mubr.f32.mxu0 0.0
        %2296 = vmatmul.mubr.f32.gmra.mrb[0].mxu0 %v2112
        %v2297 = vpop.f32.mrb[0].mxu0
        %v2298 = vadd.f32 0.0, %v2297
        %v2299 = vpop.f32.mrb[0].mxu0
        %2300 = vmatprep.mubr.f32.mxu0 0.0
        %2301 = vmatmul.mubr.f32.gmra.mrb[0].mxu0 %v2115
        %v2302 = vpop.f32.mrb[0].mxu0
        %v2303 = vadd.f32 0.0, %v2302
        %v2304 = vpop.f32.mrb[0].mxu0
        %2305 = vmatprep.mubr.f32.mxu0 0.0
        %2306 = vmatmul.mubr.f32.gmra.mrb[0].mxu0 %v2118
        %v2307 = vpop.f32.mrb[0].mxu0
        %v2308 = vadd.f32 0.0, %v2307
        %v2309 = vpop.f32.mrb[0].mxu0
        %2310 = vmatprep.mubr.f32.mxu0 0.0
        %2311 = vmatmul.mubr.f32.gmra.mrb[0].mxu0 %v2121
        %v2312 = vpop.f32.mrb[0].mxu0
        %v2313 = vadd.f32 0.0, %v2312
        %v2314 = vpop.f32.mrb[0].mxu0
        %2315 = vmatprep.mubr.f32.mxu0 0.0
        %2316 = vmatmul.mubr.f32.gmra.mrb[0].mxu0 %v2124
        %v2317 = vpop.f32.mrb[0].mxu0
        %v2318 = vadd.f32 0.0, %v2317
        %v2319 = vpop.f32.mrb[0].mxu0
        %2320 = vmatprep.mubr.f32.mxu0 0.0
        %2321 = vmatmul.mubr.f32.gmra.mrb[0].mxu0 %v2127
        %v2322 = vpop.f32.mrb[0].mxu0
        %v2323 = vadd.f32 0.0, %v2322
        %v2324 = vpop.f32.mrb[0].mxu0
        %2325 = vmatprep.mubr.f32.mxu0 0.0
        %2326 = vmatmul.mubr.f32.gmra.mrb[0].mxu0 %v2130
        %v2327 = vpop.f32.mrb[0].mxu0
        %v2328 = vadd.f32 0.0, %v2327
        %v2329 = vpop.f32.mrb[0].mxu0
        %2330 = vmatprep.mubr.f32.mxu0 0.0
        %2331 = vmatmul.mubr.f32.gmra.mrb[0].mxu0 %v2133
        %v2332 = vpop.f32.mrb[0].mxu0
        %v2333 = vadd.f32 0.0, %v2332
        %v2334 = vpop.f32.mrb[0].mxu0
        %2335 = vmatprep.mubr.f32.mxu0 0.0
        %2336 = vmatmul.mubr.f32.gmra.mrb[0].mxu0 %v2136
        %v2337 = vpop.f32.mrb[0].mxu0
        %v2338 = vadd.f32 0.0, %v2337
        %v2339 = vpop.f32.mrb[0].mxu0
        %2340 = vmatprep.mubr.f32.mxu0 0.0
        %2341 = vmatmul.mubr.f32.gmra.mrb[0].mxu0 %v2139
        %v2342 = vpop.f32.mrb[0].mxu0
        %v2343 = vadd.f32 0.0, %v2342
        %v2344 = vpop.f32.mrb[0].mxu0
        %2345 = vmatprep.mubr.f32.mxu0 0.0
        %2346 = vmatmul.mubr.f32.gmra.mrb[0].mxu0 %v2142
        %v2347 = vpop.f32.mrb[0].mxu0
        %v2348 = vadd.f32 0.0, %v2347
        %v2349 = vpop.f32.mrb[0].mxu0
        %2350 = vmatprep.mubr.f32.mxu0 0.0
        %2351 = vmatmul.mubr.f32.gmra.mrb[0].mxu0 %v2145
        %v2352 = vpop.f32.mrb[0].mxu0
        %v2353 = vadd.f32 0.0, %v2352
        %v2354 = vpop.f32.mrb[0].mxu0
        %2355 = vmatprep.mubr.f32.mxu0 0.0
        %2356 = vmatmul.mubr.f32.gmra.mrb[0].mxu0 %v2148
        %v2357 = vpop.f32.mrb[0].mxu0
        %v2358 = vadd.f32 0.0, %v2357
        %v2359 = vpop.f32.mrb[0].mxu0
        %2360 = vmatprep.mubr.f32.mxu0 0.0
        %2361 = vmatmul.mubr.f32.gmra.mrb[0].mxu0 %v2151
        %v2362 = vpop.f32.mrb[0].mxu0
        %v2363 = vadd.f32 0.0, %v2362
        %v2364 = vpop.f32.mrb[0].mxu0
        %2365 = vmatprep.mubr.f32.mxu0 0.0
        %2366 = vmatmul.mubr.f32.gmra.mrb[0].mxu0 %v2154
        %v2367 = vpop.f32.mrb[0].mxu0
        %v2368 = vadd.f32 0.0, %v2367
        %v2369 = vpop.f32.mrb[0].mxu0
        %2370 = vmatprep.mubr.f32.mxu0 0.0
        %2371 = vmatmul.mubr.f32.gmra.mrb[0].mxu0 %v2157
        %v2372 = vpop.f32.mrb[0].mxu0
        %v2373 = vadd.f32 0.0, %v2372
        %v2374 = vpop.f32.mrb[0].mxu0
        %2375 = vmatprep.mubr.f32.mxu0 0.0
        %2376 = vmatmul.mubr.f32.gmra.mrb[0].mxu0 %v2160
        %v2377 = vpop.f32.mrb[0].mxu0
        %v2378 = vadd.f32 0.0, %v2377
        %v2379 = vpop.f32.mrb[0].mxu0
        %2380 = vmatprep.mubr.f32.mxu0 0.0
        %2381 = vmatmul.mubr.f32.gmra.mrb[0].mxu0 %v2163
        %v2382 = vpop.f32.mrb[0].mxu0
        %v2383 = vadd.f32 0.0, %v2382
        %v2384 = vpop.f32.mrb[0].mxu0
        %2385 = vmatprep.mubr.f32.mxu0 0.0
        %2386 = vmatmul.mubr.f32.gmra.mrb[0].mxu0 %v2166
        %v2387 = vpop.f32.mrb[0].mxu0
        %v2388 = vadd.f32 0.0, %v2387
        %v2389 = vpop.f32.mrb[0].mxu0
        %2390 = vmatprep.mubr.f32.mxu0 0.0
        %2391 = vmatmul.mubr.f32.gmra.mrb[0].mxu0 %v2169
        %v2392 = vpop.f32.mrb[0].mxu0
        %v2393 = vadd.f32 0.0, %v2392
        %v2394 = vpop.f32.mrb[0].mxu0
        %2395 = vdwg.mxu0
        %v2396 = vadd.f32 %v2030, %v2238
        %v2397 = vadd.f32 %v2030, %v2243
        %v2398 = vadd.f32 %v2030, %v2248
        %v2399 = vadd.f32 %v2030, %v2253
        %v2400 = vadd.f32 %v2030, %v2258
        %v2401 = vadd.f32 %v2030, %v2263
        %v2402 = vadd.f32 %v2030, %v2268
        %v2403 = vadd.f32 %v2030, %v2273
        %v2404 = vadd.f32 %v2030, %v2278
        %v2405 = vadd.f32 %v2030, %v2283
        %v2406 = vadd.f32 %v2030, %v2288
        %v2407 = vadd.f32 %v2030, %v2293
        %v2408 = vadd.f32 %v2030, %v2298
        %v2409 = vadd.f32 %v2030, %v2303
        %v2410 = vadd.f32 %v2030, %v2308
        %v2411 = vadd.f32 %v2030, %v2313
        %v2412 = vadd.f32 %v2030, %v2318
        %v2413 = vadd.f32 %v2030, %v2323
        %v2414 = vadd.f32 %v2030, %v2328
        %v2415 = vadd.f32 %v2030, %v2333
        %v2416 = vadd.f32 %v2030, %v2338
        %v2417 = vadd.f32 %v2030, %v2343
        %v2418 = vadd.f32 %v2030, %v2348
        %v2419 = vadd.f32 %v2030, %v2353
        %v2420 = vadd.f32 %v2030, %v2358
        %v2421 = vadd.f32 %v2030, %v2363
        %v2422 = vadd.f32 %v2030, %v2368
        %v2423 = vadd.f32 %v2030, %v2373
        %v2424 = vadd.f32 %v2030, %v2378
        %v2425 = vadd.f32 %v2030, %v2383
        %v2426 = vadd.f32 %v2030, %v2388
        %v2427 = vadd.f32 %v2030, %v2393
        %v2428 = vld [vmem:[#allocation2 + $0x10] sm:$0xff]
        %v2429 = vld [vmem:[#allocation2 + $0x18] sm:$0xff]
        %v2430 = vld [vmem:[#allocation2 + $0x20] sm:$0xff]
        %v2431 = vld [vmem:[#allocation2 + $0x28] sm:$0xff]
        %v2432 = vld [vmem:[#allocation2 + $0x30] sm:$0xff]
        %v2433 = vld [vmem:[#allocation2 + $0x38] sm:$0xff]
        %v2434 = vld [vmem:[#allocation2 + $0x40] sm:$0xff]
        %v2435 = vld [vmem:[#allocation2 + $0x48] sm:$0xff]
        %v2436 = vld [vmem:[#allocation2 + $0x50] sm:$0xff]
        %v2437 = vld [vmem:[#allocation2 + $0x58] sm:$0xff]
        %v2438 = vld [vmem:[#allocation2 + $0x60] sm:$0xff]
        %v2439 = vld [vmem:[#allocation2 + $0x68] sm:$0xff]
        %v2440 = vld [vmem:[#allocation2 + $0x70] sm:$0xff]
        %v2441 = vld [vmem:[#allocation2 + $0x78] sm:$0xff]
        %v2442 = vld [vmem:[#allocation2 + $0x80] sm:$0xff]
        %v2443 = vld [vmem:[#allocation2 + $0x88] sm:$0xff]
        %v2444 = vld [vmem:[#allocation2 + $0x90] sm:$0xff]
        %v2445 = vld [vmem:[#allocation2 + $0x98] sm:$0xff]
        %v2446 = vld [vmem:[#allocation2 + $0xa0] sm:$0xff]
        %v2447 = vld [vmem:[#allocation2 + $0xa8] sm:$0xff]
        %v2448 = vld [vmem:[#allocation2 + $0xb0] sm:$0xff]
        %v2449 = vld [vmem:[#allocation2 + $0xb8] sm:$0xff]
        %v2450 = vld [vmem:[#allocation2 + $0xc0] sm:$0xff]
        %v2451 = vld [vmem:[#allocation2 + $0xc8] sm:$0xff]
        %v2452 = vld [vmem:[#allocation2 + $0xd0] sm:$0xff]
        %v2453 = vld [vmem:[#allocation2 + $0xd8] sm:$0xff]
        %v2454 = vld [vmem:[#allocation2 + $0xe0] sm:$0xff]
        %v2455 = vld [vmem:[#allocation2 + $0xe8] sm:$0xff]
        %v2456 = vld [vmem:[#allocation2 + $0xf0] sm:$0xff]
        %v2457 = vld [vmem:[#allocation2 + $0xf8] sm:$0xff]
        %v2458 = vld [vmem:[#allocation2 + $0x100] sm:$0xff]
        %v2459 = vld [vmem:[#allocation2 + $0x108] sm:$0xff]
        %s2460 = scalar_lea.vmem [#allocation11], 96
        %v2461 = vld [vmem:[%s2460] sm:$0xff]
        %v2462 = vld [vmem:[%s2460 + $0x8] sm:$0xff]
        %v2463 = vld [vmem:[%s2460 + $0x10] sm:$0xff]
        %v2464 = vld [vmem:[%s2460 + $0x18] sm:$0xff]
        %v2465 = vld [vmem:[%s2460 + $0x20] sm:$0xff]
        %v2466 = vld [vmem:[%s2460 + $0x28] sm:$0xff]
        %v2467 = vld [vmem:[%s2460 + $0x30] sm:$0xff]
        %v2468 = vld [vmem:[%s2460 + $0x38] sm:$0xff]
        %v2469 = vld [vmem:[%s2460 + $0x40] sm:$0xff]
        %v2470 = vld [vmem:[%s2460 + $0x48] sm:$0xff]
        %v2471 = vld [vmem:[%s2460 + $0x50] sm:$0xff]
        %v2472 = vld [vmem:[%s2460 + $0x58] sm:$0xff]
        %v2474 = vsel %vm1663, %v2428, 0
        %v2477 = vsel %vm1663, %v2429, 0
        %v2480 = vsel %vm1663, %v2430, 0
        %v2483 = vsel %vm1663, %v2431, 0
        %v2486 = vsel %vm1663, %v2432, 0
        %v2489 = vsel %vm1663, %v2433, 0
        %v2492 = vsel %vm1663, %v2434, 0
        %v2495 = vsel %vm1663, %v2435, 0
        %v2498 = vsel %vm1663, %v2436, 0
        %v2501 = vsel %vm1663, %v2437, 0
        %v2504 = vsel %vm1663, %v2438, 0
        %v2507 = vsel %vm1663, %v2439, 0
        %v2510 = vsel %vm1663, %v2440, 0
        %v2513 = vsel %vm1663, %v2441, 0
        %v2516 = vsel %vm1663, %v2442, 0
        %v2519 = vsel %vm1663, %v2443, 0
        %v2522 = vsel %vm1663, %v2444, 0
        %v2525 = vsel %vm1663, %v2445, 0
        %v2528 = vsel %vm1663, %v2446, 0
        %v2531 = vsel %vm1663, %v2447, 0
        %v2534 = vsel %vm1663, %v2448, 0
        %v2537 = vsel %vm1663, %v2449, 0
        %v2540 = vsel %vm1663, %v2450, 0
        %v2543 = vsel %vm1663, %v2451, 0
        %v2546 = vsel %vm1663, %v2452, 0
        %v2549 = vsel %vm1663, %v2453, 0
        %v2552 = vsel %vm1663, %v2454, 0
        %v2555 = vsel %vm1663, %v2455, 0
        %v2558 = vsel %vm1663, %v2456, 0
        %v2561 = vsel %vm1663, %v2457, 0
        %v2564 = vsel %vm1663, %v2458, 0
        %v2567 = vsel %vm1663, %v2459, 0
        %2569 = vmatprep.subr.mxu0 0.0
        %2570 = vmatpush1.msra.mxu0 %v2461
        %2571 = vmatprep.subr.mxu0 0.0
        %2572 = vmatpush1.msra.mxu0 %v2462
        %2573 = vmatprep.subr.mxu0 0.0
        %2574 = vmatpush1.msra.mxu0 %v2463
        %2575 = vmatprep.subr.mxu0 0.0
        %2576 = vmatpush1.msra.mxu0 %v2464
        %2577 = vmatprep.subr.mxu0 0.0
        %2578 = vmatpush1.msra.mxu0 %v2465
        %2579 = vmatprep.subr.mxu0 0.0
        %2580 = vmatpush1.msra.mxu0 %v2466
        %2581 = vmatprep.subr.mxu0 0.0
        %2582 = vmatpush1.msra.mxu0 %v2467
        %2583 = vmatprep.subr.mxu0 0.0
        %2584 = vmatpush1.msra.mxu0 %v2468
        %2585 = vmatprep.subr.mxu0 0.0
        %2586 = vmatpush1.msra.mxu0 %v2469
        %2587 = vmatprep.subr.mxu0 0.0
        %2588 = vmatpush1.msra.mxu0 %v2470
        %2589 = vmatprep.subr.mxu0 0.0
        %2590 = vmatpush1.msra.mxu0 %v2471
        %2591 = vmatprep.subr.mxu0 0.0
        %2592 = vmatpush1.msra.mxu0 %v2472
        %2593 = vmatprep.subr.mxu0 0.0
        %2594 = vmatpush1.msra.mxu0 0.0
        %2595 = vmatprep.subr.mxu0 0.0
        %2596 = vmatpush1.msra.mxu0 0.0
        %2597 = vmatprep.subr.mxu0 0.0
        %2598 = vmatpush1.msra.mxu0 0.0
        %2599 = vmatprep.subr.mxu0 0.0
        %2600 = vmatpush1.msra.mxu0 0.0
        %2601 = vmatprep.subr.mxu0 0.0
        %2602 = vmatpush1.msra.mxu0 0.0
        %2603 = vmatprep.subr.mxu0 0.0
        %2604 = vmatpush1.msra.mxu0 0.0
        %2605 = vmatprep.subr.mxu0 0.0
        %2606 = vmatpush1.msra.mxu0 0.0
        %2607 = vmatprep.subr.mxu0 0.0
        %2608 = vmatpush1.msra.mxu0 0.0
        %2609 = vmatprep.subr.mxu0 0.0
        %2610 = vmatpush1.msra.mxu0 0.0
        %2611 = vmatprep.subr.mxu0 0.0
        %2612 = vmatpush1.msra.mxu0 0.0
        %2613 = vmatprep.subr.mxu0 0.0
        %2614 = vmatpush1.msra.mxu0 0.0
        %2615 = vmatprep.subr.mxu0 0.0
        %2616 = vmatpush1.msra.mxu0 0.0
        %2617 = vmatprep.subr.mxu0 0.0
        %2618 = vmatpush1.msra.mxu0 0.0
        %2619 = vmatprep.subr.mxu0 0.0
        %2620 = vmatpush1.msra.mxu0 0.0
        %2621 = vmatprep.subr.mxu0 0.0
        %2622 = vmatpush1.msra.mxu0 0.0
        %2623 = vmatprep.subr.mxu0 0.0
        %2624 = vmatpush1.msra.mxu0 0.0
        %2625 = vmatprep.subr.mxu0 0.0
        %2626 = vmatpush1.msra.mxu0 0.0
        %2627 = vmatprep.subr.mxu0 0.0
        %2628 = vmatpush1.msra.mxu0 0.0
        %2629 = vmatprep.subr.mxu0 0.0
        %2630 = vmatpush1.msra.mxu0 0.0
        %2631 = vmatprep.subr.mxu0 0.0
        %2632 = vmatpush1.msra.mxu0 0.0
        %2633 = vmatprep.mubr.f32.mxu0 0.0
        %2634 = vmatmul.mubr.f32.gmra.mrb[0].mxu0 %v2474
        %v2635 = vpop.f32.mrb[0].mxu0
        %v2636 = vadd.f32 0.0, %v2635
        %v2637 = vpop.f32.mrb[0].mxu0
        %2638 = vmatprep.mubr.f32.mxu0 0.0
        %2639 = vmatmul.mubr.f32.gmra.mrb[0].mxu0 %v2477
        %v2640 = vpop.f32.mrb[0].mxu0
        %v2641 = vadd.f32 0.0, %v2640
        %v2642 = vpop.f32.mrb[0].mxu0
        %2643 = vmatprep.mubr.f32.mxu0 0.0
        %2644 = vmatmul.mubr.f32.gmra.mrb[0].mxu0 %v2480
        %v2645 = vpop.f32.mrb[0].mxu0
        %v2646 = vadd.f32 0.0, %v2645
        %v2647 = vpop.f32.mrb[0].mxu0
        %2648 = vmatprep.mubr.f32.mxu0 0.0
        %2649 = vmatmul.mubr.f32.gmra.mrb[0].mxu0 %v2483
        %v2650 = vpop.f32.mrb[0].mxu0
        %v2651 = vadd.f32 0.0, %v2650
        %v2652 = vpop.f32.mrb[0].mxu0
        %2653 = vmatprep.mubr.f32.mxu0 0.0
        %2654 = vmatmul.mubr.f32.gmra.mrb[0].mxu0 %v2486
        %v2655 = vpop.f32.mrb[0].mxu0
        %v2656 = vadd.f32 0.0, %v2655
        %v2657 = vpop.f32.mrb[0].mxu0
        %2658 = vmatprep.mubr.f32.mxu0 0.0
        %2659 = vmatmul.mubr.f32.gmra.mrb[0].mxu0 %v2489
        %v2660 = vpop.f32.mrb[0].mxu0
        %v2661 = vadd.f32 0.0, %v2660
        %v2662 = vpop.f32.mrb[0].mxu0
        %2663 = vmatprep.mubr.f32.mxu0 0.0
        %2664 = vmatmul.mubr.f32.gmra.mrb[0].mxu0 %v2492
        %v2665 = vpop.f32.mrb[0].mxu0
        %v2666 = vadd.f32 0.0, %v2665
        %v2667 = vpop.f32.mrb[0].mxu0
        %2668 = vmatprep.mubr.f32.mxu0 0.0
        %2669 = vmatmul.mubr.f32.gmra.mrb[0].mxu0 %v2495
        %v2670 = vpop.f32.mrb[0].mxu0
        %v2671 = vadd.f32 0.0, %v2670
        %v2672 = vpop.f32.mrb[0].mxu0
        %2673 = vmatprep.mubr.f32.mxu0 0.0
        %2674 = vmatmul.mubr.f32.gmra.mrb[0].mxu0 %v2498
        %v2675 = vpop.f32.mrb[0].mxu0
        %v2676 = vadd.f32 0.0, %v2675
        %v2677 = vpop.f32.mrb[0].mxu0
        %2678 = vmatprep.mubr.f32.mxu0 0.0
        %2679 = vmatmul.mubr.f32.gmra.mrb[0].mxu0 %v2501
        %v2680 = vpop.f32.mrb[0].mxu0
        %v2681 = vadd.f32 0.0, %v2680
        %v2682 = vpop.f32.mrb[0].mxu0
        %2683 = vmatprep.mubr.f32.mxu0 0.0
        %2684 = vmatmul.mubr.f32.gmra.mrb[0].mxu0 %v2504
        %v2685 = vpop.f32.mrb[0].mxu0
        %v2686 = vadd.f32 0.0, %v2685
        %v2687 = vpop.f32.mrb[0].mxu0
        %2688 = vmatprep.mubr.f32.mxu0 0.0
        %2689 = vmatmul.mubr.f32.gmra.mrb[0].mxu0 %v2507
        %v2690 = vpop.f32.mrb[0].mxu0
        %v2691 = vadd.f32 0.0, %v2690
        %v2692 = vpop.f32.mrb[0].mxu0
        %2693 = vmatprep.mubr.f32.mxu0 0.0
        %2694 = vmatmul.mubr.f32.gmra.mrb[0].mxu0 %v2510
        %v2695 = vpop.f32.mrb[0].mxu0
        %v2696 = vadd.f32 0.0, %v2695
        %v2697 = vpop.f32.mrb[0].mxu0
        %2698 = vmatprep.mubr.f32.mxu0 0.0
        %2699 = vmatmul.mubr.f32.gmra.mrb[0].mxu0 %v2513
        %v2700 = vpop.f32.mrb[0].mxu0
        %v2701 = vadd.f32 0.0, %v2700
        %v2702 = vpop.f32.mrb[0].mxu0
        %2703 = vmatprep.mubr.f32.mxu0 0.0
        %2704 = vmatmul.mubr.f32.gmra.mrb[0].mxu0 %v2516
        %v2705 = vpop.f32.mrb[0].mxu0
        %v2706 = vadd.f32 0.0, %v2705
        %v2707 = vpop.f32.mrb[0].mxu0
        %2708 = vmatprep.mubr.f32.mxu0 0.0
        %2709 = vmatmul.mubr.f32.gmra.mrb[0].mxu0 %v2519
        %v2710 = vpop.f32.mrb[0].mxu0
        %v2711 = vadd.f32 0.0, %v2710
        %v2712 = vpop.f32.mrb[0].mxu0
        %2713 = vmatprep.mubr.f32.mxu0 0.0
        %2714 = vmatmul.mubr.f32.gmra.mrb[0].mxu0 %v2522
        %v2715 = vpop.f32.mrb[0].mxu0
        %v2716 = vadd.f32 0.0, %v2715
        %v2717 = vpop.f32.mrb[0].mxu0
        %2718 = vmatprep.mubr.f32.mxu0 0.0
        %2719 = vmatmul.mubr.f32.gmra.mrb[0].mxu0 %v2525
        %v2720 = vpop.f32.mrb[0].mxu0
        %v2721 = vadd.f32 0.0, %v2720
        %v2722 = vpop.f32.mrb[0].mxu0
        %2723 = vmatprep.mubr.f32.mxu0 0.0
        %2724 = vmatmul.mubr.f32.gmra.mrb[0].mxu0 %v2528
        %v2725 = vpop.f32.mrb[0].mxu0
        %v2726 = vadd.f32 0.0, %v2725
        %v2727 = vpop.f32.mrb[0].mxu0
        %2728 = vmatprep.mubr.f32.mxu0 0.0
        %2729 = vmatmul.mubr.f32.gmra.mrb[0].mxu0 %v2531
        %v2730 = vpop.f32.mrb[0].mxu0
        %v2731 = vadd.f32 0.0, %v2730
        %v2732 = vpop.f32.mrb[0].mxu0
        %2733 = vmatprep.mubr.f32.mxu0 0.0
        %2734 = vmatmul.mubr.f32.gmra.mrb[0].mxu0 %v2534
        %v2735 = vpop.f32.mrb[0].mxu0
        %v2736 = vadd.f32 0.0, %v2735
        %v2737 = vpop.f32.mrb[0].mxu0
        %2738 = vmatprep.mubr.f32.mxu0 0.0
        %2739 = vmatmul.mubr.f32.gmra.mrb[0].mxu0 %v2537
        %v2740 = vpop.f32.mrb[0].mxu0
        %v2741 = vadd.f32 0.0, %v2740
        %v2742 = vpop.f32.mrb[0].mxu0
        %2743 = vmatprep.mubr.f32.mxu0 0.0
        %2744 = vmatmul.mubr.f32.gmra.mrb[0].mxu0 %v2540
        %v2745 = vpop.f32.mrb[0].mxu0
        %v2746 = vadd.f32 0.0, %v2745
        %v2747 = vpop.f32.mrb[0].mxu0
        %2748 = vmatprep.mubr.f32.mxu0 0.0
        %2749 = vmatmul.mubr.f32.gmra.mrb[0].mxu0 %v2543
        %v2750 = vpop.f32.mrb[0].mxu0
        %v2751 = vadd.f32 0.0, %v2750
        %v2752 = vpop.f32.mrb[0].mxu0
        %2753 = vmatprep.mubr.f32.mxu0 0.0
        %2754 = vmatmul.mubr.f32.gmra.mrb[0].mxu0 %v2546
        %v2755 = vpop.f32.mrb[0].mxu0
        %v2756 = vadd.f32 0.0, %v2755
        %v2757 = vpop.f32.mrb[0].mxu0
        %2758 = vmatprep.mubr.f32.mxu0 0.0
        %2759 = vmatmul.mubr.f32.gmra.mrb[0].mxu0 %v2549
        %v2760 = vpop.f32.mrb[0].mxu0
        %v2761 = vadd.f32 0.0, %v2760
        %v2762 = vpop.f32.mrb[0].mxu0
        %2763 = vmatprep.mubr.f32.mxu0 0.0
        %2764 = vmatmul.mubr.f32.gmra.mrb[0].mxu0 %v2552
        %v2765 = vpop.f32.mrb[0].mxu0
        %v2766 = vadd.f32 0.0, %v2765
        %v2767 = vpop.f32.mrb[0].mxu0
        %2768 = vmatprep.mubr.f32.mxu0 0.0
        %2769 = vmatmul.mubr.f32.gmra.mrb[0].mxu0 %v2555
        %v2770 = vpop.f32.mrb[0].mxu0
        %v2771 = vadd.f32 0.0, %v2770
        %v2772 = vpop.f32.mrb[0].mxu0
        %2773 = vmatprep.mubr.f32.mxu0 0.0
        %2774 = vmatmul.mubr.f32.gmra.mrb[0].mxu0 %v2558
        %v2775 = vpop.f32.mrb[0].mxu0
        %v2776 = vadd.f32 0.0, %v2775
        %v2777 = vpop.f32.mrb[0].mxu0
        %2778 = vmatprep.mubr.f32.mxu0 0.0
        %2779 = vmatmul.mubr.f32.gmra.mrb[0].mxu0 %v2561
        %v2780 = vpop.f32.mrb[0].mxu0
        %v2781 = vadd.f32 0.0, %v2780
        %v2782 = vpop.f32.mrb[0].mxu0
        %2783 = vmatprep.mubr.f32.mxu0 0.0
        %2784 = vmatmul.mubr.f32.gmra.mrb[0].mxu0 %v2564
        %v2785 = vpop.f32.mrb[0].mxu0
        %v2786 = vadd.f32 0.0, %v2785
        %v2787 = vpop.f32.mrb[0].mxu0
        %2788 = vmatprep.mubr.f32.mxu0 0.0
        %2789 = vmatmul.mubr.f32.gmra.mrb[0].mxu0 %v2567
        %v2790 = vpop.f32.mrb[0].mxu0
        %v2791 = vadd.f32 0.0, %v2790
        %v2792 = vpop.f32.mrb[0].mxu0
        %2793 = vdwg.mxu0
        %v2794 = vadd.f32 %v2396, %v2636
        %v2795 = vadd.f32 %v2397, %v2641
        %v2796 = vadd.f32 %v2398, %v2646
        %v2797 = vadd.f32 %v2399, %v2651
        %v2798 = vadd.f32 %v2400, %v2656
        %v2799 = vadd.f32 %v2401, %v2661
        %v2800 = vadd.f32 %v2402, %v2666
        %v2801 = vadd.f32 %v2403, %v2671
        %v2802 = vadd.f32 %v2404, %v2676
        %v2803 = vadd.f32 %v2405, %v2681
        %v2804 = vadd.f32 %v2406, %v2686
        %v2805 = vadd.f32 %v2407, %v2691
        %v2806 = vadd.f32 %v2408, %v2696
        %v2807 = vadd.f32 %v2409, %v2701
        %v2808 = vadd.f32 %v2410, %v2706
        %v2809 = vadd.f32 %v2411, %v2711
        %v2810 = vadd.f32 %v2412, %v2716
        %v2811 = vadd.f32 %v2413, %v2721
        %v2812 = vadd.f32 %v2414, %v2726
        %v2813 = vadd.f32 %v2415, %v2731
        %v2814 = vadd.f32 %v2416, %v2736
        %v2815 = vadd.f32 %v2417, %v2741
        %v2816 = vadd.f32 %v2418, %v2746
        %v2817 = vadd.f32 %v2419, %v2751
        %v2818 = vadd.f32 %v2420, %v2756
        %v2819 = vadd.f32 %v2421, %v2761
        %v2820 = vadd.f32 %v2422, %v2766
        %v2821 = vadd.f32 %v2423, %v2771
        %v2822 = vadd.f32 %v2424, %v2776
        %v2823 = vadd.f32 %v2425, %v2781
        %v2824 = vadd.f32 %v2426, %v2786
        %v2825 = vadd.f32 %v2427, %v2791
        %v2826 = vld [vmem:[#allocation2 + $0x20] sm:$0xff]
        %v2827 = vld [vmem:[#allocation2 + $0x28] sm:$0xff]
        %v2828 = vld [vmem:[#allocation2 + $0x30] sm:$0xff]
        %v2829 = vld [vmem:[#allocation2 + $0x38] sm:$0xff]
        %v2830 = vld [vmem:[#allocation2 + $0x40] sm:$0xff]
        %v2831 = vld [vmem:[#allocation2 + $0x48] sm:$0xff]
        %v2832 = vld [vmem:[#allocation2 + $0x50] sm:$0xff]
        %v2833 = vld [vmem:[#allocation2 + $0x58] sm:$0xff]
        %v2834 = vld [vmem:[#allocation2 + $0x60] sm:$0xff]
        %v2835 = vld [vmem:[#allocation2 + $0x68] sm:$0xff]
        %v2836 = vld [vmem:[#allocation2 + $0x70] sm:$0xff]
        %v2837 = vld [vmem:[#allocation2 + $0x78] sm:$0xff]
        %v2838 = vld [vmem:[#allocation2 + $0x80] sm:$0xff]
        %v2839 = vld [vmem:[#allocation2 + $0x88] sm:$0xff]
        %v2840 = vld [vmem:[#allocation2 + $0x90] sm:$0xff]
        %v2841 = vld [vmem:[#allocation2 + $0x98] sm:$0xff]
        %v2842 = vld [vmem:[#allocation2 + $0xa0] sm:$0xff]
        %v2843 = vld [vmem:[#allocation2 + $0xa8] sm:$0xff]
        %v2844 = vld [vmem:[#allocation2 + $0xb0] sm:$0xff]
        %v2845 = vld [vmem:[#allocation2 + $0xb8] sm:$0xff]
        %v2846 = vld [vmem:[#allocation2 + $0xc0] sm:$0xff]
        %v2847 = vld [vmem:[#allocation2 + $0xc8] sm:$0xff]
        %v2848 = vld [vmem:[#allocation2 + $0xd0] sm:$0xff]
        %v2849 = vld [vmem:[#allocation2 + $0xd8] sm:$0xff]
        %v2850 = vld [vmem:[#allocation2 + $0xe0] sm:$0xff]
        %v2851 = vld [vmem:[#allocation2 + $0xe8] sm:$0xff]
        %v2852 = vld [vmem:[#allocation2 + $0xf0] sm:$0xff]
        %v2853 = vld [vmem:[#allocation2 + $0xf8] sm:$0xff]
        %v2854 = vld [vmem:[#allocation2 + $0x100] sm:$0xff]
        %v2855 = vld [vmem:[#allocation2 + $0x108] sm:$0xff]
        %v2856 = vld [vmem:[#allocation2 + $0x110] sm:$0xff]
        %v2857 = vld [vmem:[#allocation2 + $0x118] sm:$0xff]
        %s2858 = scalar_lea.vmem [#allocation11], 192
        %v2859 = vld [vmem:[%s2858] sm:$0xff]
        %v2860 = vld [vmem:[%s2858 + $0x8] sm:$0xff]
        %v2861 = vld [vmem:[%s2858 + $0x10] sm:$0xff]
        %v2862 = vld [vmem:[%s2858 + $0x18] sm:$0xff]
        %v2863 = vld [vmem:[%s2858 + $0x20] sm:$0xff]
        %v2864 = vld [vmem:[%s2858 + $0x28] sm:$0xff]
        %v2865 = vld [vmem:[%s2858 + $0x30] sm:$0xff]
        %v2866 = vld [vmem:[%s2858 + $0x38] sm:$0xff]
        %v2867 = vld [vmem:[%s2858 + $0x40] sm:$0xff]
        %v2868 = vld [vmem:[%s2858 + $0x48] sm:$0xff]
        %v2869 = vld [vmem:[%s2858 + $0x50] sm:$0xff]
        %v2870 = vld [vmem:[%s2858 + $0x58] sm:$0xff]
        %v2872 = vsel %vm1663, %v2826, 0
        %v2875 = vsel %vm1663, %v2827, 0
        %v2878 = vsel %vm1663, %v2828, 0
        %v2881 = vsel %vm1663, %v2829, 0
        %v2884 = vsel %vm1663, %v2830, 0
        %v2887 = vsel %vm1663, %v2831, 0
        %v2890 = vsel %vm1663, %v2832, 0
        %v2893 = vsel %vm1663, %v2833, 0
        %v2896 = vsel %vm1663, %v2834, 0
        %v2899 = vsel %vm1663, %v2835, 0
        %v2902 = vsel %vm1663, %v2836, 0
        %v2905 = vsel %vm1663, %v2837, 0
        %v2908 = vsel %vm1663, %v2838, 0
        %v2911 = vsel %vm1663, %v2839, 0
        %v2914 = vsel %vm1663, %v2840, 0
        %v2917 = vsel %vm1663, %v2841, 0
        %v2920 = vsel %vm1663, %v2842, 0
        %v2923 = vsel %vm1663, %v2843, 0
        %v2926 = vsel %vm1663, %v2844, 0
        %v2929 = vsel %vm1663, %v2845, 0
        %v2932 = vsel %vm1663, %v2846, 0
        %v2935 = vsel %vm1663, %v2847, 0
        %v2938 = vsel %vm1663, %v2848, 0
        %v2941 = vsel %vm1663, %v2849, 0
        %v2944 = vsel %vm1663, %v2850, 0
        %v2947 = vsel %vm1663, %v2851, 0
        %v2950 = vsel %vm1663, %v2852, 0
        %v2953 = vsel %vm1663, %v2853, 0
        %v2956 = vsel %vm1663, %v2854, 0
        %v2959 = vsel %vm1663, %v2855, 0
        %v2962 = vsel %vm1663, %v2856, 0
        %v2965 = vsel %vm1663, %v2857, 0
        %2967 = vmatprep.subr.mxu0 0.0
        %2968 = vmatpush1.msra.mxu0 %v2859
        %2969 = vmatprep.subr.mxu0 0.0
        %2970 = vmatpush1.msra.mxu0 %v2860
        %2971 = vmatprep.subr.mxu0 0.0
        %2972 = vmatpush1.msra.mxu0 %v2861
        %2973 = vmatprep.subr.mxu0 0.0
        %2974 = vmatpush1.msra.mxu0 %v2862
        %2975 = vmatprep.subr.mxu0 0.0
        %2976 = vmatpush1.msra.mxu0 %v2863
        %2977 = vmatprep.subr.mxu0 0.0
        %2978 = vmatpush1.msra.mxu0 %v2864
        %2979 = vmatprep.subr.mxu0 0.0
        %2980 = vmatpush1.msra.mxu0 %v2865
        %2981 = vmatprep.subr.mxu0 0.0
        %2982 = vmatpush1.msra.mxu0 %v2866
        %2983 = vmatprep.subr.mxu0 0.0
        %2984 = vmatpush1.msra.mxu0 %v2867
        %2985 = vmatprep.subr.mxu0 0.0
        %2986 = vmatpush1.msra.mxu0 %v2868
        %2987 = vmatprep.subr.mxu0 0.0
        %2988 = vmatpush1.msra.mxu0 %v2869
        %2989 = vmatprep.subr.mxu0 0.0
        %2990 = vmatpush1.msra.mxu0 %v2870
        %2991 = vmatprep.subr.mxu0 0.0
        %2992 = vmatpush1.msra.mxu0 0.0
        %2993 = vmatprep.subr.mxu0 0.0
        %2994 = vmatpush1.msra.mxu0 0.0
        %2995 = vmatprep.subr.mxu0 0.0
        %2996 = vmatpush1.msra.mxu0 0.0
        %2997 = vmatprep.subr.mxu0 0.0
        %2998 = vmatpush1.msra.mxu0 0.0
        %2999 = vmatprep.subr.mxu0 0.0
        %3000 = vmatpush1.msra.mxu0 0.0
        %3001 = vmatprep.subr.mxu0 0.0
        %3002 = vmatpush1.msra.mxu0 0.0
        %3003 = vmatprep.subr.mxu0 0.0
        %3004 = vmatpush1.msra.mxu0 0.0
        %3005 = vmatprep.subr.mxu0 0.0
        %3006 = vmatpush1.msra.mxu0 0.0
        %3007 = vmatprep.subr.mxu0 0.0
        %3008 = vmatpush1.msra.mxu0 0.0
        %3009 = vmatprep.subr.mxu0 0.0
        %3010 = vmatpush1.msra.mxu0 0.0
        %3011 = vmatprep.subr.mxu0 0.0
        %3012 = vmatpush1.msra.mxu0 0.0
        %3013 = vmatprep.subr.mxu0 0.0
        %3014 = vmatpush1.msra.mxu0 0.0
        %3015 = vmatprep.subr.mxu0 0.0
        %3016 = vmatpush1.msra.mxu0 0.0
        %3017 = vmatprep.subr.mxu0 0.0
        %3018 = vmatpush1.msra.mxu0 0.0
        %3019 = vmatprep.subr.mxu0 0.0
        %3020 = vmatpush1.msra.mxu0 0.0
        %3021 = vmatprep.subr.mxu0 0.0
        %3022 = vmatpush1.msra.mxu0 0.0
        %3023 = vmatprep.subr.mxu0 0.0
        %3024 = vmatpush1.msra.mxu0 0.0
        %3025 = vmatprep.subr.mxu0 0.0
        %3026 = vmatpush1.msra.mxu0 0.0
        %3027 = vmatprep.subr.mxu0 0.0
        %3028 = vmatpush1.msra.mxu0 0.0
        %3029 = vmatprep.subr.mxu0 0.0
        %3030 = vmatpush1.msra.mxu0 0.0
        %3031 = vmatprep.mubr.f32.mxu0 0.0
        %3032 = vmatmul.mubr.f32.gmra.mrb[0].mxu0 %v2872
        %v3033 = vpop.f32.mrb[0].mxu0
        %v3034 = vadd.f32 0.0, %v3033
        %v3035 = vpop.f32.mrb[0].mxu0
        %3036 = vmatprep.mubr.f32.mxu0 0.0
        %3037 = vmatmul.mubr.f32.gmra.mrb[0].mxu0 %v2875
        %v3038 = vpop.f32.mrb[0].mxu0
        %v3039 = vadd.f32 0.0, %v3038
        %v3040 = vpop.f32.mrb[0].mxu0
        %3041 = vmatprep.mubr.f32.mxu0 0.0
        %3042 = vmatmul.mubr.f32.gmra.mrb[0].mxu0 %v2878
        %v3043 = vpop.f32.mrb[0].mxu0
        %v3044 = vadd.f32 0.0, %v3043
        %v3045 = vpop.f32.mrb[0].mxu0
        %3046 = vmatprep.mubr.f32.mxu0 0.0
        %3047 = vmatmul.mubr.f32.gmra.mrb[0].mxu0 %v2881
        %v3048 = vpop.f32.mrb[0].mxu0
        %v3049 = vadd.f32 0.0, %v3048
        %v3050 = vpop.f32.mrb[0].mxu0
        %3051 = vmatprep.mubr.f32.mxu0 0.0
        %3052 = vmatmul.mubr.f32.gmra.mrb[0].mxu0 %v2884
        %v3053 = vpop.f32.mrb[0].mxu0
        %v3054 = vadd.f32 0.0, %v3053
        %v3055 = vpop.f32.mrb[0].mxu0
        %3056 = vmatprep.mubr.f32.mxu0 0.0
        %3057 = vmatmul.mubr.f32.gmra.mrb[0].mxu0 %v2887
        %v3058 = vpop.f32.mrb[0].mxu0
        %v3059 = vadd.f32 0.0, %v3058
        %v3060 = vpop.f32.mrb[0].mxu0
        %3061 = vmatprep.mubr.f32.mxu0 0.0
        %3062 = vmatmul.mubr.f32.gmra.mrb[0].mxu0 %v2890
        %v3063 = vpop.f32.mrb[0].mxu0
        %v3064 = vadd.f32 0.0, %v3063
        %v3065 = vpop.f32.mrb[0].mxu0
        %3066 = vmatprep.mubr.f32.mxu0 0.0
        %3067 = vmatmul.mubr.f32.gmra.mrb[0].mxu0 %v2893
        %v3068 = vpop.f32.mrb[0].mxu0
        %v3069 = vadd.f32 0.0, %v3068
        %v3070 = vpop.f32.mrb[0].mxu0
        %3071 = vmatprep.mubr.f32.mxu0 0.0
        %3072 = vmatmul.mubr.f32.gmra.mrb[0].mxu0 %v2896
        %v3073 = vpop.f32.mrb[0].mxu0
        %v3074 = vadd.f32 0.0, %v3073
        %v3075 = vpop.f32.mrb[0].mxu0
        %3076 = vmatprep.mubr.f32.mxu0 0.0
        %3077 = vmatmul.mubr.f32.gmra.mrb[0].mxu0 %v2899
        %v3078 = vpop.f32.mrb[0].mxu0
        %v3079 = vadd.f32 0.0, %v3078
        %v3080 = vpop.f32.mrb[0].mxu0
        %3081 = vmatprep.mubr.f32.mxu0 0.0
        %3082 = vmatmul.mubr.f32.gmra.mrb[0].mxu0 %v2902
        %v3083 = vpop.f32.mrb[0].mxu0
        %v3084 = vadd.f32 0.0, %v3083
        %v3085 = vpop.f32.mrb[0].mxu0
        %3086 = vmatprep.mubr.f32.mxu0 0.0
        %3087 = vmatmul.mubr.f32.gmra.mrb[0].mxu0 %v2905
        %v3088 = vpop.f32.mrb[0].mxu0
        %v3089 = vadd.f32 0.0, %v3088
        %v3090 = vpop.f32.mrb[0].mxu0
        %3091 = vmatprep.mubr.f32.mxu0 0.0
        %3092 = vmatmul.mubr.f32.gmra.mrb[0].mxu0 %v2908
        %v3093 = vpop.f32.mrb[0].mxu0
        %v3094 = vadd.f32 0.0, %v3093
        %v3095 = vpop.f32.mrb[0].mxu0
        %3096 = vmatprep.mubr.f32.mxu0 0.0
        %3097 = vmatmul.mubr.f32.gmra.mrb[0].mxu0 %v2911
        %v3098 = vpop.f32.mrb[0].mxu0
        %v3099 = vadd.f32 0.0, %v3098
        %v3100 = vpop.f32.mrb[0].mxu0
        %3101 = vmatprep.mubr.f32.mxu0 0.0
        %3102 = vmatmul.mubr.f32.gmra.mrb[0].mxu0 %v2914
        %v3103 = vpop.f32.mrb[0].mxu0
        %v3104 = vadd.f32 0.0, %v3103
        %v3105 = vpop.f32.mrb[0].mxu0
        %3106 = vmatprep.mubr.f32.mxu0 0.0
        %3107 = vmatmul.mubr.f32.gmra.mrb[0].mxu0 %v2917
        %v3108 = vpop.f32.mrb[0].mxu0
        %v3109 = vadd.f32 0.0, %v3108
        %v3110 = vpop.f32.mrb[0].mxu0
        %3111 = vmatprep.mubr.f32.mxu0 0.0
        %3112 = vmatmul.mubr.f32.gmra.mrb[0].mxu0 %v2920
        %v3113 = vpop.f32.mrb[0].mxu0
        %v3114 = vadd.f32 0.0, %v3113
        %v3115 = vpop.f32.mrb[0].mxu0
        %3116 = vmatprep.mubr.f32.mxu0 0.0
        %3117 = vmatmul.mubr.f32.gmra.mrb[0].mxu0 %v2923
        %v3118 = vpop.f32.mrb[0].mxu0
        %v3119 = vadd.f32 0.0, %v3118
        %v3120 = vpop.f32.mrb[0].mxu0
        %3121 = vmatprep.mubr.f32.mxu0 0.0
        %3122 = vmatmul.mubr.f32.gmra.mrb[0].mxu0 %v2926
        %v3123 = vpop.f32.mrb[0].mxu0
        %v3124 = vadd.f32 0.0, %v3123
        %v3125 = vpop.f32.mrb[0].mxu0
        %3126 = vmatprep.mubr.f32.mxu0 0.0
        %3127 = vmatmul.mubr.f32.gmra.mrb[0].mxu0 %v2929
        %v3128 = vpop.f32.mrb[0].mxu0
        %v3129 = vadd.f32 0.0, %v3128
        %v3130 = vpop.f32.mrb[0].mxu0
        %3131 = vmatprep.mubr.f32.mxu0 0.0
        %3132 = vmatmul.mubr.f32.gmra.mrb[0].mxu0 %v2932
        %v3133 = vpop.f32.mrb[0].mxu0
        %v3134 = vadd.f32 0.0, %v3133
        %v3135 = vpop.f32.mrb[0].mxu0
        %3136 = vmatprep.mubr.f32.mxu0 0.0
        %3137 = vmatmul.mubr.f32.gmra.mrb[0].mxu0 %v2935
        %v3138 = vpop.f32.mrb[0].mxu0
        %v3139 = vadd.f32 0.0, %v3138
        %v3140 = vpop.f32.mrb[0].mxu0
        %3141 = vmatprep.mubr.f32.mxu0 0.0
        %3142 = vmatmul.mubr.f32.gmra.mrb[0].mxu0 %v2938
        %v3143 = vpop.f32.mrb[0].mxu0
        %v3144 = vadd.f32 0.0, %v3143
        %v3145 = vpop.f32.mrb[0].mxu0
        %3146 = vmatprep.mubr.f32.mxu0 0.0
        %3147 = vmatmul.mubr.f32.gmra.mrb[0].mxu0 %v2941
        %v3148 = vpop.f32.mrb[0].mxu0
        %v3149 = vadd.f32 0.0, %v3148
        %v3150 = vpop.f32.mrb[0].mxu0
        %3151 = vmatprep.mubr.f32.mxu0 0.0
        %3152 = vmatmul.mubr.f32.gmra.mrb[0].mxu0 %v2944
        %v3153 = vpop.f32.mrb[0].mxu0
        %v3154 = vadd.f32 0.0, %v3153
        %v3155 = vpop.f32.mrb[0].mxu0
        %3156 = vmatprep.mubr.f32.mxu0 0.0
        %3157 = vmatmul.mubr.f32.gmra.mrb[0].mxu0 %v2947
        %v3158 = vpop.f32.mrb[0].mxu0
        %v3159 = vadd.f32 0.0, %v3158
        %v3160 = vpop.f32.mrb[0].mxu0
        %3161 = vmatprep.mubr.f32.mxu0 0.0
        %3162 = vmatmul.mubr.f32.gmra.mrb[0].mxu0 %v2950
        %v3163 = vpop.f32.mrb[0].mxu0
        %v3164 = vadd.f32 0.0, %v3163
        %v3165 = vpop.f32.mrb[0].mxu0
        %3166 = vmatprep.mubr.f32.mxu0 0.0
        %3167 = vmatmul.mubr.f32.gmra.mrb[0].mxu0 %v2953
        %v3168 = vpop.f32.mrb[0].mxu0
        %v3169 = vadd.f32 0.0, %v3168
        %v3170 = vpop.f32.mrb[0].mxu0
        %3171 = vmatprep.mubr.f32.mxu0 0.0
        %3172 = vmatmul.mubr.f32.gmra.mrb[0].mxu0 %v2956
        %v3173 = vpop.f32.mrb[0].mxu0
        %v3174 = vadd.f32 0.0, %v3173
        %v3175 = vpop.f32.mrb[0].mxu0
        %3176 = vmatprep.mubr.f32.mxu0 0.0
        %3177 = vmatmul.mubr.f32.gmra.mrb[0].mxu0 %v2959
        %v3178 = vpop.f32.mrb[0].mxu0
        %v3179 = vadd.f32 0.0, %v3178
        %v3180 = vpop.f32.mrb[0].mxu0
        %3181 = vmatprep.mubr.f32.mxu0 0.0
        %3182 = vmatmul.mubr.f32.gmra.mrb[0].mxu0 %v2962
        %v3183 = vpop.f32.mrb[0].mxu0
        %v3184 = vadd.f32 0.0, %v3183
        %v3185 = vpop.f32.mrb[0].mxu0
        %3186 = vmatprep.mubr.f32.mxu0 0.0
        %3187 = vmatmul.mubr.f32.gmra.mrb[0].mxu0 %v2965
        %v3188 = vpop.f32.mrb[0].mxu0
        %v3189 = vadd.f32 0.0, %v3188
        %v3190 = vpop.f32.mrb[0].mxu0
        %3191 = vdwg.mxu0
        %v3192 = vadd.f32 %v2794, %v3034
        %v3193 = vadd.f32 %v2795, %v3039
        %v3194 = vadd.f32 %v2796, %v3044
        %v3195 = vadd.f32 %v2797, %v3049
        %v3196 = vadd.f32 %v2798, %v3054
        %v3197 = vadd.f32 %v2799, %v3059
        %v3198 = vadd.f32 %v2800, %v3064
        %v3199 = vadd.f32 %v2801, %v3069
        %v3200 = vadd.f32 %v2802, %v3074
        %v3201 = vadd.f32 %v2803, %v3079
        %v3202 = vadd.f32 %v2804, %v3084
        %v3203 = vadd.f32 %v2805, %v3089
        %v3204 = vadd.f32 %v2806, %v3094
        %v3205 = vadd.f32 %v2807, %v3099
        %v3206 = vadd.f32 %v2808, %v3104
        %v3207 = vadd.f32 %v2809, %v3109
        %v3208 = vadd.f32 %v2810, %v3114
        %v3209 = vadd.f32 %v2811, %v3119
        %v3210 = vadd.f32 %v2812, %v3124
        %v3211 = vadd.f32 %v2813, %v3129
        %v3212 = vadd.f32 %v2814, %v3134
        %v3213 = vadd.f32 %v2815, %v3139
        %v3214 = vadd.f32 %v2816, %v3144
        %v3215 = vadd.f32 %v2817, %v3149
        %v3216 = vadd.f32 %v2818, %v3154
        %v3217 = vadd.f32 %v2819, %v3159
        %v3218 = vadd.f32 %v2820, %v3164
        %v3219 = vadd.f32 %v2821, %v3169
        %v3220 = vadd.f32 %v2822, %v3174
        %v3221 = vadd.f32 %v2823, %v3179
        %v3222 = vadd.f32 %v2824, %v3184
        %v3223 = vadd.f32 %v2825, %v3189
        %v3224 = vmax.f32 %v3192, 0.0
        %v3225 = vmax.f32 %v3193, 0.0
        %v3226 = vmax.f32 %v3194, 0.0
        %v3227 = vmax.f32 %v3195, 0.0
        %v3228 = vmax.f32 %v3196, 0.0
        %v3229 = vmax.f32 %v3197, 0.0
        %v3230 = vmax.f32 %v3198, 0.0
        %v3231 = vmax.f32 %v3199, 0.0
        %v3232 = vmax.f32 %v3200, 0.0
        %v3233 = vmax.f32 %v3201, 0.0
        %v3234 = vmax.f32 %v3202, 0.0
        %v3235 = vmax.f32 %v3203, 0.0
        %v3236 = vmax.f32 %v3204, 0.0
        %v3237 = vmax.f32 %v3205, 0.0
        %v3238 = vmax.f32 %v3206, 0.0
        %v3239 = vmax.f32 %v3207, 0.0
        %v3240 = vmax.f32 %v3208, 0.0
        %v3241 = vmax.f32 %v3209, 0.0
        %v3242 = vmax.f32 %v3210, 0.0
        %v3243 = vmax.f32 %v3211, 0.0
        %v3244 = vmax.f32 %v3212, 0.0
        %v3245 = vmax.f32 %v3213, 0.0
        %v3246 = vmax.f32 %v3214, 0.0
        %v3247 = vmax.f32 %v3215, 0.0
        %v3248 = vmax.f32 %v3216, 0.0
        %v3249 = vmax.f32 %v3217, 0.0
        %v3250 = vmax.f32 %v3218, 0.0
        %v3251 = vmax.f32 %v3219, 0.0
        %v3252 = vmax.f32 %v3220, 0.0
        %v3253 = vmax.f32 %v3221, 0.0
        %v3254 = vmax.f32 %v3222, 0.0
        %v3255 = vmax.f32 %v3223, 0.0
        %3256 = vst.msk [vmem:[#allocation3] sm:$0xff] %vm1668, %v3224
        %3257 = vst.msk [vmem:[#allocation3 + $0x8] sm:$0xff] %vm1668, %v3225
        %3258 = vst.msk [vmem:[#allocation3 + $0x10] sm:$0xff] %vm1668, %v3226
        %3259 = vst.msk [vmem:[#allocation3 + $0x18] sm:$0xff] %vm1668, %v3227
        %3260 = vst.msk [vmem:[#allocation3 + $0x20] sm:$0xff] %vm1668, %v3228
        %3261 = vst.msk [vmem:[#allocation3 + $0x28] sm:$0xff] %vm1668, %v3229
        %3262 = vst.msk [vmem:[#allocation3 + $0x30] sm:$0xff] %vm1668, %v3230
        %3263 = vst.msk [vmem:[#allocation3 + $0x38] sm:$0xff] %vm1668, %v3231
        %3264 = vst.msk [vmem:[#allocation3 + $0x40] sm:$0xff] %vm1668, %v3232
        %3265 = vst.msk [vmem:[#allocation3 + $0x48] sm:$0xff] %vm1668, %v3233
        %3266 = vst.msk [vmem:[#allocation3 + $0x50] sm:$0xff] %vm1668, %v3234
        %3267 = vst.msk [vmem:[#allocation3 + $0x58] sm:$0xff] %vm1668, %v3235
        %3268 = vst.msk [vmem:[#allocation3 + $0x60] sm:$0xff] %vm1668, %v3236
        %3269 = vst.msk [vmem:[#allocation3 + $0x68] sm:$0xff] %vm1668, %v3237
        %3270 = vst.msk [vmem:[#allocation3 + $0x70] sm:$0xff] %vm1668, %v3238
        %3271 = vst.msk [vmem:[#allocation3 + $0x78] sm:$0xff] %vm1668, %v3239
        %3272 = vst.msk [vmem:[#allocation3 + $0x80] sm:$0xff] %vm1668, %v3240
        %3273 = vst.msk [vmem:[#allocation3 + $0x88] sm:$0xff] %vm1668, %v3241
        %3274 = vst.msk [vmem:[#allocation3 + $0x90] sm:$0xff] %vm1668, %v3242
        %3275 = vst.msk [vmem:[#allocation3 + $0x98] sm:$0xff] %vm1668, %v3243
        %3276 = vst.msk [vmem:[#allocation3 + $0xa0] sm:$0xff] %vm1668, %v3244
        %3277 = vst.msk [vmem:[#allocation3 + $0xa8] sm:$0xff] %vm1668, %v3245
        %3278 = vst.msk [vmem:[#allocation3 + $0xb0] sm:$0xff] %vm1668, %v3246
        %3279 = vst.msk [vmem:[#allocation3 + $0xb8] sm:$0xff] %vm1668, %v3247
        %3280 = vst.msk [vmem:[#allocation3 + $0xc0] sm:$0xff] %vm1668, %v3248
        %3281 = vst.msk [vmem:[#allocation3 + $0xc8] sm:$0xff] %vm1668, %v3249
        %3282 = vst.msk [vmem:[#allocation3 + $0xd0] sm:$0xff] %vm1668, %v3250
        %3283 = vst.msk [vmem:[#allocation3 + $0xd8] sm:$0xff] %vm1668, %v3251
        %3284 = vst.msk [vmem:[#allocation3 + $0xe0] sm:$0xff] %vm1668, %v3252
        %3285 = vst.msk [vmem:[#allocation3 + $0xe8] sm:$0xff] %vm1668, %v3253
        %3286 = vst.msk [vmem:[#allocation3 + $0xf0] sm:$0xff] %vm1668, %v3254
        %3287 = vst.msk [vmem:[#allocation3 + $0xf8] sm:$0xff] %vm1668, %v3255
        %v3288 = vld [vmem:[#allocation3] ss:$2 sm:$0xff]
        %s3289 = scalar_lea.vmem [#allocation3], 16
        %v3290 = vld [vmem:[%s3289] ss:$2 sm:$0xff]
        %s3291 = scalar_lea.vmem [#allocation3], 32
        %v3292 = vld [vmem:[%s3291] ss:$2 sm:$0xff]
        %s3293 = scalar_lea.vmem [#allocation3], 48
        %v3294 = vld [vmem:[%s3293] ss:$2 sm:$0xff]
        %s3295 = scalar_lea.vmem [#allocation3], 64
        %v3296 = vld [vmem:[%s3295] ss:$2 sm:$0xff]
        %s3297 = scalar_lea.vmem [#allocation3], 80
        %v3298 = vld [vmem:[%s3297] ss:$2 sm:$0xff]
        %s3299 = scalar_lea.vmem [#allocation3], 96
        %v3300 = vld [vmem:[%s3299] ss:$2 sm:$0xff]
        %s3301 = scalar_lea.vmem [#allocation3], 112
        %v3302 = vld [vmem:[%s3301] ss:$2 sm:$0xff]
        %s3303 = scalar_lea.vmem [#allocation3], 128
        %v3304 = vld [vmem:[%s3303] ss:$2 sm:$0xff]
        %s3305 = scalar_lea.vmem [#allocation3], 144
        %v3306 = vld [vmem:[%s3305] ss:$2 sm:$0xff]
        %s3307 = scalar_lea.vmem [#allocation3], 160
        %v3308 = vld [vmem:[%s3307] ss:$2 sm:$0xff]
        %s3309 = scalar_lea.vmem [#allocation3], 176
        %v3310 = vld [vmem:[%s3309] ss:$2 sm:$0xff]
        %s3311 = scalar_lea.vmem [#allocation3], 192
        %v3312 = vld [vmem:[%s3311] ss:$2 sm:$0xff]
        %s3313 = scalar_lea.vmem [#allocation3], 208
        %v3314 = vld [vmem:[%s3313] ss:$2 sm:$0xff]
        %s3315 = scalar_lea.vmem [#allocation3], 224
        %v3316 = vld [vmem:[%s3315] ss:$2 sm:$0xff]
        %s3317 = scalar_lea.vmem [#allocation3], 240
        %v3318 = vld [vmem:[%s3317] ss:$2 sm:$0xff]
        %s3319 = scalar_lea.vmem [#allocation3], 1
        %v3320 = vld [vmem:[%s3319] ss:$2 sm:$0xff]
        %s3321 = scalar_lea.vmem [#allocation3], 17
        %v3322 = vld [vmem:[%s3321] ss:$2 sm:$0xff]
        %s3323 = scalar_lea.vmem [#allocation3], 33
        %v3324 = vld [vmem:[%s3323] ss:$2 sm:$0xff]
        %s3325 = scalar_lea.vmem [#allocation3], 49
        %v3326 = vld [vmem:[%s3325] ss:$2 sm:$0xff]
        %s3327 = scalar_lea.vmem [#allocation3], 65
        %v3328 = vld [vmem:[%s3327] ss:$2 sm:$0xff]
        %s3329 = scalar_lea.vmem [#allocation3], 81
        %v3330 = vld [vmem:[%s3329] ss:$2 sm:$0xff]
        %s3331 = scalar_lea.vmem [#allocation3], 97
        %v3332 = vld [vmem:[%s3331] ss:$2 sm:$0xff]
        %s3333 = scalar_lea.vmem [#allocation3], 113
        %v3334 = vld [vmem:[%s3333] ss:$2 sm:$0xff]
        %s3335 = scalar_lea.vmem [#allocation3], 129
        %v3336 = vld [vmem:[%s3335] ss:$2 sm:$0xff]
        %s3337 = scalar_lea.vmem [#allocation3], 145
        %v3338 = vld [vmem:[%s3337] ss:$2 sm:$0xff]
        %s3339 = scalar_lea.vmem [#allocation3], 161
        %v3340 = vld [vmem:[%s3339] ss:$2 sm:$0xff]
        %s3341 = scalar_lea.vmem [#allocation3], 177
        %v3342 = vld [vmem:[%s3341] ss:$2 sm:$0xff]
        %s3343 = scalar_lea.vmem [#allocation3], 193
        %v3344 = vld [vmem:[%s3343] ss:$2 sm:$0xff]
        %s3345 = scalar_lea.vmem [#allocation3], 209
        %v3346 = vld [vmem:[%s3345] ss:$2 sm:$0xff]
        %s3347 = scalar_lea.vmem [#allocation3], 225
        %v3348 = vld [vmem:[%s3347] ss:$2 sm:$0xff]
        %s3349 = scalar_lea.vmem [#allocation3], 241
        %v3350 = vld [vmem:[%s3349] ss:$2 sm:$0xff]
        %v3351 = vadd.f32 %v3288, %v3320
        %v3352 = vadd.f32 %v3290, %v3322
        %v3353 = vadd.f32 %v3292, %v3324
        %v3354 = vadd.f32 %v3294, %v3326
        %v3355 = vadd.f32 %v3296, %v3328
        %v3356 = vadd.f32 %v3298, %v3330
        %v3357 = vadd.f32 %v3300, %v3332
        %v3358 = vadd.f32 %v3302, %v3334
        %v3359 = vadd.f32 %v3304, %v3336
        %v3360 = vadd.f32 %v3306, %v3338
        %v3361 = vadd.f32 %v3308, %v3340
        %v3362 = vadd.f32 %v3310, %v3342
        %v3363 = vadd.f32 %v3312, %v3344
        %v3364 = vadd.f32 %v3314, %v3346
        %v3365 = vadd.f32 %v3316, %v3348
        %v3366 = vadd.f32 %v3318, %v3350
        %v3367 = vadd.f32 %v3351, %v3352
        %v3368 = vadd.f32 %v3353, %v3354
        %v3369 = vadd.f32 %v3355, %v3356
        %v3370 = vadd.f32 %v3357, %v3358
        %v3371 = vadd.f32 %v3359, %v3360
        %v3372 = vadd.f32 %v3361, %v3362
        %v3373 = vadd.f32 %v3363, %v3364
        %v3374 = vadd.f32 %v3365, %v3366
        %v3375 = vmul.f32 %v3367, 0.25
        %v3376 = vmul.f32 %v3368, 0.25
        %v3377 = vmul.f32 %v3369, 0.25
        %v3378 = vmul.f32 %v3370, 0.25
        %v3379 = vmul.f32 %v3371, 0.25
        %v3380 = vmul.f32 %v3372, 0.25
        %v3381 = vmul.f32 %v3373, 0.25
        %v3382 = vmul.f32 %v3374, 0.25
        %v3383 = vld [vmem:[#allocation14] sm:$0xff]
        %v3384 = vld [vmem:[#allocation14 + $0x8] sm:$0xff]
        %v3385 = vld [vmem:[#allocation14 + $0x10] sm:$0xff]
        %v3386 = vld [vmem:[#allocation14 + $0x18] sm:$0xff]
        %v3387 = vld [vmem:[#allocation16] sm:$0x1]
        %v3389 = vlaneseq
        %v3390 = vshrl.u32 %v3389, 7
        %v3391 = vsub.s32 0, %v3390
        %v3392 = vrot.slane %v3387, %v3391
        %v3395 = vsel %vm1668, %v3375, 0
        %v3398 = vsel %vm1668, %v3376, 0
        %v3401 = vsel %vm1668, %v3377, 0
        %v3404 = vsel %vm1668, %v3378, 0
        %v3407 = vsel %vm1668, %v3379, 0
        %v3410 = vsel %vm1668, %v3380, 0
        %v3413 = vsel %vm1668, %v3381, 0
        %v3416 = vsel %vm1668, %v3382, 0
        %3418 = vmatprep.subr.mxu0 0.0
        %3419 = vmatpush1.msra.mxu0 %v3383
        %3420 = vmatprep.subr.mxu0 0.0
        %3421 = vmatpush1.msra.mxu0 %v3384
        %3422 = vmatprep.subr.mxu0 0.0
        %3423 = vmatpush1.msra.mxu0 %v3385
        %3424 = vmatprep.subr.mxu0 0.0
        %3425 = vmatpush1.msra.mxu0 %v3386
        %3426 = vmatprep.subr.mxu0 0.0
        %3427 = vmatpush1.msra.mxu0 0.0
        %3428 = vmatprep.subr.mxu0 0.0
        %3429 = vmatpush1.msra.mxu0 0.0
        %3430 = vmatprep.subr.mxu0 0.0
        %3431 = vmatpush1.msra.mxu0 0.0
        %3432 = vmatprep.subr.mxu0 0.0
        %3433 = vmatpush1.msra.mxu0 0.0
        %3434 = vmatprep.subr.mxu0 0.0
        %3435 = vmatpush1.msra.mxu0 0.0
        %3436 = vmatprep.subr.mxu0 0.0
        %3437 = vmatpush1.msra.mxu0 0.0
        %3438 = vmatprep.subr.mxu0 0.0
        %3439 = vmatpush1.msra.mxu0 0.0
        %3440 = vmatprep.subr.mxu0 0.0
        %3441 = vmatpush1.msra.mxu0 0.0
        %3442 = vmatprep.subr.mxu0 0.0
        %3443 = vmatpush1.msra.mxu0 0.0
        %3444 = vmatprep.subr.mxu0 0.0
        %3445 = vmatpush1.msra.mxu0 0.0
        %3446 = vmatprep.subr.mxu0 0.0
        %3447 = vmatpush1.msra.mxu0 0.0
        %3448 = vmatprep.subr.mxu0 0.0
        %3449 = vmatpush1.msra.mxu0 0.0
        %3450 = vmatprep.subr.mxu0 0.0
        %3451 = vmatpush1.msra.mxu0 0.0
        %3452 = vmatprep.subr.mxu0 0.0
        %3453 = vmatpush1.msra.mxu0 0.0
        %3454 = vmatprep.subr.mxu0 0.0
        %3455 = vmatpush1.msra.mxu0 0.0
        %3456 = vmatprep.subr.mxu0 0.0
        %3457 = vmatpush1.msra.mxu0 0.0
        %3458 = vmatprep.subr.mxu0 0.0
        %3459 = vmatpush1.msra.mxu0 0.0
        %3460 = vmatprep.subr.mxu0 0.0
        %3461 = vmatpush1.msra.mxu0 0.0
        %3462 = vmatprep.subr.mxu0 0.0
        %3463 = vmatpush1.msra.mxu0 0.0
        %3464 = vmatprep.subr.mxu0 0.0
        %3465 = vmatpush1.msra.mxu0 0.0
        %3466 = vmatprep.subr.mxu0 0.0
        %3467 = vmatpush1.msra.mxu0 0.0
        %3468 = vmatprep.subr.mxu0 0.0
        %3469 = vmatpush1.msra.mxu0 0.0
        %3470 = vmatprep.subr.mxu0 0.0
        %3471 = vmatpush1.msra.mxu0 0.0
        %3472 = vmatprep.subr.mxu0 0.0
        %3473 = vmatpush1.msra.mxu0 0.0
        %3474 = vmatprep.subr.mxu0 0.0
        %3475 = vmatpush1.msra.mxu0 0.0
        %3476 = vmatprep.subr.mxu0 0.0
        %3477 = vmatpush1.msra.mxu0 0.0
        %3478 = vmatprep.subr.mxu0 0.0
        %3479 = vmatpush1.msra.mxu0 0.0
        %3480 = vmatprep.subr.mxu0 0.0
        %3481 = vmatpush1.msra.mxu0 0.0
        %3482 = vmatprep.mubr.f32.mxu0 0.0
        %3483 = vmatmul.mubr.f32.gmra.mrb[0].mxu0 %v3395
        %v3484 = vpop.f32.mrb[0].mxu0
        %v3485 = vadd.f32 %v3392, %v3484
        %v3486 = vpop.f32.mrb[0].mxu0
        %3487 = vmatprep.mubr.f32.mxu0 0.0
        %3488 = vmatmul.mubr.f32.gmra.mrb[0].mxu0 %v3398
        %v3489 = vpop.f32.mrb[0].mxu0
        %v3490 = vadd.f32 %v3392, %v3489
        %v3491 = vpop.f32.mrb[0].mxu0
        %3492 = vmatprep.mubr.f32.mxu0 0.0
        %3493 = vmatmul.mubr.f32.gmra.mrb[0].mxu0 %v3401
        %v3494 = vpop.f32.mrb[0].mxu0
        %v3495 = vadd.f32 %v3392, %v3494
        %v3496 = vpop.f32.mrb[0].mxu0
        %3497 = vmatprep.mubr.f32.mxu0 0.0
        %3498 = vmatmul.mubr.f32.gmra.mrb[0].mxu0 %v3404
        %v3499 = vpop.f32.mrb[0].mxu0
        %v3500 = vadd.f32 %v3392, %v3499
        %v3501 = vpop.f32.mrb[0].mxu0
        %3502 = vmatprep.mubr.f32.mxu0 0.0
        %3503 = vmatmul.mubr.f32.gmra.mrb[0].mxu0 %v3407
        %v3504 = vpop.f32.mrb[0].mxu0
        %v3505 = vadd.f32 %v3392, %v3504
        %v3506 = vpop.f32.mrb[0].mxu0
        %3507 = vmatprep.mubr.f32.mxu0 0.0
        %3508 = vmatmul.mubr.f32.gmra.mrb[0].mxu0 %v3410
        %v3509 = vpop.f32.mrb[0].mxu0
        %v3510 = vadd.f32 %v3392, %v3509
        %v3511 = vpop.f32.mrb[0].mxu0
        %3512 = vmatprep.mubr.f32.mxu0 0.0
        %3513 = vmatmul.mubr.f32.gmra.mrb[0].mxu0 %v3413
        %v3514 = vpop.f32.mrb[0].mxu0
        %v3515 = vadd.f32 %v3392, %v3514
        %v3516 = vpop.f32.mrb[0].mxu0
        %3517 = vmatprep.mubr.f32.mxu0 0.0
        %3518 = vmatmul.mubr.f32.gmra.mrb[0].mxu0 %v3416
        %v3519 = vpop.f32.mrb[0].mxu0
        %v3520 = vadd.f32 %v3392, %v3519
        %v3521 = vpop.f32.mrb[0].mxu0
        %3522 = vdwg.mxu0
        %3523 = vst.msk [vmem:[#allocation4] sm:$0xff] %vm506, %v459
        %3524 = vst.msk [vmem:[#allocation4 + $0x8] sm:$0xff] %vm506, %v460
        %3525 = vst.msk [vmem:[#allocation4 + $0x10] sm:$0xff] %vm506, %v461
        %3526 = vst.msk [vmem:[#allocation4 + $0x18] sm:$0xff] %vm506, %v462
        %3527 = vst.msk [vmem:[#allocation4 + $0x20] sm:$0xff] %vm506, %v463
        %3528 = vst.msk [vmem:[#allocation4 + $0x28] sm:$0xff] %vm506, %v464
        %3529 = vst.msk [vmem:[#allocation4 + $0x30] sm:$0xff] %vm506, %v465
        %3530 = vst.msk [vmem:[#allocation4 + $0x38] sm:$0xff] %vm506, %v466
        %3531 = vst.msk [vmem:[#allocation4 + $0x40] sm:$0xff] %vm506, %v467
        %3532 = vst.msk [vmem:[#allocation4 + $0x48] sm:$0xff] %vm506, %v468
        %3533 = vst.msk [vmem:[#allocation4 + $0x50] sm:$0xff] %vm506, %v469
        %3534 = vst.msk [vmem:[#allocation4 + $0x58] sm:$0xff] %vm506, %v470
        %3535 = vst.msk [vmem:[#allocation4 + $0x60] sm:$0xff] %vm506, %v471
        %3536 = vst.msk [vmem:[#allocation4 + $0x68] sm:$0xff] %vm506, %v472
        %3537 = vst.msk [vmem:[#allocation4 + $0x70] sm:$0xff] %vm506, %v473
        %3538 = vst.msk [vmem:[#allocation4 + $0x78] sm:$0xff] %vm506, %v474
        %3539 = vst.msk [vmem:[#allocation4 + $0x80] sm:$0xff] %vm506, %v475
        %3540 = vst.msk [vmem:[#allocation4 + $0x88] sm:$0xff] %vm506, %v476
        %3541 = vst.msk [vmem:[#allocation4 + $0x90] sm:$0xff] %vm506, %v477
        %3542 = vst.msk [vmem:[#allocation4 + $0x98] sm:$0xff] %vm506, %v478
        %3543 = vst.msk [vmem:[#allocation4 + $0xa0] sm:$0xff] %vm506, %v479
        %3544 = vst.msk [vmem:[#allocation4 + $0xa8] sm:$0xff] %vm506, %v480
        %3545 = vst.msk [vmem:[#allocation4 + $0xb0] sm:$0xff] %vm506, %v481
        %3546 = vst.msk [vmem:[#allocation4 + $0xb8] sm:$0xff] %vm506, %v482
        %3547 = vst.msk [vmem:[#allocation4 + $0xc0] sm:$0xff] %vm506, %v483
        %3548 = vst.msk [vmem:[#allocation4 + $0xc8] sm:$0xff] %vm506, %v484
        %3549 = vst.msk [vmem:[#allocation4 + $0xd0] sm:$0xff] %vm506, %v485
        %3550 = vst.msk [vmem:[#allocation4 + $0xd8] sm:$0xff] %vm506, %v486
        %3551 = vst.msk [vmem:[#allocation4 + $0xe0] sm:$0xff] %vm506, %v487
        %3552 = vst.msk [vmem:[#allocation4 + $0xe8] sm:$0xff] %vm506, %v488
        %3553 = vst.msk [vmem:[#allocation4 + $0xf0] sm:$0xff] %vm506, %v489
        %3554 = vst.msk [vmem:[#allocation4 + $0xf8] sm:$0xff] %vm506, %v490
        %v3555 = vld [vmem:[#allocation4] ss:$2 sm:$0xff]
        %s3556 = scalar_lea.vmem [#allocation4], 16
        %v3557 = vld [vmem:[%s3556] ss:$2 sm:$0xff]
        %s3558 = scalar_lea.vmem [#allocation4], 32
        %v3559 = vld [vmem:[%s3558] ss:$2 sm:$0xff]
        %s3560 = scalar_lea.vmem [#allocation4], 48
        %v3561 = vld [vmem:[%s3560] ss:$2 sm:$0xff]
        %s3562 = scalar_lea.vmem [#allocation4], 64
        %v3563 = vld [vmem:[%s3562] ss:$2 sm:$0xff]
        %s3564 = scalar_lea.vmem [#allocation4], 80
        %v3565 = vld [vmem:[%s3564] ss:$2 sm:$0xff]
        %s3566 = scalar_lea.vmem [#allocation4], 96
        %v3567 = vld [vmem:[%s3566] ss:$2 sm:$0xff]
        %s3568 = scalar_lea.vmem [#allocation4], 112
        %v3569 = vld [vmem:[%s3568] ss:$2 sm:$0xff]
        %s3570 = scalar_lea.vmem [#allocation4], 128
        %v3571 = vld [vmem:[%s3570] ss:$2 sm:$0xff]
        %s3572 = scalar_lea.vmem [#allocation4], 144
        %v3573 = vld [vmem:[%s3572] ss:$2 sm:$0xff]
        %s3574 = scalar_lea.vmem [#allocation4], 160
        %v3575 = vld [vmem:[%s3574] ss:$2 sm:$0xff]
        %s3576 = scalar_lea.vmem [#allocation4], 176
        %v3577 = vld [vmem:[%s3576] ss:$2 sm:$0xff]
        %s3578 = scalar_lea.vmem [#allocation4], 192
        %v3579 = vld [vmem:[%s3578] ss:$2 sm:$0xff]
        %s3580 = scalar_lea.vmem [#allocation4], 208
        %v3581 = vld [vmem:[%s3580] ss:$2 sm:$0xff]
        %s3582 = scalar_lea.vmem [#allocation4], 224
        %v3583 = vld [vmem:[%s3582] ss:$2 sm:$0xff]
        %s3584 = scalar_lea.vmem [#allocation4], 240
        %v3585 = vld [vmem:[%s3584] ss:$2 sm:$0xff]
        %s3586 = scalar_lea.vmem [#allocation4], 1
        %v3587 = vld [vmem:[%s3586] ss:$2 sm:$0xff]
        %s3588 = scalar_lea.vmem [#allocation4], 17
        %v3589 = vld [vmem:[%s3588] ss:$2 sm:$0xff]
        %s3590 = scalar_lea.vmem [#allocation4], 33
        %v3591 = vld [vmem:[%s3590] ss:$2 sm:$0xff]
        %s3592 = scalar_lea.vmem [#allocation4], 49
        %v3593 = vld [vmem:[%s3592] ss:$2 sm:$0xff]
        %s3594 = scalar_lea.vmem [#allocation4], 65
        %v3595 = vld [vmem:[%s3594] ss:$2 sm:$0xff]
        %s3596 = scalar_lea.vmem [#allocation4], 81
        %v3597 = vld [vmem:[%s3596] ss:$2 sm:$0xff]
        %s3598 = scalar_lea.vmem [#allocation4], 97
        %v3599 = vld [vmem:[%s3598] ss:$2 sm:$0xff]
        %s3600 = scalar_lea.vmem [#allocation4], 113
        %v3601 = vld [vmem:[%s3600] ss:$2 sm:$0xff]
        %s3602 = scalar_lea.vmem [#allocation4], 129
        %v3603 = vld [vmem:[%s3602] ss:$2 sm:$0xff]
        %s3604 = scalar_lea.vmem [#allocation4], 145
        %v3605 = vld [vmem:[%s3604] ss:$2 sm:$0xff]
        %s3606 = scalar_lea.vmem [#allocation4], 161
        %v3607 = vld [vmem:[%s3606] ss:$2 sm:$0xff]
        %s3608 = scalar_lea.vmem [#allocation4], 177
        %v3609 = vld [vmem:[%s3608] ss:$2 sm:$0xff]
        %s3610 = scalar_lea.vmem [#allocation4], 193
        %v3611 = vld [vmem:[%s3610] ss:$2 sm:$0xff]
        %s3612 = scalar_lea.vmem [#allocation4], 209
        %v3613 = vld [vmem:[%s3612] ss:$2 sm:$0xff]
        %s3614 = scalar_lea.vmem [#allocation4], 225
        %v3615 = vld [vmem:[%s3614] ss:$2 sm:$0xff]
        %s3616 = scalar_lea.vmem [#allocation4], 241
        %v3617 = vld [vmem:[%s3616] ss:$2 sm:$0xff]
        %v3618 = vadd.f32 %v3555, %v3587
        %v3619 = vadd.f32 %v3557, %v3589
        %v3620 = vadd.f32 %v3559, %v3591
        %v3621 = vadd.f32 %v3561, %v3593
        %v3622 = vadd.f32 %v3563, %v3595
        %v3623 = vadd.f32 %v3565, %v3597
        %v3624 = vadd.f32 %v3567, %v3599
        %v3625 = vadd.f32 %v3569, %v3601
        %v3626 = vadd.f32 %v3571, %v3603
        %v3627 = vadd.f32 %v3573, %v3605
        %v3628 = vadd.f32 %v3575, %v3607
        %v3629 = vadd.f32 %v3577, %v3609
        %v3630 = vadd.f32 %v3579, %v3611
        %v3631 = vadd.f32 %v3581, %v3613
        %v3632 = vadd.f32 %v3583, %v3615
        %v3633 = vadd.f32 %v3585, %v3617
        %v3634 = vadd.f32 %v3618, %v3619
        %v3635 = vadd.f32 %v3620, %v3621
        %v3636 = vadd.f32 %v3622, %v3623
        %v3637 = vadd.f32 %v3624, %v3625
        %v3638 = vadd.f32 %v3626, %v3627
        %v3639 = vadd.f32 %v3628, %v3629
        %v3640 = vadd.f32 %v3630, %v3631
        %v3641 = vadd.f32 %v3632, %v3633
        %v3642 = vmul.f32 %v3634, 0.25
        %v3643 = vmul.f32 %v3635, 0.25
        %v3644 = vmul.f32 %v3636, 0.25
        %v3645 = vmul.f32 %v3637, 0.25
        %v3646 = vmul.f32 %v3638, 0.25
        %v3647 = vmul.f32 %v3639, 0.25
        %v3648 = vmul.f32 %v3640, 0.25
        %v3649 = vmul.f32 %v3641, 0.25
        %v3650 = vld [vmem:[#allocation17] sm:$0xff]
        %v3651 = vld [vmem:[#allocation17 + $0x8] sm:$0xff]
        %v3652 = vld [vmem:[#allocation17 + $0x10] sm:$0xff]
        %v3653 = vld [vmem:[#allocation17 + $0x18] sm:$0xff]
        %v3654 = vld [vmem:[#allocation17 + $0x20] sm:$0xff]
        %v3655 = vld [vmem:[#allocation17 + $0x28] sm:$0xff]
        %v3656 = vld [vmem:[#allocation17 + $0x30] sm:$0xff]
        %v3657 = vld [vmem:[#allocation17 + $0x38] sm:$0xff]
        %v3658 = vld [vmem:[#allocation19] sm:$0x1]
        %v3660 = vlaneseq
        %v3661 = vshrl.u32 %v3660, 7
        %v3662 = vsub.s32 0, %v3661
        %v3663 = vrot.slane %v3658, %v3662
        %v3666 = vsel %vm506, %v3642, 0
        %v3669 = vsel %vm506, %v3643, 0
        %v3672 = vsel %vm506, %v3644, 0
        %v3675 = vsel %vm506, %v3645, 0
        %v3678 = vsel %vm506, %v3646, 0
        %v3681 = vsel %vm506, %v3647, 0
        %v3684 = vsel %vm506, %v3648, 0
        %v3687 = vsel %vm506, %v3649, 0
        %3689 = vmatprep.subr.mxu0 0.0
        %3690 = vmatpush1.msra.mxu0 %v3650
        %3691 = vmatprep.subr.mxu0 0.0
        %3692 = vmatpush1.msra.mxu0 %v3651
        %3693 = vmatprep.subr.mxu0 0.0
        %3694 = vmatpush1.msra.mxu0 %v3652
        %3695 = vmatprep.subr.mxu0 0.0
        %3696 = vmatpush1.msra.mxu0 %v3653
        %3697 = vmatprep.subr.mxu0 0.0
        %3698 = vmatpush1.msra.mxu0 %v3654
        %3699 = vmatprep.subr.mxu0 0.0
        %3700 = vmatpush1.msra.mxu0 %v3655
        %3701 = vmatprep.subr.mxu0 0.0
        %3702 = vmatpush1.msra.mxu0 %v3656
        %3703 = vmatprep.subr.mxu0 0.0
        %3704 = vmatpush1.msra.mxu0 %v3657
        %3705 = vmatprep.subr.mxu0 0.0
        %3706 = vmatpush1.msra.mxu0 0.0
        %3707 = vmatprep.subr.mxu0 0.0
        %3708 = vmatpush1.msra.mxu0 0.0
        %3709 = vmatprep.subr.mxu0 0.0
        %3710 = vmatpush1.msra.mxu0 0.0
        %3711 = vmatprep.subr.mxu0 0.0
        %3712 = vmatpush1.msra.mxu0 0.0
        %3713 = vmatprep.subr.mxu0 0.0
        %3714 = vmatpush1.msra.mxu0 0.0
        %3715 = vmatprep.subr.mxu0 0.0
        %3716 = vmatpush1.msra.mxu0 0.0
        %3717 = vmatprep.subr.mxu0 0.0
        %3718 = vmatpush1.msra.mxu0 0.0
        %3719 = vmatprep.subr.mxu0 0.0
        %3720 = vmatpush1.msra.mxu0 0.0
        %3721 = vmatprep.subr.mxu0 0.0
        %3722 = vmatpush1.msra.mxu0 0.0
        %3723 = vmatprep.subr.mxu0 0.0
        %3724 = vmatpush1.msra.mxu0 0.0
        %3725 = vmatprep.subr.mxu0 0.0
        %3726 = vmatpush1.msra.mxu0 0.0
        %3727 = vmatprep.subr.mxu0 0.0
        %3728 = vmatpush1.msra.mxu0 0.0
        %3729 = vmatprep.subr.mxu0 0.0
        %3730 = vmatpush1.msra.mxu0 0.0
        %3731 = vmatprep.subr.mxu0 0.0
        %3732 = vmatpush1.msra.mxu0 0.0
        %3733 = vmatprep.subr.mxu0 0.0
        %3734 = vmatpush1.msra.mxu0 0.0
        %3735 = vmatprep.subr.mxu0 0.0
        %3736 = vmatpush1.msra.mxu0 0.0
        %3737 = vmatprep.subr.mxu0 0.0
        %3738 = vmatpush1.msra.mxu0 0.0
        %3739 = vmatprep.subr.mxu0 0.0
        %3740 = vmatpush1.msra.mxu0 0.0
        %3741 = vmatprep.subr.mxu0 0.0
        %3742 = vmatpush1.msra.mxu0 0.0
        %3743 = vmatprep.subr.mxu0 0.0
        %3744 = vmatpush1.msra.mxu0 0.0
        %3745 = vmatprep.subr.mxu0 0.0
        %3746 = vmatpush1.msra.mxu0 0.0
        %3747 = vmatprep.subr.mxu0 0.0
        %3748 = vmatpush1.msra.mxu0 0.0
        %3749 = vmatprep.subr.mxu0 0.0
        %3750 = vmatpush1.msra.mxu0 0.0
        %3751 = vmatprep.subr.mxu0 0.0
        %3752 = vmatpush1.msra.mxu0 0.0
        %3753 = vmatprep.mubr.f32.mxu0 0.0
        %3754 = vmatmul.mubr.f32.gmra.mrb[0].mxu0 %v3666
        %v3755 = vpop.f32.mrb[0].mxu0
        %v3756 = vadd.f32 %v3663, %v3755
        %v3757 = vpop.f32.mrb[0].mxu0
        %3758 = vmatprep.mubr.f32.mxu0 0.0
        %3759 = vmatmul.mubr.f32.gmra.mrb[0].mxu0 %v3669
        %v3760 = vpop.f32.mrb[0].mxu0
        %v3761 = vadd.f32 %v3663, %v3760
        %v3762 = vpop.f32.mrb[0].mxu0
        %3763 = vmatprep.mubr.f32.mxu0 0.0
        %3764 = vmatmul.mubr.f32.gmra.mrb[0].mxu0 %v3672
        %v3765 = vpop.f32.mrb[0].mxu0
        %v3766 = vadd.f32 %v3663, %v3765
        %v3767 = vpop.f32.mrb[0].mxu0
        %3768 = vmatprep.mubr.f32.mxu0 0.0
        %3769 = vmatmul.mubr.f32.gmra.mrb[0].mxu0 %v3675
        %v3770 = vpop.f32.mrb[0].mxu0
        %v3771 = vadd.f32 %v3663, %v3770
        %v3772 = vpop.f32.mrb[0].mxu0
        %3773 = vmatprep.mubr.f32.mxu0 0.0
        %3774 = vmatmul.mubr.f32.gmra.mrb[0].mxu0 %v3678
        %v3775 = vpop.f32.mrb[0].mxu0
        %v3776 = vadd.f32 %v3663, %v3775
        %v3777 = vpop.f32.mrb[0].mxu0
        %3778 = vmatprep.mubr.f32.mxu0 0.0
        %3779 = vmatmul.mubr.f32.gmra.mrb[0].mxu0 %v3681
        %v3780 = vpop.f32.mrb[0].mxu0
        %v3781 = vadd.f32 %v3663, %v3780
        %v3782 = vpop.f32.mrb[0].mxu0
        %3783 = vmatprep.mubr.f32.mxu0 0.0
        %3784 = vmatmul.mubr.f32.gmra.mrb[0].mxu0 %v3684
        %v3785 = vpop.f32.mrb[0].mxu0
        %v3786 = vadd.f32 %v3663, %v3785
        %v3787 = vpop.f32.mrb[0].mxu0
        %3788 = vmatprep.mubr.f32.mxu0 0.0
        %3789 = vmatmul.mubr.f32.gmra.mrb[0].mxu0 %v3687
        %v3790 = vpop.f32.mrb[0].mxu0
        %v3791 = vadd.f32 %v3663, %v3790
        %v3792 = vpop.f32.mrb[0].mxu0
        %3793 = vdwg.mxu0
        %v3794 = vadd.f32 %v3485, %v3756
        %v3795 = vadd.f32 %v3490, %v3761
        %v3796 = vadd.f32 %v3495, %v3766
        %v3797 = vadd.f32 %v3500, %v3771
        %v3798 = vadd.f32 %v3505, %v3776
        %v3799 = vadd.f32 %v3510, %v3781
        %v3800 = vadd.f32 %v3515, %v3786
        %v3801 = vadd.f32 %v3520, %v3791
        %v3802 = vmax.f32 %v3794, 0.0
        %v3803 = vmax.f32 %v3795, 0.0
        %v3804 = vmax.f32 %v3796, 0.0
        %v3805 = vmax.f32 %v3797, 0.0
        %v3806 = vmax.f32 %v3798, 0.0
        %v3807 = vmax.f32 %v3799, 0.0
        %v3808 = vmax.f32 %v3800, 0.0
        %v3809 = vmax.f32 %v3801, 0.0
        %3810 = vst [vmem:[%s458] sm:$0xff] %v3802
        %3811 = vst [vmem:[%s458 + $0x8] sm:$0xff] %v3803
        %3812 = vst [vmem:[%s458 + $0x10] sm:$0xff] %v3804
        %3813 = vst [vmem:[%s458 + $0x18] sm:$0xff] %v3805
        %3814 = vst [vmem:[%s458 + $0x20] sm:$0xff] %v3806
        %3815 = vst [vmem:[%s458 + $0x28] sm:$0xff] %v3807
        %3816 = vst [vmem:[%s458 + $0x30] sm:$0xff] %v3808
        %3817 = vst [vmem:[%s458 + $0x38] sm:$0xff] %v3809
        %s3818 = sand.u32 %s232, 1
        %s3819 = scalar_lea.sflag [#allocation7], %s3818
        %s3820 = sand.u32 %s232, 1
        %s3821 = smul.addr %s3820, 64
        %s3822 = scalar_lea.vmem [#allocation20], %s3821
        // Predicated region
        $region93: #{tpu_custom_call.1} parent=55 // pred_check
          %p3823 = pneg %p242
        $region94: #{tpu_custom_call.1} parent=55 // pred_check_branch
          %3825 = sbr.rel (%p3823) target = $region96
        $region95: #{tpu_custom_call.1} parent=55 // pred_region
          %s3827 = ssub.s32 1024, 1024
          %3828 = vsyncadd %s3819, %s3827
          %s3829 = smul.addr %s30, 8
          %s3830 = smul.addr %s3829, 128
          %s3831 = scalar_lea.hbm %s9, %s3830
          %s3832 = sshll.u32 %s3822, 4
          %s3833 = int_to_ptr.vmem [resolvable:$true] %s3832
          %3838 = dma.vmem_to_hbm [thread:$0]  %s3833, 1024, %s3831, %s3819, 128, 128, 8
        $region96: #{tpu_custom_call.1} parent=55 // pred_fallthru
          _
      $region56: #{tpu_custom_call.1} parent=5 // pred_fallthru
        _
      %p3839 = scmp.le.s32.totalorder 2, %s25
      // Predicated region
      $region97: #{tpu_custom_call.1} parent=5 // pred_check
        %p3840 = pneg %p3839
      $region98: #{tpu_custom_call.1} parent=5 // pred_check_branch
        %3842 = sbr.rel (%p3840) target = $region100
      $region99: #{tpu_custom_call.1} parent=5 // pred_region
        %s3843 = ssub.s32 %s25, 2
        // Predicated region
        $region101: #{tpu_custom_call.1} parent=99 // pred_check
          %p3844 = pneg %p248
        $region102: #{tpu_custom_call.1} parent=99 // pred_check_branch
          %3846 = sbr.rel (%p3844) target = $region104
        $region103: #{tpu_custom_call.1} parent=99 // pred_region
          %s3847 = sand.u32 %s233, 1
          %s3848 = scalar_lea.sflag [#allocation7], %s3847
          %s3849 = sand.u32 %s233, 1
          %s3850 = smul.addr %s3849, 64
          %s3851 = scalar_lea.vmem [#allocation20], %s3850
          %3852 = dma.done %s3848, 1024
        $region104: #{tpu_custom_call.1} parent=99 // pred_fallthru
          _
      $region100: #{tpu_custom_call.1} parent=5 // pred_fallthru
        _
    $region6: #{tpu_custom_call.1} parent=1 // loop_footer
      %s29 = sadd.s32 1, %s25
    $region7: #{tpu_custom_call.1} parent=1 // loop_footer_branch
      %24 = sbr.rel target = $region3
    $region8: #{tpu_custom_call.1} parent=1 // loop_exit
      _
    %3853 = vsyncpa [#allocation6], 1
    %s3854 = scalar_lea.sflag [#allocation6], 1
    %3855 = vsyncpa %s3854, 1
    %3856 = vsyncpa [#allocation9], 1
    %3857 = vsyncpa [#allocation12], 1
    %3858 = vsyncpa [#allocation15], 1
    %3859 = vsyncpa [#allocation18], 1
    %3860 = vsyncpa [#allocation7], 1
    %s3861 = scalar_lea.sflag [#allocation7], 1
    %3862 = vsyncpa %s3861, 1

</llo_original>
